<compile_context>
chip_gen: v7x
topology: tpu7x:2x2x1
jax: 0.10.0
libtpu: 0.0.40
codegen_flags: <defaults>
</compile_context>

<pallas_src>
import functools

import jax
import jax.numpy as jnp
from jax.experimental import pallas as pl
from jax.experimental.pallas import tpu as pltpu

EPS = 1e-5


def _conv3x3_im2col(x_flat, w_r, H, W, C):
    """x_flat: (C, H*W) f32; w_r: (C, 9*C) with columns ordered (dy, dx, cin)."""
    x3 = x_flat.reshape(C, H, W)
    # ReflectionPad2d(1)
    xp = jnp.concatenate([x3[:, 1:2, :], x3, x3[:, H - 2:H - 1, :]], axis=1)
    xp = jnp.concatenate([xp[:, :, 1:2], xp, xp[:, :, W - 2:W - 1]], axis=2)
    # im2col: (9*C, H*W), row order (dy, dx, cin) matching w_r's columns.
    views = [xp[:, dy:dy + H, dx:dx + W].reshape(C, H * W)
             for dy in range(3) for dx in range(3)]
    patches = jnp.concatenate(views, axis=0)
    # One MXU push with K = 9*C (instead of 9 K=C pushes + VALU accumulates).
    # On v6e/v7x, casting w_r/patches to bfloat16 (keeping f32 accumulation)
    # is a further MXU win when the accuracy budget allows.
    return jnp.dot(w_r, patches, preferred_element_type=jnp.float32)


def _instance_norm(h, inv_n):
    """h: (C, H*W). Per-channel (row) mean/var over the lane axis, fused stats."""
    s = jnp.sum(h, axis=1, keepdims=True)
    s2 = jnp.sum(h * h, axis=1, keepdims=True)
    mean = s * inv_n
    var = jnp.maximum(s2 * inv_n - mean * mean, 0.0)
    return (h - mean) * jax.lax.rsqrt(var + EPS)


def resnet_block_kernel(x_ref, w1_ref, w2_ref, o_ref, *, H, W, C):
    inv_n = 1.0 / float(H * W)
    x = x_ref[0].astype(jnp.float32)                      # (C, H*W)

    h = _conv3x3_im2col(x, w1_ref[...], H, W, C)          # conv1 (reflect pad)
    h = jnp.maximum(_instance_norm(h, inv_n), 0.0)        # IN + ReLU
    h = _conv3x3_im2col(h, w2_ref[...], H, W, C)          # conv2 (reflect pad)
    h = _instance_norm(h, inv_n)                          # IN

    o_ref[0] = (x + h).astype(o_ref.dtype)                # residual skip


def resnet_block(x_nchw, w1, b1, w2, b2):
    """x_nchw: (N, C, H, W) f32; w*: (3, 3, C, C) HWIO; b*: (1, C).

    b1/b2 are accepted for interface parity but are mathematically cancelled
    by the affine-free InstanceNorm that follows each conv, so they are not
    passed to the kernel (saves two broadcast-add passes + two DMAs).
    """
    del b1, b2
    N, C, H, W = x_nchw.shape
    HW = H * W
    x = x_nchw.reshape(N, C, HW)                          # flattened NCHW, lane-dense
    # (C, 9*C) weights, column order (dy, dx, cin) -- matches the kernel's im2col.
    w1_r = jnp.transpose(w1.reshape(9 * C, C))
    w2_r = jnp.transpose(w2.reshape(9 * C, C))

    # Explicit VMEM budget: per-image in/out blocks (double-buffered) + weights
    # + in-kernel im2col/norm temporaries; clamped to stay inside v7x's 64 MiB.
    block_bytes = C * HW * 4
    est = (4 + 16) * block_bytes + 4 * (C * 9 * C) * 4
    vmem_limit = int(min(max(2 * est, 16 * 2 ** 20), 64 * 2 ** 20))
    # TODO(synk): for production sizes (e.g. C=256, 64x64 on v7x) add a spatial
    # grid axis with a two-pass instance norm instead of whole-image blocks.

    kernel = functools.partial(resnet_block_kernel, H=H, W=W, C=C)
    out = pl.pallas_call(
        kernel,
        out_shape=jax.ShapeDtypeStruct((N, C, HW), x.dtype),
        grid_spec=pltpu.PrefetchScalarGridSpec(
            num_scalar_prefetch=0,
            grid=(N,),
            in_specs=[
                pl.BlockSpec((1, C, HW), lambda n: (n, 0, 0)),
                # Weights are grid-invariant; single-buffering them
                # (pipeline_mode=pl.Buffered(1)) would save VMEM at large C --
                # left at default buffering for portability (tiny at C=4).
                pl.BlockSpec((C, 9 * C), lambda n: (0, 0)),
                pl.BlockSpec((C, 9 * C), lambda n: (0, 0)),
            ],
            out_specs=pl.BlockSpec((1, C, HW), lambda n: (n, 0, 0)),
        ),
        compiler_params=pltpu.CompilerParams(
            dimension_semantics=("parallel",),
            vmem_limit_bytes=vmem_limit),
    )(x, w1_r, w2_r)

    return out.reshape(N, C, H, W)


def resnet_block_ref(x_nchw, w1, b1, w2, b2):
    """Pure-JAX reference of the same forward pass (keeps the biases)."""
    x = jnp.transpose(x_nchw, (0, 2, 3, 1))

    def conv(h, w, b):
        hp = jnp.pad(h, ((0, 0), (1, 1), (1, 1), (0, 0)), mode="reflect")
        y = jax.lax.conv_general_dilated(
            hp, w, (1, 1), "VALID",
            dimension_numbers=("NHWC", "HWIO", "NHWC"))
        return y + b.reshape(1, 1, 1, -1)

    def inorm(h):
        m = jnp.mean(h, axis=(1, 2), keepdims=True)
        v = jnp.mean((h - m) ** 2, axis=(1, 2), keepdims=True)
        return (h - m) * jax.lax.rsqrt(v + EPS)

    h = jnp.maximum(inorm(conv(x, w1, b1)), 0.0)
    h = inorm(conv(h, w2, b2))
    return jnp.transpose(x + h, (0, 3, 1, 2))


if __name__ == "__main__":
    key = jax.random.PRNGKey(0)
    k_x, k_w1, k_b1, k_w2, k_b2 = jax.random.split(key, 5)

    N, C, H, W = 2, 4, 16, 16                             # dim = 4
    x = jax.random.normal(k_x, (N, C, H, W), jnp.float32)
    w1 = 0.1 * jax.random.normal(k_w1, (3, 3, C, C), jnp.float32)
    b1 = 0.1 * jax.random.normal(k_b1, (1, C), jnp.float32)
    w2 = 0.1 * jax.random.normal(k_w2, (3, 3, C, C), jnp.float32)
    b2 = 0.1 * jax.random.normal(k_b2, (1, C), jnp.float32)

    out = jax.block_until_ready(resnet_block(x, w1, b1, w2, b2))
    ref = jax.block_until_ready(resnet_block_ref(x, w1, b1, w2, b2))

    assert out.shape == (N, C, H, W)
    assert jnp.allclose(out, ref, rtol=2e-3, atol=2e-3)
    print("KERNEL_OK")
</pallas_src>

<mosaic_0001>
module attributes {stable_mosaic.version = 11 : i64} {
  func.func @resnet_block_kernel(%arg0: i32, %arg1: memref<1x4x256xf32, #tpu.memory_space<vmem>>, %arg2: memref<4x36xf32, #tpu.memory_space<vmem>>, %arg3: memref<4x36xf32, #tpu.memory_space<vmem>>, %arg4: memref<1x4x256xf32, #tpu.memory_space<vmem>>) attributes {dimension_semantics = [#tpu.dimension_semantics<parallel>], iteration_bounds = array<i64: 2>, scalar_prefetch = 0 : i64, scratch_operands = 0 : i64, tpu.core_type = #tpu.core_type<tc>, window_params = [{transform_indices = @transform_0, window_bounds = array<i64: 1, 4, 256>}, {pipeline_mode = #tpu.pipeline_mode<synchronous>, transform_indices = @transform_1, window_bounds = array<i64: 4, 36>}, {pipeline_mode = #tpu.pipeline_mode<synchronous>, transform_indices = @transform_2, window_bounds = array<i64: 4, 36>}, {transform_indices = @transform_3, window_bounds = array<i64: 1, 4, 256>}]} {
    %c0 = arith.constant 0 : index
    %c0_0 = arith.constant 0 : index
    %c0_1 = arith.constant 0 : index
    %0 = vector.load %arg1[%c0, %c0_0, %c0_1] : memref<1x4x256xf32, #tpu.memory_space<vmem>>, vector<1x4x256xf32>
    %1 = vector.shape_cast %0 : vector<1x4x256xf32> to vector<4x256xf32>
    %c0_2 = arith.constant 0 : index
    %c0_3 = arith.constant 0 : index
    %2 = vector.load %arg2[%c0_2, %c0_3] : memref<4x36xf32, #tpu.memory_space<vmem>>, vector<4x36xf32>
    %3 = vector.shape_cast %1 : vector<4x256xf32> to vector<4x16x16xf32>
    %4 = vector.extract_strided_slice %3 {offsets = [0, 1, 0], sizes = [4, 1, 16], strides = [1, 1, 1]} : vector<4x16x16xf32> to vector<4x1x16xf32>
    %5 = vector.extract_strided_slice %3 {offsets = [0, 14, 0], sizes = [4, 1, 16], strides = [1, 1, 1]} : vector<4x16x16xf32> to vector<4x1x16xf32>
    %6 = tpu.concatenate %4, %3, %5 in 1 : vector<4x1x16xf32>, vector<4x16x16xf32>, vector<4x1x16xf32> -> vector<4x18x16xf32>
    %7 = vector.extract_strided_slice %6 {offsets = [0, 0, 1], sizes = [4, 18, 1], strides = [1, 1, 1]} : vector<4x18x16xf32> to vector<4x18x1xf32>
    %8 = vector.extract_strided_slice %6 {offsets = [0, 0, 14], sizes = [4, 18, 1], strides = [1, 1, 1]} : vector<4x18x16xf32> to vector<4x18x1xf32>
    %9 = tpu.concatenate %7, %6, %8 in 2 : vector<4x18x1xf32>, vector<4x18x16xf32>, vector<4x18x1xf32> -> vector<4x18x18xf32>
    %10 = vector.extract_strided_slice %9 {offsets = [0, 0, 0], sizes = [4, 16, 16], strides = [1, 1, 1]} : vector<4x18x18xf32> to vector<4x16x16xf32>
    %11 = vector.shape_cast %10 : vector<4x16x16xf32> to vector<4x256xf32>
    %12 = vector.extract_strided_slice %9 {offsets = [0, 0, 1], sizes = [4, 16, 16], strides = [1, 1, 1]} : vector<4x18x18xf32> to vector<4x16x16xf32>
    %13 = vector.shape_cast %12 : vector<4x16x16xf32> to vector<4x256xf32>
    %14 = vector.extract_strided_slice %9 {offsets = [0, 0, 2], sizes = [4, 16, 16], strides = [1, 1, 1]} : vector<4x18x18xf32> to vector<4x16x16xf32>
    %15 = vector.shape_cast %14 : vector<4x16x16xf32> to vector<4x256xf32>
    %16 = vector.extract_strided_slice %9 {offsets = [0, 1, 0], sizes = [4, 16, 16], strides = [1, 1, 1]} : vector<4x18x18xf32> to vector<4x16x16xf32>
    %17 = vector.shape_cast %16 : vector<4x16x16xf32> to vector<4x256xf32>
    %18 = vector.extract_strided_slice %9 {offsets = [0, 1, 1], sizes = [4, 16, 16], strides = [1, 1, 1]} : vector<4x18x18xf32> to vector<4x16x16xf32>
    %19 = vector.shape_cast %18 : vector<4x16x16xf32> to vector<4x256xf32>
    %20 = vector.extract_strided_slice %9 {offsets = [0, 1, 2], sizes = [4, 16, 16], strides = [1, 1, 1]} : vector<4x18x18xf32> to vector<4x16x16xf32>
    %21 = vector.shape_cast %20 : vector<4x16x16xf32> to vector<4x256xf32>
    %22 = vector.extract_strided_slice %9 {offsets = [0, 2, 0], sizes = [4, 16, 16], strides = [1, 1, 1]} : vector<4x18x18xf32> to vector<4x16x16xf32>
    %23 = vector.shape_cast %22 : vector<4x16x16xf32> to vector<4x256xf32>
    %24 = vector.extract_strided_slice %9 {offsets = [0, 2, 1], sizes = [4, 16, 16], strides = [1, 1, 1]} : vector<4x18x18xf32> to vector<4x16x16xf32>
    %25 = vector.shape_cast %24 : vector<4x16x16xf32> to vector<4x256xf32>
    %26 = vector.extract_strided_slice %9 {offsets = [0, 2, 2], sizes = [4, 16, 16], strides = [1, 1, 1]} : vector<4x18x18xf32> to vector<4x16x16xf32>
    %27 = vector.shape_cast %26 : vector<4x16x16xf32> to vector<4x256xf32>
    %28 = tpu.concatenate %11, %13, %15, %17, %19, %21, %23, %25, %27 in 0 : vector<4x256xf32>, vector<4x256xf32>, vector<4x256xf32>, vector<4x256xf32>, vector<4x256xf32>, vector<4x256xf32>, vector<4x256xf32>, vector<4x256xf32>, vector<4x256xf32> -> vector<36x256xf32>
    %cst = arith.constant dense<0.000000e+00> : vector<4x256xf32>
    %29 = tpu.matmul %2, %28, %cst {dimension_numbers = #tpu.dot_dimension_numbers<[1], [0], [0], [1], [0, 0, 1, 1], [], []>} : vector<4x36xf32>, vector<36x256xf32>, vector<4x256xf32> -> vector<4x256xf32>
    %cst_4 = arith.constant dense<0.000000e+00> : vector<4xf32>
    %30 = vector.multi_reduction <add>, %29, %cst_4 [1] : vector<4x256xf32> to vector<4xf32>
    %31 = vector.shape_cast %30 : vector<4xf32> to vector<4x1xf32>
    %32 = arith.mulf %29, %29 : vector<4x256xf32>
    %cst_5 = arith.constant dense<0.000000e+00> : vector<4xf32>
    %33 = vector.multi_reduction <add>, %32, %cst_5 [1] : vector<4x256xf32> to vector<4xf32>
    %34 = vector.shape_cast %33 : vector<4xf32> to vector<4x1xf32>
    %cst_6 = arith.constant 3.906250e-03 : f32
    %35 = vector.broadcast %cst_6 : f32 to vector<4x1xf32>
    %36 = arith.mulf %31, %35 : vector<4x1xf32>
    %cst_7 = arith.constant 3.906250e-03 : f32
    %37 = vector.broadcast %cst_7 : f32 to vector<4x1xf32>
    %38 = arith.mulf %34, %37 : vector<4x1xf32>
    %39 = arith.mulf %36, %36 : vector<4x1xf32>
    %40 = arith.subf %38, %39 : vector<4x1xf32>
    %cst_8 = arith.constant 0.000000e+00 : f32
    %41 = vector.broadcast %cst_8 : f32 to vector<4x1xf32>
    %42 = arith.maximumf %40, %41 : vector<4x1xf32>
    %43 = vector.broadcast %36 : vector<4x1xf32> to vector<4x256xf32>
    %44 = arith.subf %29, %43 : vector<4x256xf32>
    %cst_9 = arith.constant 9.99999974E-6 : f32
    %45 = vector.broadcast %cst_9 : f32 to vector<4x1xf32>
    %46 = arith.addf %42, %45 : vector<4x1xf32>
    %47 = math.rsqrt %46 : vector<4x1xf32>
    %48 = vector.broadcast %47 : vector<4x1xf32> to vector<4x256xf32>
    %49 = arith.mulf %44, %48 : vector<4x256xf32>
    %cst_10 = arith.constant 0.000000e+00 : f32
    %50 = vector.broadcast %cst_10 : f32 to vector<4x256xf32>
    %51 = arith.maximumf %49, %50 : vector<4x256xf32>
    %c0_11 = arith.constant 0 : index
    %c0_12 = arith.constant 0 : index
    %52 = vector.load %arg3[%c0_11, %c0_12] : memref<4x36xf32, #tpu.memory_space<vmem>>, vector<4x36xf32>
    %53 = vector.shape_cast %51 : vector<4x256xf32> to vector<4x16x16xf32>
    %54 = vector.extract_strided_slice %53 {offsets = [0, 1, 0], sizes = [4, 1, 16], strides = [1, 1, 1]} : vector<4x16x16xf32> to vector<4x1x16xf32>
    %55 = vector.extract_strided_slice %53 {offsets = [0, 14, 0], sizes = [4, 1, 16], strides = [1, 1, 1]} : vector<4x16x16xf32> to vector<4x1x16xf32>
    %56 = tpu.concatenate %54, %53, %55 in 1 : vector<4x1x16xf32>, vector<4x16x16xf32>, vector<4x1x16xf32> -> vector<4x18x16xf32>
    %57 = vector.extract_strided_slice %56 {offsets = [0, 0, 1], sizes = [4, 18, 1], strides = [1, 1, 1]} : vector<4x18x16xf32> to vector<4x18x1xf32>
    %58 = vector.extract_strided_slice %56 {offsets = [0, 0, 14], sizes = [4, 18, 1], strides = [1, 1, 1]} : vector<4x18x16xf32> to vector<4x18x1xf32>
    %59 = tpu.concatenate %57, %56, %58 in 2 : vector<4x18x1xf32>, vector<4x18x16xf32>, vector<4x18x1xf32> -> vector<4x18x18xf32>
    %60 = vector.extract_strided_slice %59 {offsets = [0, 0, 0], sizes = [4, 16, 16], strides = [1, 1, 1]} : vector<4x18x18xf32> to vector<4x16x16xf32>
    %61 = vector.shape_cast %60 : vector<4x16x16xf32> to vector<4x256xf32>
    %62 = vector.extract_strided_slice %59 {offsets = [0, 0, 1], sizes = [4, 16, 16], strides = [1, 1, 1]} : vector<4x18x18xf32> to vector<4x16x16xf32>
    %63 = vector.shape_cast %62 : vector<4x16x16xf32> to vector<4x256xf32>
    %64 = vector.extract_strided_slice %59 {offsets = [0, 0, 2], sizes = [4, 16, 16], strides = [1, 1, 1]} : vector<4x18x18xf32> to vector<4x16x16xf32>
    %65 = vector.shape_cast %64 : vector<4x16x16xf32> to vector<4x256xf32>
    %66 = vector.extract_strided_slice %59 {offsets = [0, 1, 0], sizes = [4, 16, 16], strides = [1, 1, 1]} : vector<4x18x18xf32> to vector<4x16x16xf32>
    %67 = vector.shape_cast %66 : vector<4x16x16xf32> to vector<4x256xf32>
    %68 = vector.extract_strided_slice %59 {offsets = [0, 1, 1], sizes = [4, 16, 16], strides = [1, 1, 1]} : vector<4x18x18xf32> to vector<4x16x16xf32>
    %69 = vector.shape_cast %68 : vector<4x16x16xf32> to vector<4x256xf32>
    %70 = vector.extract_strided_slice %59 {offsets = [0, 1, 2], sizes = [4, 16, 16], strides = [1, 1, 1]} : vector<4x18x18xf32> to vector<4x16x16xf32>
    %71 = vector.shape_cast %70 : vector<4x16x16xf32> to vector<4x256xf32>
    %72 = vector.extract_strided_slice %59 {offsets = [0, 2, 0], sizes = [4, 16, 16], strides = [1, 1, 1]} : vector<4x18x18xf32> to vector<4x16x16xf32>
    %73 = vector.shape_cast %72 : vector<4x16x16xf32> to vector<4x256xf32>
    %74 = vector.extract_strided_slice %59 {offsets = [0, 2, 1], sizes = [4, 16, 16], strides = [1, 1, 1]} : vector<4x18x18xf32> to vector<4x16x16xf32>
    %75 = vector.shape_cast %74 : vector<4x16x16xf32> to vector<4x256xf32>
    %76 = vector.extract_strided_slice %59 {offsets = [0, 2, 2], sizes = [4, 16, 16], strides = [1, 1, 1]} : vector<4x18x18xf32> to vector<4x16x16xf32>
    %77 = vector.shape_cast %76 : vector<4x16x16xf32> to vector<4x256xf32>
    %78 = tpu.concatenate %61, %63, %65, %67, %69, %71, %73, %75, %77 in 0 : vector<4x256xf32>, vector<4x256xf32>, vector<4x256xf32>, vector<4x256xf32>, vector<4x256xf32>, vector<4x256xf32>, vector<4x256xf32>, vector<4x256xf32>, vector<4x256xf32> -> vector<36x256xf32>
    %cst_13 = arith.constant dense<0.000000e+00> : vector<4x256xf32>
    %79 = tpu.matmul %52, %78, %cst_13 {dimension_numbers = #tpu.dot_dimension_numbers<[1], [0], [0], [1], [0, 0, 1, 1], [], []>} : vector<4x36xf32>, vector<36x256xf32>, vector<4x256xf32> -> vector<4x256xf32>
    %cst_14 = arith.constant dense<0.000000e+00> : vector<4xf32>
    %80 = vector.multi_reduction <add>, %79, %cst_14 [1] : vector<4x256xf32> to vector<4xf32>
    %81 = vector.shape_cast %80 : vector<4xf32> to vector<4x1xf32>
    %82 = arith.mulf %79, %79 : vector<4x256xf32>
    %cst_15 = arith.constant dense<0.000000e+00> : vector<4xf32>
    %83 = vector.multi_reduction <add>, %82, %cst_15 [1] : vector<4x256xf32> to vector<4xf32>
    %84 = vector.shape_cast %83 : vector<4xf32> to vector<4x1xf32>
    %cst_16 = arith.constant 3.906250e-03 : f32
    %85 = vector.broadcast %cst_16 : f32 to vector<4x1xf32>
    %86 = arith.mulf %81, %85 : vector<4x1xf32>
    %cst_17 = arith.constant 3.906250e-03 : f32
    %87 = vector.broadcast %cst_17 : f32 to vector<4x1xf32>
    %88 = arith.mulf %84, %87 : vector<4x1xf32>
    %89 = arith.mulf %86, %86 : vector<4x1xf32>
    %90 = arith.subf %88, %89 : vector<4x1xf32>
    %cst_18 = arith.constant 0.000000e+00 : f32
    %91 = vector.broadcast %cst_18 : f32 to vector<4x1xf32>
    %92 = arith.maximumf %90, %91 : vector<4x1xf32>
    %93 = vector.broadcast %86 : vector<4x1xf32> to vector<4x256xf32>
    %94 = arith.subf %79, %93 : vector<4x256xf32>
    %cst_19 = arith.constant 9.99999974E-6 : f32
    %95 = vector.broadcast %cst_19 : f32 to vector<4x1xf32>
    %96 = arith.addf %92, %95 : vector<4x1xf32>
    %97 = math.rsqrt %96 : vector<4x1xf32>
    %98 = vector.broadcast %97 : vector<4x1xf32> to vector<4x256xf32>
    %99 = arith.mulf %94, %98 : vector<4x256xf32>
    %100 = arith.addf %1, %99 : vector<4x256xf32>
    %c0_20 = arith.constant 0 : index
    %c0_21 = arith.constant 0 : index
    %c0_22 = arith.constant 0 : index
    %101 = vector.load %arg4[%c0_20, %c0_21, %c0_22] : memref<1x4x256xf32, #tpu.memory_space<vmem>>, vector<1x4x256xf32>
    %102 = vector.shape_cast %101 : vector<1x4x256xf32> to vector<4x256xf32>
    %103 = vector.shape_cast %100 : vector<4x256xf32> to vector<1x4x256xf32>
    tpu.vector_store %arg4[%c0_20, %c0_21, %c0_22], %103 {strides = array<i32>} : memref<1x4x256xf32, #tpu.memory_space<vmem>>, vector<1x4x256xf32>,
    return
  }
  func.func @transform_0(%arg0: i32) -> (i32, i32, i32) {
    %c0_i32 = arith.constant 0 : i32
    %c0_i32_0 = arith.constant 0 : i32
    %c0_i32_1 = arith.constant 0 : i32
    return %arg0, %c0_i32, %c0_i32_0 : i32, i32, i32
  }
  func.func @transform_1(%arg0: i32) -> (i32, i32) {
    %c0_i32 = arith.constant 0 : i32
    %c0_i32_0 = arith.constant 0 : i32
    %c0_i32_1 = arith.constant 0 : i32
    return %c0_i32, %c0_i32_0 : i32, i32
  }
  func.func @transform_2(%arg0: i32) -> (i32, i32) {
    %c0_i32 = arith.constant 0 : i32
    %c0_i32_0 = arith.constant 0 : i32
    %c0_i32_1 = arith.constant 0 : i32
    return %c0_i32, %c0_i32_0 : i32, i32
  }
  func.func @transform_3(%arg0: i32) -> (i32, i32, i32) {
    %c0_i32 = arith.constant 0 : i32
    %c0_i32_0 = arith.constant 0 : i32
    %c0_i32_1 = arith.constant 0 : i32
    return %arg0, %c0_i32, %c0_i32_0 : i32, i32, i32
  }
}

</mosaic_0001>

<llo_original>
// kernel: tpu_custom_call.1
$region0: #{tpu_custom_call.1}
  #allocation0 [shape = 'u32[]', space=smem, size = 0x4, offset = 0x4, fixed_abs, tag = 'smem constant byte address 0x4 - core index']
  #allocation1 [shape = 'u32[144,128]{1,0:T(1,128)}', space=vmem, size = 0x12000, scoped, tag = 'internal scratch']
  %s0 = inlined_call_operand.hbm [shape: f32[2,4,256], index: 0, kind: input, shape index: {}]
  %s1 = inlined_call_operand.hbm [shape: f32[4,36], index: 1, kind: input, shape index: {}]
  %s2 = inlined_call_operand.vmem [shape: f32[4,36], index: 2, kind: input, shape index: {}]
  %s3 = inlined_call_operand.hbm [shape: f32[2,4,256], index: 3, kind: output, shape index: {}]
  %s4 = sld [smem:[#allocation0]]
  $region53: #{tpu_custom_call.1} parent=0
    _
  %s6 = ssub.s32 1, %s4
  %s7 = scalar_select 0, %s6, %s4
  $region1: #{tpu_custom_call.1} parent=0
    #allocation2 [shape = 'u8[8192]{0}', space=vmem, size = 0x2000, scoped, tag = 'input window, operand 0']
    #allocation3 [shape = 's32[2]{0}', space=sflag, size = 0x8, scoped, tag = 'scoped memory for tpu_custom_call.1']
    #allocation4 [shape = 's32[2]{0}', space=sflag, size = 0x8, scoped, tag = 'scoped memory for tpu_custom_call.1']
    #allocation5 [shape = 'u8[2048]{0}', space=vmem, size = 0x800, scoped, tag = 'input window, operand 1, single buffered']
    #allocation6 [shape = 's32[1]{0}', space=sflag, size = 0x4, scoped, tag = 'scoped memory for tpu_custom_call.1']
    #allocation7 [shape = 'u8[8192]{0}', space=vmem, size = 0x2000, scoped, tag = 'output window, operand 0']
    %8 = vsyncpa [#allocation3], 0
    %s9 = scalar_lea.sflag [#allocation3], 1
    %10 = vsyncpa %s9, 0
    %11 = vsyncpa [#allocation6], 0
    %12 = vsyncpa [#allocation4], 0
    %s13 = scalar_lea.sflag [#allocation4], 1
    %14 = vsyncpa %s13, 0
    loop: start=0, step=1, limit=4
    $region2: #{tpu_custom_call.1} parent=1 // loop_pre_header
      _
    $region3: #{tpu_custom_call.1} parent=1 // loop_header
      %s16 = sphi 0, %s20
      %p17 = scmp.ge.s32.totalorder %s16, 4
      %s26 = sphi 0, %s28
      %s29 = sphi 0, %s26
      %s30 = sphi 0, %s29
      %s46 = sphi 0, %s30
      %s50 = sphi 0, %s50
      %s52 = sphi 0, %s50
      %s53 = sphi 0, %s52
      %s67 = sphi 0, %s53
      %s71 = sphi 0, %s71
      %s73 = sphi 0, %s71
      %s74 = sphi 0, %s73
      %s88 = sphi 0, %s74
      %s94 = sphi 0, %s96
      %s97 = sphi 0, %s94
      %s98 = sphi 0, %s97
      %s114 = sphi 0, %s98
    $region4: #{tpu_custom_call.1} parent=1 // loop_header_branch
      %19 = sbr.rel (%p17) target = $region8
    $region5: #{tpu_custom_call.1} parent=1 // loop_body
      %s21 = ssub.s32 %s16, 1
      %s22 = ssub.s32 %s16, 2
      %s23 = sadd.s32 %s16, 1
      %s24 = ssub.s32 %s16, %s23
      %p25 = scmp.eq.s32.totalorder %s24, 0
      %s27 = sadd.s32 %s26, 1
      %s28 = scalar_select %p25, %s26, %s27
      %p31 = pneg %p25
      %p32 = scmp.eq.s32.totalorder %s16, 1
      %p33 = por %p31, %p32
      %p34 = scmp.ne.s32.totalorder %s26, %s29
      %p35 = scmp.eq.s32.totalorder %s16, 0
      %p36 = por %p34, %p35
      %p37 = scmp.ne.s32.totalorder %s26, %s29
      %p38 = scmp.eq.s32.totalorder %s21, 1
      %p39 = por %p37, %p38
      %p40 = scmp.ne.s32.totalorder %s29, %s30
      %p41 = scmp.eq.s32.totalorder %s21, 0
      %p42 = por %p40, %p41
      %p43 = scmp.ne.s32.totalorder %s29, %s30
      %p44 = scmp.eq.s32.totalorder %s22, 1
      %p45 = por %p43, %p44
      %p47 = scmp.ne.s32.totalorder %s30, %s46
      %p48 = scmp.eq.s32.totalorder %s22, 0
      %p49 = por %p47, %p48
      %s51 = sadd.s32 %s50, 1
      %p54 = scmp.eq.s32.totalorder %s16, 1
      %p55 = scmp.ne.s32.totalorder %s50, %s52
      %p56 = scmp.eq.s32.totalorder %s16, 0
      %p57 = por %p55, %p56
      %p58 = scmp.ne.s32.totalorder %s50, %s52
      %p59 = scmp.eq.s32.totalorder %s21, 1
      %p60 = por %p58, %p59
      %p61 = scmp.ne.s32.totalorder %s52, %s53
      %p62 = scmp.eq.s32.totalorder %s21, 0
      %p63 = por %p61, %p62
      %p64 = scmp.ne.s32.totalorder %s52, %s53
      %p65 = scmp.eq.s32.totalorder %s22, 1
      %p66 = por %p64, %p65
      %p68 = scmp.ne.s32.totalorder %s53, %s67
      %p69 = scmp.eq.s32.totalorder %s22, 0
      %p70 = por %p68, %p69
      %s72 = sadd.s32 %s71, 1
      %p75 = scmp.eq.s32.totalorder %s16, 1
      %p76 = scmp.ne.s32.totalorder %s71, %s73
      %p77 = scmp.eq.s32.totalorder %s16, 0
      %p78 = por %p76, %p77
      %p79 = scmp.ne.s32.totalorder %s71, %s73
      %p80 = scmp.eq.s32.totalorder %s21, 1
      %p81 = por %p79, %p80
      %p82 = scmp.ne.s32.totalorder %s73, %s74
      %p83 = scmp.eq.s32.totalorder %s21, 0
      %p84 = por %p82, %p83
      %p85 = scmp.ne.s32.totalorder %s73, %s74
      %p86 = scmp.eq.s32.totalorder %s22, 1
      %p87 = por %p85, %p86
      %p89 = scmp.ne.s32.totalorder %s74, %s88
      %p90 = scmp.eq.s32.totalorder %s22, 0
      %p91 = por %p89, %p90
      %s92 = ssub.s32 %s16, %s23
      %p93 = scmp.eq.s32.totalorder %s92, 0
      %s95 = sadd.s32 %s94, 1
      %s96 = scalar_select %p93, %s94, %s95
      %p99 = pneg %p93
      %p100 = scmp.eq.s32.totalorder %s16, 1
      %p101 = por %p99, %p100
      %p102 = scmp.ne.s32.totalorder %s94, %s97
      %p103 = scmp.eq.s32.totalorder %s16, 0
      %p104 = por %p102, %p103
      %p105 = scmp.ne.s32.totalorder %s94, %s97
      %p106 = scmp.eq.s32.totalorder %s21, 1
      %p107 = por %p105, %p106
      %p108 = scmp.ne.s32.totalorder %s97, %s98
      %p109 = scmp.eq.s32.totalorder %s21, 0
      %p110 = por %p108, %p109
      %p111 = scmp.ne.s32.totalorder %s97, %s98
      %p112 = scmp.eq.s32.totalorder %s22, 1
      %p113 = por %p111, %p112
      %p115 = scmp.ne.s32.totalorder %s98, %s114
      %p116 = scmp.eq.s32.totalorder %s22, 0
      %p117 = por %p115, %p116
      %p118 = scmp.le.s32.totalorder 1, %s16
      %p119 = scmp.lt.s32.totalorder %s16, 3
      %p120 = pnand %p118, %p119
      %p121 = pneg %p120
      // Predicated region
      $region9: #{tpu_custom_call.1} parent=5 // pred_check
        _
      $region10: #{tpu_custom_call.1} parent=5 // pred_check_branch
        %123 = sbr.rel (%p120) target = $region12
      $region11: #{tpu_custom_call.1} parent=5 // pred_region
        %s124 = ssub.s32 %s16, 1
        // Predicated region
        $region13: #{tpu_custom_call.1} parent=11 // pred_check
          %p125 = pneg %p63
        $region14: #{tpu_custom_call.1} parent=11 // pred_check_branch
          %127 = sbr.rel (%p125) target = $region16
        $region15: #{tpu_custom_call.1} parent=11 // pred_region
          %s129 = ssub.s32 64, 64
          %130 = vsyncadd [#allocation6], %s129
          %s132 = sshll.u32 [#allocation5], 4
          %s133 = int_to_ptr.vmem [resolvable:$true] %s132
          %135 = dma.hbm_to_vmem [thread:$0]  %s1, 64, %s133, [#allocation6]
        $region16: #{tpu_custom_call.1} parent=11 // pred_fallthru
          _
        // Predicated region
        $region17: #{tpu_custom_call.1} parent=11 // pred_check
          %p136 = pneg %p84
        $region18: #{tpu_custom_call.1} parent=11 // pred_check_branch
          %138 = sbr.rel (%p136) target = $region20
        $region19: #{tpu_custom_call.1} parent=11 // pred_region
          _
        $region20: #{tpu_custom_call.1} parent=11 // pred_fallthru
          _
      $region12: #{tpu_custom_call.1} parent=5 // pred_fallthru
        _
      %p139 = scmp.lt.s32.totalorder %s16, 2
      // Predicated region
      $region21: #{tpu_custom_call.1} parent=5 // pred_check
        %p140 = pneg %p139
      $region22: #{tpu_custom_call.1} parent=5 // pred_check_branch
        %142 = sbr.rel (%p140) target = $region24
      $region23: #{tpu_custom_call.1} parent=5 // pred_region
        // Predicated region
        $region25: #{tpu_custom_call.1} parent=23 // pred_check
          %p143 = pneg %p36
        $region26: #{tpu_custom_call.1} parent=23 // pred_check_branch
          %145 = sbr.rel (%p143) target = $region28
        $region27: #{tpu_custom_call.1} parent=23 // pred_region
          %s146 = sand.u32 %s26, 1
          %s147 = scalar_lea.sflag [#allocation3], %s146
          %s148 = sand.u32 %s26, 1
          %s149 = smul.addr %s148, 8
          %s150 = scalar_lea.vmem [#allocation2], %s149
          %s152 = ssub.s32 128, 128
          %153 = vsyncadd %s147, %s152
          %s154 = smul.addr %s16, 2
          %s155 = smul.addr %s154, 64
          %s156 = scalar_lea.hbm %s0, %s155
          %s158 = sshll.u32 %s150, 4
          %s159 = int_to_ptr.vmem [resolvable:$true] %s158
          %161 = dma.hbm_to_vmem [thread:$0]  %s156, 128, %s159, %s147
        $region28: #{tpu_custom_call.1} parent=23 // pred_fallthru
          _
      $region24: #{tpu_custom_call.1} parent=5 // pred_fallthru
        _
      %p162 = scmp.le.s32.totalorder 1, %s16
      %p163 = scmp.lt.s32.totalorder %s16, 3
      %p164 = pnand %p162, %p163
      %p165 = pneg %p164
      // Predicated region
      $region29: #{tpu_custom_call.1} parent=5 // pred_check
        _
      $region30: #{tpu_custom_call.1} parent=5 // pred_check_branch
        %167 = sbr.rel (%p164) target = $region32
      $region31: #{tpu_custom_call.1} parent=5 // pred_region
        %s168 = ssub.s32 %s16, 1
        %s169 = sand.u32 %s29, 1
        %s170 = scalar_lea.sflag [#allocation3], %s169
        %s171 = sand.u32 %s29, 1
        %s172 = smul.addr %s171, 8
        %s173 = scalar_lea.vmem [#allocation2], %s172
        // Predicated region
        $region33: #{tpu_custom_call.1} parent=31 // pred_check
          %p174 = pneg %p42
        $region34: #{tpu_custom_call.1} parent=31 // pred_check_branch
          %176 = sbr.rel (%p174) target = $region36
        $region35: #{tpu_custom_call.1} parent=31 // pred_region
          %177 = dma.done %s170, 128
        $region36: #{tpu_custom_call.1} parent=31 // pred_fallthru
          _
        // Predicated region
        $region37: #{tpu_custom_call.1} parent=31 // pred_check
          %p178 = pneg %p63
        $region38: #{tpu_custom_call.1} parent=31 // pred_check_branch
          %180 = sbr.rel (%p178) target = $region40
        $region39: #{tpu_custom_call.1} parent=31 // pred_region
          %181 = dma.done [#allocation6], 64
        $region40: #{tpu_custom_call.1} parent=31 // pred_fallthru
          _
        %s182 = sand.u32 %s29, 1
        %s183 = scalar_lea.sflag [#allocation3], %s182
        %s184 = sand.u32 %s29, 1
        %s185 = smul.addr %s184, 8
        %s186 = scalar_lea.vmem [#allocation2], %s185
        %p187 = pneg %p42
        %p188 = pneg %p39
        %p189 = pneg %p63
        %p190 = pneg %p60
        %p191 = pneg %p84
        %p192 = pneg %p81
        %p193 = pneg %p110
        %p194 = pneg %p107
        %s195 = sand.u32 %s97, 1
        %s196 = scalar_lea.sflag [#allocation4], %s195
        %s197 = sand.u32 %s97, 1
        %s198 = smul.addr %s197, 8
        %s199 = scalar_lea.vmem [#allocation7], %s198
        %v200 = vld [vmem:[%s173] sm:$0xff]
        %v201 = vld [vmem:[#allocation5] sm:$0xf]
        %v203 = vrot.slane %v200, 4
        %205 = vrot.lane.b32.xlu0 %v200, 112
        %v206 = vpop.permute.xlu0 %205
        %v207 = vrot.slane %v206, 4
        %209 = vrot.lane.b32.xlu0 %v200, 96
        %v210 = vpop.permute.xlu0 %209
        %v211 = vrot.slane %v210, 4
        %213 = vrot.lane.b32.xlu0 %v200, 80
        %v214 = vpop.permute.xlu0 %213
        %v215 = vrot.slane %v214, 4
        %217 = vrot.lane.b32.xlu0 %v200, 64
        %v218 = vpop.permute.xlu0 %217
        %v219 = vrot.slane %v218, 4
        %221 = vrot.lane.b32.xlu0 %v200, 48
        %v222 = vpop.permute.xlu0 %221
        %v223 = vrot.slane %v222, 4
        %225 = vrot.lane.b32.xlu0 %v200, 32
        %v226 = vpop.permute.xlu0 %225
        %v227 = vrot.slane %v226, 4
        %229 = vrot.lane.b32.xlu0 %v200, 16
        %v230 = vpop.permute.xlu0 %229
        %v231 = vrot.slane %v230, 4
        %v240 = vcombine.low %v200, %v210
        %v242 = vunpack.c.l.s4 1983009808
        %v243 = vunpack.c.0.s8 %v242
        %v244 = vlaneseq
        %v245 = vshrl.u32 %v244, 7
        %v246 = vsub.s32 %v243, %v245
        %v247 = vrot.slane %v240, %v246
        %v248 = vcombine.low %v206, %v214
        %v250 = vunpack.c.l.s4 1983009808
        %v251 = vunpack.c.0.s8 %v250
        %v252 = vlaneseq
        %v253 = vshrl.u32 %v252, 7
        %v254 = vsub.s32 %v251, %v253
        %v255 = vrot.slane %v248, %v254
        %v256 = vcombine.low %v247, %v255
        %v257 = vcombine.high %v247, %v255
        %v259 = vunpack.c.l.s4 1934713408
        %v260 = vunpack.c.0.s8 %v259
        %v261 = vlaneseq
        %v262 = vshrl.u32 %v261, 7
        %v263 = vsub.s32 %v260, %v262
        %v264 = vrot.slane %v256, %v263
        %v266 = vunpack.c.l.s4 1934713408
        %v267 = vunpack.c.0.s8 %v266
        %v268 = vlaneseq
        %v269 = vshrl.u32 %v268, 7
        %v270 = vsub.s32 %v267, %v269
        %v271 = vrot.slane %v257, %v270
        %v272 = vcombine.high %v264, 0.0
        %v273 = vcombine.high %v271, 0.0
        %v274 = vcombine.low %v218, %v226
        %v276 = vunpack.c.l.s4 1983009808
        %v277 = vunpack.c.0.s8 %v276
        %v278 = vlaneseq
        %v279 = vshrl.u32 %v278, 7
        %v280 = vsub.s32 %v277, %v279
        %v281 = vrot.slane %v274, %v280
        %v282 = vcombine.low %v222, %v230
        %v284 = vunpack.c.l.s4 1983009808
        %v285 = vunpack.c.0.s8 %v284
        %v286 = vlaneseq
        %v287 = vshrl.u32 %v286, 7
        %v288 = vsub.s32 %v285, %v287
        %v289 = vrot.slane %v282, %v288
        %v290 = vcombine.low %v281, %v289
        %v291 = vcombine.high %v281, %v289
        %v293 = vunpack.c.l.s4 1934713408
        %v294 = vunpack.c.0.s8 %v293
        %v295 = vlaneseq
        %v296 = vshrl.u32 %v295, 7
        %v297 = vsub.s32 %v294, %v296
        %v298 = vrot.slane %v290, %v297
        %v300 = vunpack.c.l.s4 1934713408
        %v301 = vunpack.c.0.s8 %v300
        %v302 = vlaneseq
        %v303 = vshrl.u32 %v302, 7
        %v304 = vsub.s32 %v301, %v303
        %v305 = vrot.slane %v291, %v304
        %v306 = vcombine.high %v298, 0.0
        %v307 = vcombine.high %v305, 0.0
        %v308 = vcombine.low %v203, %v211
        %v310 = vunpack.c.l.s4 1983009808
        %v311 = vunpack.c.0.s8 %v310
        %v312 = vlaneseq
        %v313 = vshrl.u32 %v312, 7
        %v314 = vsub.s32 %v311, %v313
        %v315 = vrot.slane %v308, %v314
        %v316 = vcombine.low %v207, %v215
        %v318 = vunpack.c.l.s4 1983009808
        %v319 = vunpack.c.0.s8 %v318
        %v320 = vlaneseq
        %v321 = vshrl.u32 %v320, 7
        %v322 = vsub.s32 %v319, %v321
        %v323 = vrot.slane %v316, %v322
        %v324 = vcombine.low %v315, %v323
        %v325 = vcombine.high %v315, %v323
        %v327 = vunpack.c.l.s4 1934713408
        %v328 = vunpack.c.0.s8 %v327
        %v329 = vlaneseq
        %v330 = vshrl.u32 %v329, 7
        %v331 = vsub.s32 %v328, %v330
        %v332 = vrot.slane %v324, %v331
        %v334 = vunpack.c.l.s4 1934713408
        %v335 = vunpack.c.0.s8 %v334
        %v336 = vlaneseq
        %v337 = vshrl.u32 %v336, 7
        %v338 = vsub.s32 %v335, %v337
        %v339 = vrot.slane %v325, %v338
        %v340 = vcombine.high %v332, 0.0
        %v341 = vcombine.high %v339, 0.0
        %v342 = vcombine.low %v219, %v227
        %v344 = vunpack.c.l.s4 1983009808
        %v345 = vunpack.c.0.s8 %v344
        %v346 = vlaneseq
        %v347 = vshrl.u32 %v346, 7
        %v348 = vsub.s32 %v345, %v347
        %v349 = vrot.slane %v342, %v348
        %v350 = vcombine.low %v223, %v231
        %v352 = vunpack.c.l.s4 1983009808
        %v353 = vunpack.c.0.s8 %v352
        %v354 = vlaneseq
        %v355 = vshrl.u32 %v354, 7
        %v356 = vsub.s32 %v353, %v355
        %v357 = vrot.slane %v350, %v356
        %v358 = vcombine.low %v349, %v357
        %v359 = vcombine.high %v349, %v357
        %v361 = vunpack.c.l.s4 1934713408
        %v362 = vunpack.c.0.s8 %v361
        %v363 = vlaneseq
        %v364 = vshrl.u32 %v363, 7
        %v365 = vsub.s32 %v362, %v364
        %v366 = vrot.slane %v358, %v365
        %v368 = vunpack.c.l.s4 1934713408
        %v369 = vunpack.c.0.s8 %v368
        %v370 = vlaneseq
        %v371 = vshrl.u32 %v370, 7
        %v372 = vsub.s32 %v369, %v371
        %v373 = vrot.slane %v359, %v372
        %v374 = vcombine.high %v366, 0.0
        %v375 = vcombine.high %v373, 0.0
        %v380 = vlaneseq
        %v381 = vshrl.u32 %v380, 7
        %v382 = vsub.s32 1, %v381
        %v383 = vrot.slane %v264, %v382
        %v384 = vlaneseq
        %v385 = vshrl.u32 %v384, 7
        %v386 = vsub.s32 1, %v385
        %v387 = vrot.slane %v272, %v386
        %v388 = vlaneseq
        %v389 = vshrl.u32 %v388, 7
        %v390 = vsub.s32 1, %v389
        %v391 = vrot.slane %v271, %v390
        %v392 = vlaneseq
        %v393 = vshrl.u32 %v392, 7
        %v394 = vsub.s32 1, %v393
        %v395 = vrot.slane %v273, %v394
        %v412 = vcombine.low %v264, %v298
        %v413 = vcombine.low %v332, %v366
        %v414 = vcombine.low %v272, %v306
        %v415 = vcombine.low %v340, %v374
        %v416 = vcombine.low %v271, %v305
        %v417 = vcombine.low %v339, %v373
        %v418 = vcombine.low %v273, %v307
        %v419 = vcombine.low %v341, %v375
        %vm420 = vcmask 1040384
        %v421 = vrot.slane %v412, 7
        %v422 = vrot.slane %v413, 7
        %v423 = vsel %vm420, %v421, %v422
        %v424 = vrot.slane %v414, 7
        %v425 = vrot.slane %v415, 7
        %v426 = vsel %vm420, %v424, %v425
        %v427 = vrot.slane %v416, 7
        %v428 = vrot.slane %v417, 7
        %v429 = vsel %vm420, %v427, %v428
        %v430 = vrot.slane %v418, 7
        %v431 = vrot.slane %v419, 7
        %v432 = vsel %vm420, %v430, %v431
        %v441 = vlaneseq
        %v442 = vshrl.u32 %v441, 7
        %v443 = vsub.s32 2, %v442
        %v444 = vrot.slane %v366, %v443
        %v445 = vlaneseq
        %v446 = vshrl.u32 %v445, 7
        %v447 = vsub.s32 2, %v446
        %v448 = vrot.slane %v374, %v447
        %v449 = vlaneseq
        %v450 = vshrl.u32 %v449, 7
        %v451 = vsub.s32 2, %v450
        %v452 = vrot.slane %v373, %v451
        %v453 = vlaneseq
        %v454 = vshrl.u32 %v453, 7
        %v455 = vsub.s32 2, %v454
        %v456 = vrot.slane %v375, %v455
        %v461 = vsel %vm420, %v383, %v421
        %v462 = vsel %vm420, %v387, %v424
        %v463 = vsel %vm420, %v391, %v427
        %v464 = vsel %vm420, %v395, %v430
        %v465 = vsel %vm420, %v422, %v444
        %v466 = vsel %vm420, %v425, %v448
        %v467 = vsel %vm420, %v428, %v452
        %v468 = vsel %vm420, %v431, %v456
        %477 = vrot.lane.b32.xlu0 %v461, 127
        %v478 = vpop.permute.xlu0 %477
        %479 = vrot.lane.b32.xlu0 %v423, 127
        %v480 = vpop.permute.xlu0 %479
        %481 = vrot.lane.b32.xlu0 %v465, 127
        %v482 = vpop.permute.xlu0 %481
        %483 = vrot.lane.b32.xlu0 %v462, 127
        %v484 = vpop.permute.xlu0 %483
        %485 = vrot.lane.b32.xlu0 %v426, 127
        %v486 = vpop.permute.xlu0 %485
        %487 = vrot.lane.b32.xlu0 %v466, 127
        %v488 = vpop.permute.xlu0 %487
        %489 = vrot.lane.b32.xlu0 %v463, 127
        %v490 = vpop.permute.xlu0 %489
        %491 = vrot.lane.b32.xlu0 %v429, 127
        %v492 = vpop.permute.xlu0 %491
        %493 = vrot.lane.b32.xlu0 %v467, 127
        %v494 = vpop.permute.xlu0 %493
        %495 = vrot.lane.b32.xlu0 %v464, 127
        %v496 = vpop.permute.xlu0 %495
        %497 = vrot.lane.b32.xlu0 %v432, 127
        %v498 = vpop.permute.xlu0 %497
        %499 = vrot.lane.b32.xlu0 %v468, 127
        %v500 = vpop.permute.xlu0 %499
        %513 = vrot.lane.b32.xlu0 %v461, 1
        %v514 = vpop.permute.xlu0 %513
        %515 = vrot.lane.b32.xlu0 %v423, 1
        %v516 = vpop.permute.xlu0 %515
        %517 = vrot.lane.b32.xlu0 %v465, 1
        %v518 = vpop.permute.xlu0 %517
        %519 = vrot.lane.b32.xlu0 %v462, 1
        %v520 = vpop.permute.xlu0 %519
        %521 = vrot.lane.b32.xlu0 %v426, 1
        %v522 = vpop.permute.xlu0 %521
        %523 = vrot.lane.b32.xlu0 %v466, 1
        %v524 = vpop.permute.xlu0 %523
        %525 = vrot.lane.b32.xlu0 %v463, 1
        %v526 = vpop.permute.xlu0 %525
        %527 = vrot.lane.b32.xlu0 %v429, 1
        %v528 = vpop.permute.xlu0 %527
        %529 = vrot.lane.b32.xlu0 %v467, 1
        %v530 = vpop.permute.xlu0 %529
        %531 = vrot.lane.b32.xlu0 %v464, 1
        %v532 = vpop.permute.xlu0 %531
        %533 = vrot.lane.b32.xlu0 %v432, 1
        %v534 = vpop.permute.xlu0 %533
        %535 = vrot.lane.b32.xlu0 %v468, 1
        %v536 = vpop.permute.xlu0 %535
        %549 = vrot.lane.b32.xlu0 %v461, 3
        %v550 = vpop.permute.xlu0 %549
        %551 = vrot.lane.b32.xlu0 %v423, 3
        %v552 = vpop.permute.xlu0 %551
        %553 = vrot.lane.b32.xlu0 %v465, 3
        %v554 = vpop.permute.xlu0 %553
        %555 = vrot.lane.b32.xlu0 %v462, 3
        %v556 = vpop.permute.xlu0 %555
        %557 = vrot.lane.b32.xlu0 %v426, 3
        %v558 = vpop.permute.xlu0 %557
        %559 = vrot.lane.b32.xlu0 %v466, 3
        %v560 = vpop.permute.xlu0 %559
        %561 = vrot.lane.b32.xlu0 %v463, 3
        %v562 = vpop.permute.xlu0 %561
        %563 = vrot.lane.b32.xlu0 %v429, 3
        %v564 = vpop.permute.xlu0 %563
        %565 = vrot.lane.b32.xlu0 %v467, 3
        %v566 = vpop.permute.xlu0 %565
        %567 = vrot.lane.b32.xlu0 %v464, 3
        %v568 = vpop.permute.xlu0 %567
        %569 = vrot.lane.b32.xlu0 %v432, 3
        %v570 = vpop.permute.xlu0 %569
        %571 = vrot.lane.b32.xlu0 %v468, 3
        %v572 = vpop.permute.xlu0 %571
        %vm585 = vcmask 7168
        %v586 = vsel %vm585, %v478, %v514
        %v587 = vsel %vm585, %v480, %v516
        %v588 = vsel %vm585, %v482, %v518
        %v589 = vsel %vm585, %v484, %v520
        %v590 = vsel %vm585, %v486, %v522
        %v591 = vsel %vm585, %v488, %v524
        %v592 = vsel %vm585, %v490, %v526
        %v593 = vsel %vm585, %v492, %v528
        %v594 = vsel %vm585, %v494, %v530
        %v595 = vsel %vm585, %v496, %v532
        %v596 = vsel %vm585, %v498, %v534
        %v597 = vsel %vm585, %v500, %v536
        %vm598 = vcmask 138240
        %v599 = vsel %vm598, %v586, %v550
        %v600 = vsel %vm598, %v587, %v552
        %v601 = vsel %vm598, %v588, %v554
        %v602 = vsel %vm598, %v589, %v556
        %v603 = vsel %vm598, %v590, %v558
        %v604 = vsel %vm598, %v591, %v560
        %v605 = vsel %vm598, %v592, %v562
        %v606 = vsel %vm598, %v593, %v564
        %v607 = vsel %vm598, %v594, %v566
        %v608 = vsel %vm598, %v595, %v568
        %v609 = vsel %vm598, %v596, %v570
        %v610 = vsel %vm598, %v597, %v572
        %v611 = vcombine.low %v599, %v605
        %v612 = vcombine.high %v599, %v605
        %v614 = vunpack.c.l.s4 1983009808
        %v615 = vunpack.c.0.s8 %v614
        %v616 = vlaneseq
        %v617 = vshrl.u32 %v616, 7
        %v618 = vsub.s32 %v615, %v617
        %v619 = vrot.slane %v611, %v618
        %v621 = vunpack.c.l.s4 1983009808
        %v622 = vunpack.c.0.s8 %v621
        %v623 = vlaneseq
        %v624 = vshrl.u32 %v623, 7
        %v625 = vsub.s32 %v622, %v624
        %v626 = vrot.slane %v612, %v625
        %v627 = vcombine.low %v602, %v608
        %v628 = vcombine.high %v602, %v608
        %v630 = vunpack.c.l.s4 1983009808
        %v631 = vunpack.c.0.s8 %v630
        %v632 = vlaneseq
        %v633 = vshrl.u32 %v632, 7
        %v634 = vsub.s32 %v631, %v633
        %v635 = vrot.slane %v627, %v634
        %v637 = vunpack.c.l.s4 1983009808
        %v638 = vunpack.c.0.s8 %v637
        %v639 = vlaneseq
        %v640 = vshrl.u32 %v639, 7
        %v641 = vsub.s32 %v638, %v640
        %v642 = vrot.slane %v628, %v641
        %v643 = vcombine.low %v619, %v635
        %v644 = vcombine.high %v619, %v635
        %v646 = vunpack.c.l.s4 1934713408
        %v647 = vunpack.c.0.s8 %v646
        %v648 = vlaneseq
        %v649 = vshrl.u32 %v648, 7
        %v650 = vsub.s32 %v647, %v649
        %v651 = vrot.slane %v643, %v650
        %v653 = vunpack.c.l.s4 1934713408
        %v654 = vunpack.c.0.s8 %v653
        %v655 = vlaneseq
        %v656 = vshrl.u32 %v655, 7
        %v657 = vsub.s32 %v654, %v656
        %v658 = vrot.slane %v644, %v657
        %v659 = vcombine.low %v626, %v642
        %v660 = vcombine.high %v626, %v642
        %v662 = vunpack.c.l.s4 1934713408
        %v663 = vunpack.c.0.s8 %v662
        %v664 = vlaneseq
        %v665 = vshrl.u32 %v664, 7
        %v666 = vsub.s32 %v663, %v665
        %v667 = vrot.slane %v659, %v666
        %v669 = vunpack.c.l.s4 1934713408
        %v670 = vunpack.c.0.s8 %v669
        %v671 = vlaneseq
        %v672 = vshrl.u32 %v671, 7
        %v673 = vsub.s32 %v670, %v672
        %v674 = vrot.slane %v660, %v673
        %v675 = vcombine.high %v651, 0.0
        %v676 = vcombine.high %v658, 0.0
        %v677 = vcombine.high %v667, 0.0
        %v678 = vcombine.high %v674, 0.0
        %v679 = vcombine.low %v600, %v606
        %v680 = vcombine.high %v600, %v606
        %v682 = vunpack.c.l.s4 1983009808
        %v683 = vunpack.c.0.s8 %v682
        %v684 = vlaneseq
        %v685 = vshrl.u32 %v684, 7
        %v686 = vsub.s32 %v683, %v685
        %v687 = vrot.slane %v679, %v686
        %v689 = vunpack.c.l.s4 1983009808
        %v690 = vunpack.c.0.s8 %v689
        %v691 = vlaneseq
        %v692 = vshrl.u32 %v691, 7
        %v693 = vsub.s32 %v690, %v692
        %v694 = vrot.slane %v680, %v693
        %v695 = vcombine.low %v603, %v609
        %v696 = vcombine.high %v603, %v609
        %v698 = vunpack.c.l.s4 1983009808
        %v699 = vunpack.c.0.s8 %v698
        %v700 = vlaneseq
        %v701 = vshrl.u32 %v700, 7
        %v702 = vsub.s32 %v699, %v701
        %v703 = vrot.slane %v695, %v702
        %v705 = vunpack.c.l.s4 1983009808
        %v706 = vunpack.c.0.s8 %v705
        %v707 = vlaneseq
        %v708 = vshrl.u32 %v707, 7
        %v709 = vsub.s32 %v706, %v708
        %v710 = vrot.slane %v696, %v709
        %v711 = vcombine.low %v687, %v703
        %v712 = vcombine.high %v687, %v703
        %v714 = vunpack.c.l.s4 1934713408
        %v715 = vunpack.c.0.s8 %v714
        %v716 = vlaneseq
        %v717 = vshrl.u32 %v716, 7
        %v718 = vsub.s32 %v715, %v717
        %v719 = vrot.slane %v711, %v718
        %v721 = vunpack.c.l.s4 1934713408
        %v722 = vunpack.c.0.s8 %v721
        %v723 = vlaneseq
        %v724 = vshrl.u32 %v723, 7
        %v725 = vsub.s32 %v722, %v724
        %v726 = vrot.slane %v712, %v725
        %v727 = vcombine.low %v694, %v710
        %v728 = vcombine.high %v694, %v710
        %v730 = vunpack.c.l.s4 1934713408
        %v731 = vunpack.c.0.s8 %v730
        %v732 = vlaneseq
        %v733 = vshrl.u32 %v732, 7
        %v734 = vsub.s32 %v731, %v733
        %v735 = vrot.slane %v727, %v734
        %v737 = vunpack.c.l.s4 1934713408
        %v738 = vunpack.c.0.s8 %v737
        %v739 = vlaneseq
        %v740 = vshrl.u32 %v739, 7
        %v741 = vsub.s32 %v738, %v740
        %v742 = vrot.slane %v728, %v741
        %v743 = vcombine.high %v719, 0.0
        %v744 = vcombine.high %v726, 0.0
        %v745 = vcombine.high %v735, 0.0
        %v746 = vcombine.high %v742, 0.0
        %748 = vrot.lane.b32.xlu0 %v675, 16
        %v749 = vpop.permute.xlu0 %748
        %752 = vrot.lane.b32.xlu0 %v658, 32
        %v753 = vpop.permute.xlu0 %752
        %756 = vrot.lane.b32.xlu0 %v676, 48
        %v757 = vpop.permute.xlu0 %756
        %760 = vrot.lane.b32.xlu0 %v667, 64
        %v761 = vpop.permute.xlu0 %760
        %764 = vrot.lane.b32.xlu0 %v677, 80
        %v765 = vpop.permute.xlu0 %764
        %768 = vrot.lane.b32.xlu0 %v674, 96
        %v769 = vpop.permute.xlu0 %768
        %772 = vrot.lane.b32.xlu0 %v678, 112
        %v773 = vpop.permute.xlu0 %772
        %776 = vrot.lane.b32.xlu0 %v743, 16
        %v777 = vpop.permute.xlu0 %776
        %780 = vrot.lane.b32.xlu0 %v726, 32
        %v781 = vpop.permute.xlu0 %780
        %784 = vrot.lane.b32.xlu0 %v744, 48
        %v785 = vpop.permute.xlu0 %784
        %788 = vrot.lane.b32.xlu0 %v735, 64
        %v789 = vpop.permute.xlu0 %788
        %792 = vrot.lane.b32.xlu0 %v745, 80
        %v793 = vpop.permute.xlu0 %792
        %796 = vrot.lane.b32.xlu0 %v742, 96
        %v797 = vpop.permute.xlu0 %796
        %800 = vrot.lane.b32.xlu0 %v746, 112
        %v801 = vpop.permute.xlu0 %800
        %vm803 = vcmask 130048
        %v804 = vsel %vm803, %v651, %v749
        %vm805 = vcmask 261120
        %v806 = vsel %vm805, %v804, %v753
        %vm807 = vcmask 392192
        %v808 = vsel %vm807, %v806, %v757
        %vm809 = vcmask 523264
        %v810 = vsel %vm809, %v808, %v761
        %vm811 = vcmask 654336
        %v812 = vsel %vm811, %v810, %v765
        %vm813 = vcmask 785408
        %v814 = vsel %vm813, %v812, %v769
        %vm815 = vcmask 916480
        %v816 = vsel %vm815, %v814, %v773
        %v817 = vsel %vm803, %v719, %v777
        %v818 = vsel %vm805, %v817, %v781
        %v819 = vsel %vm807, %v818, %v785
        %v820 = vsel %vm809, %v819, %v789
        %v821 = vsel %vm811, %v820, %v793
        %v822 = vsel %vm813, %v821, %v797
        %v823 = vsel %vm815, %v822, %v801
        %832 = vrot.lane.b32.xlu0 %v599, 127
        %v833 = vpop.permute.xlu0 %832
        %834 = vrot.lane.b32.xlu0 %v600, 127
        %v835 = vpop.permute.xlu0 %834
        %836 = vrot.lane.b32.xlu0 %v602, 127
        %v837 = vpop.permute.xlu0 %836
        %838 = vrot.lane.b32.xlu0 %v603, 127
        %v839 = vpop.permute.xlu0 %838
        %840 = vrot.lane.b32.xlu0 %v605, 127
        %v841 = vpop.permute.xlu0 %840
        %842 = vrot.lane.b32.xlu0 %v606, 127
        %v843 = vpop.permute.xlu0 %842
        %844 = vrot.lane.b32.xlu0 %v608, 127
        %v845 = vpop.permute.xlu0 %844
        %846 = vrot.lane.b32.xlu0 %v609, 127
        %v847 = vpop.permute.xlu0 %846
        %v856 = vcombine.low %v833, %v841
        %v857 = vcombine.high %v833, %v841
        %v859 = vunpack.c.l.s4 1983009808
        %v860 = vunpack.c.0.s8 %v859
        %v861 = vlaneseq
        %v862 = vshrl.u32 %v861, 7
        %v863 = vsub.s32 %v860, %v862
        %v864 = vrot.slane %v856, %v863
        %v866 = vunpack.c.l.s4 1983009808
        %v867 = vunpack.c.0.s8 %v866
        %v868 = vlaneseq
        %v869 = vshrl.u32 %v868, 7
        %v870 = vsub.s32 %v867, %v869
        %v871 = vrot.slane %v857, %v870
        %v872 = vcombine.low %v837, %v845
        %v873 = vcombine.high %v837, %v845
        %v875 = vunpack.c.l.s4 1983009808
        %v876 = vunpack.c.0.s8 %v875
        %v877 = vlaneseq
        %v878 = vshrl.u32 %v877, 7
        %v879 = vsub.s32 %v876, %v878
        %v880 = vrot.slane %v872, %v879
        %v882 = vunpack.c.l.s4 1983009808
        %v883 = vunpack.c.0.s8 %v882
        %v884 = vlaneseq
        %v885 = vshrl.u32 %v884, 7
        %v886 = vsub.s32 %v883, %v885
        %v887 = vrot.slane %v873, %v886
        %v888 = vcombine.low %v864, %v880
        %v889 = vcombine.high %v864, %v880
        %v891 = vunpack.c.l.s4 1934713408
        %v892 = vunpack.c.0.s8 %v891
        %v893 = vlaneseq
        %v894 = vshrl.u32 %v893, 7
        %v895 = vsub.s32 %v892, %v894
        %v896 = vrot.slane %v888, %v895
        %v898 = vunpack.c.l.s4 1934713408
        %v899 = vunpack.c.0.s8 %v898
        %v900 = vlaneseq
        %v901 = vshrl.u32 %v900, 7
        %v902 = vsub.s32 %v899, %v901
        %v903 = vrot.slane %v889, %v902
        %v904 = vcombine.low %v871, %v887
        %v905 = vcombine.high %v871, %v887
        %v907 = vunpack.c.l.s4 1934713408
        %v908 = vunpack.c.0.s8 %v907
        %v909 = vlaneseq
        %v910 = vshrl.u32 %v909, 7
        %v911 = vsub.s32 %v908, %v910
        %v912 = vrot.slane %v904, %v911
        %v914 = vunpack.c.l.s4 1934713408
        %v915 = vunpack.c.0.s8 %v914
        %v916 = vlaneseq
        %v917 = vshrl.u32 %v916, 7
        %v918 = vsub.s32 %v915, %v917
        %v919 = vrot.slane %v905, %v918
        %v920 = vcombine.high %v896, 0.0
        %v921 = vcombine.high %v903, 0.0
        %v922 = vcombine.high %v912, 0.0
        %v923 = vcombine.high %v919, 0.0
        %v924 = vcombine.low %v835, %v843
        %v925 = vcombine.high %v835, %v843
        %v927 = vunpack.c.l.s4 1983009808
        %v928 = vunpack.c.0.s8 %v927
        %v929 = vlaneseq
        %v930 = vshrl.u32 %v929, 7
        %v931 = vsub.s32 %v928, %v930
        %v932 = vrot.slane %v924, %v931
        %v934 = vunpack.c.l.s4 1983009808
        %v935 = vunpack.c.0.s8 %v934
        %v936 = vlaneseq
        %v937 = vshrl.u32 %v936, 7
        %v938 = vsub.s32 %v935, %v937
        %v939 = vrot.slane %v925, %v938
        %v940 = vcombine.low %v839, %v847
        %v941 = vcombine.high %v839, %v847
        %v943 = vunpack.c.l.s4 1983009808
        %v944 = vunpack.c.0.s8 %v943
        %v945 = vlaneseq
        %v946 = vshrl.u32 %v945, 7
        %v947 = vsub.s32 %v944, %v946
        %v948 = vrot.slane %v940, %v947
        %v950 = vunpack.c.l.s4 1983009808
        %v951 = vunpack.c.0.s8 %v950
        %v952 = vlaneseq
        %v953 = vshrl.u32 %v952, 7
        %v954 = vsub.s32 %v951, %v953
        %v955 = vrot.slane %v941, %v954
        %v956 = vcombine.low %v932, %v948
        %v957 = vcombine.high %v932, %v948
        %v959 = vunpack.c.l.s4 1934713408
        %v960 = vunpack.c.0.s8 %v959
        %v961 = vlaneseq
        %v962 = vshrl.u32 %v961, 7
        %v963 = vsub.s32 %v960, %v962
        %v964 = vrot.slane %v956, %v963
        %v966 = vunpack.c.l.s4 1934713408
        %v967 = vunpack.c.0.s8 %v966
        %v968 = vlaneseq
        %v969 = vshrl.u32 %v968, 7
        %v970 = vsub.s32 %v967, %v969
        %v971 = vrot.slane %v957, %v970
        %v972 = vcombine.low %v939, %v955
        %v973 = vcombine.high %v939, %v955
        %v975 = vunpack.c.l.s4 1934713408
        %v976 = vunpack.c.0.s8 %v975
        %v977 = vlaneseq
        %v978 = vshrl.u32 %v977, 7
        %v979 = vsub.s32 %v976, %v978
        %v980 = vrot.slane %v972, %v979
        %v982 = vunpack.c.l.s4 1934713408
        %v983 = vunpack.c.0.s8 %v982
        %v984 = vlaneseq
        %v985 = vshrl.u32 %v984, 7
        %v986 = vsub.s32 %v983, %v985
        %v987 = vrot.slane %v973, %v986
        %v988 = vcombine.high %v964, 0.0
        %v989 = vcombine.high %v971, 0.0
        %v990 = vcombine.high %v980, 0.0
        %v991 = vcombine.high %v987, 0.0
        %993 = vrot.lane.b32.xlu0 %v920, 16
        %v994 = vpop.permute.xlu0 %993
        %997 = vrot.lane.b32.xlu0 %v903, 32
        %v998 = vpop.permute.xlu0 %997
        %1001 = vrot.lane.b32.xlu0 %v921, 48
        %v1002 = vpop.permute.xlu0 %1001
        %1005 = vrot.lane.b32.xlu0 %v912, 64
        %v1006 = vpop.permute.xlu0 %1005
        %1009 = vrot.lane.b32.xlu0 %v922, 80
        %v1010 = vpop.permute.xlu0 %1009
        %1013 = vrot.lane.b32.xlu0 %v919, 96
        %v1014 = vpop.permute.xlu0 %1013
        %1017 = vrot.lane.b32.xlu0 %v923, 112
        %v1018 = vpop.permute.xlu0 %1017
        %1021 = vrot.lane.b32.xlu0 %v988, 16
        %v1022 = vpop.permute.xlu0 %1021
        %1025 = vrot.lane.b32.xlu0 %v971, 32
        %v1026 = vpop.permute.xlu0 %1025
        %1029 = vrot.lane.b32.xlu0 %v989, 48
        %v1030 = vpop.permute.xlu0 %1029
        %1033 = vrot.lane.b32.xlu0 %v980, 64
        %v1034 = vpop.permute.xlu0 %1033
        %1037 = vrot.lane.b32.xlu0 %v990, 80
        %v1038 = vpop.permute.xlu0 %1037
        %1041 = vrot.lane.b32.xlu0 %v987, 96
        %v1042 = vpop.permute.xlu0 %1041
        %1045 = vrot.lane.b32.xlu0 %v991, 112
        %v1046 = vpop.permute.xlu0 %1045
        %v1048 = vsel %vm803, %v896, %v994
        %v1049 = vsel %vm805, %v1048, %v998
        %v1050 = vsel %vm807, %v1049, %v1002
        %v1051 = vsel %vm809, %v1050, %v1006
        %v1052 = vsel %vm811, %v1051, %v1010
        %v1053 = vsel %vm813, %v1052, %v1014
        %v1054 = vsel %vm815, %v1053, %v1018
        %v1055 = vsel %vm803, %v964, %v1022
        %v1056 = vsel %vm805, %v1055, %v1026
        %v1057 = vsel %vm807, %v1056, %v1030
        %v1058 = vsel %vm809, %v1057, %v1034
        %v1059 = vsel %vm811, %v1058, %v1038
        %v1060 = vsel %vm813, %v1059, %v1042
        %v1061 = vsel %vm815, %v1060, %v1046
        %1062 = vrot.lane.b32.xlu0 %v599, 126
        %v1063 = vpop.permute.xlu0 %1062
        %1064 = vrot.lane.b32.xlu0 %v600, 126
        %v1065 = vpop.permute.xlu0 %1064
        %1066 = vrot.lane.b32.xlu0 %v602, 126
        %v1067 = vpop.permute.xlu0 %1066
        %1068 = vrot.lane.b32.xlu0 %v603, 126
        %v1069 = vpop.permute.xlu0 %1068
        %1070 = vrot.lane.b32.xlu0 %v605, 126
        %v1071 = vpop.permute.xlu0 %1070
        %1072 = vrot.lane.b32.xlu0 %v606, 126
        %v1073 = vpop.permute.xlu0 %1072
        %1074 = vrot.lane.b32.xlu0 %v608, 126
        %v1075 = vpop.permute.xlu0 %1074
        %1076 = vrot.lane.b32.xlu0 %v609, 126
        %v1077 = vpop.permute.xlu0 %1076
        %v1086 = vcombine.low %v1063, %v1071
        %v1087 = vcombine.high %v1063, %v1071
        %v1089 = vunpack.c.l.s4 1983009808
        %v1090 = vunpack.c.0.s8 %v1089
        %v1091 = vlaneseq
        %v1092 = vshrl.u32 %v1091, 7
        %v1093 = vsub.s32 %v1090, %v1092
        %v1094 = vrot.slane %v1086, %v1093
        %v1096 = vunpack.c.l.s4 1983009808
        %v1097 = vunpack.c.0.s8 %v1096
        %v1098 = vlaneseq
        %v1099 = vshrl.u32 %v1098, 7
        %v1100 = vsub.s32 %v1097, %v1099
        %v1101 = vrot.slane %v1087, %v1100
        %v1102 = vcombine.low %v1067, %v1075
        %v1103 = vcombine.high %v1067, %v1075
        %v1105 = vunpack.c.l.s4 1983009808
        %v1106 = vunpack.c.0.s8 %v1105
        %v1107 = vlaneseq
        %v1108 = vshrl.u32 %v1107, 7
        %v1109 = vsub.s32 %v1106, %v1108
        %v1110 = vrot.slane %v1102, %v1109
        %v1112 = vunpack.c.l.s4 1983009808
        %v1113 = vunpack.c.0.s8 %v1112
        %v1114 = vlaneseq
        %v1115 = vshrl.u32 %v1114, 7
        %v1116 = vsub.s32 %v1113, %v1115
        %v1117 = vrot.slane %v1103, %v1116
        %v1118 = vcombine.low %v1094, %v1110
        %v1119 = vcombine.high %v1094, %v1110
        %v1121 = vunpack.c.l.s4 1934713408
        %v1122 = vunpack.c.0.s8 %v1121
        %v1123 = vlaneseq
        %v1124 = vshrl.u32 %v1123, 7
        %v1125 = vsub.s32 %v1122, %v1124
        %v1126 = vrot.slane %v1118, %v1125
        %v1128 = vunpack.c.l.s4 1934713408
        %v1129 = vunpack.c.0.s8 %v1128
        %v1130 = vlaneseq
        %v1131 = vshrl.u32 %v1130, 7
        %v1132 = vsub.s32 %v1129, %v1131
        %v1133 = vrot.slane %v1119, %v1132
        %v1134 = vcombine.low %v1101, %v1117
        %v1135 = vcombine.high %v1101, %v1117
        %v1137 = vunpack.c.l.s4 1934713408
        %v1138 = vunpack.c.0.s8 %v1137
        %v1139 = vlaneseq
        %v1140 = vshrl.u32 %v1139, 7
        %v1141 = vsub.s32 %v1138, %v1140
        %v1142 = vrot.slane %v1134, %v1141
        %v1144 = vunpack.c.l.s4 1934713408
        %v1145 = vunpack.c.0.s8 %v1144
        %v1146 = vlaneseq
        %v1147 = vshrl.u32 %v1146, 7
        %v1148 = vsub.s32 %v1145, %v1147
        %v1149 = vrot.slane %v1135, %v1148
        %v1150 = vcombine.high %v1126, 0.0
        %v1151 = vcombine.high %v1133, 0.0
        %v1152 = vcombine.high %v1142, 0.0
        %v1153 = vcombine.high %v1149, 0.0
        %v1154 = vcombine.low %v1065, %v1073
        %v1155 = vcombine.high %v1065, %v1073
        %v1157 = vunpack.c.l.s4 1983009808
        %v1158 = vunpack.c.0.s8 %v1157
        %v1159 = vlaneseq
        %v1160 = vshrl.u32 %v1159, 7
        %v1161 = vsub.s32 %v1158, %v1160
        %v1162 = vrot.slane %v1154, %v1161
        %v1164 = vunpack.c.l.s4 1983009808
        %v1165 = vunpack.c.0.s8 %v1164
        %v1166 = vlaneseq
        %v1167 = vshrl.u32 %v1166, 7
        %v1168 = vsub.s32 %v1165, %v1167
        %v1169 = vrot.slane %v1155, %v1168
        %v1170 = vcombine.low %v1069, %v1077
        %v1171 = vcombine.high %v1069, %v1077
        %v1173 = vunpack.c.l.s4 1983009808
        %v1174 = vunpack.c.0.s8 %v1173
        %v1175 = vlaneseq
        %v1176 = vshrl.u32 %v1175, 7
        %v1177 = vsub.s32 %v1174, %v1176
        %v1178 = vrot.slane %v1170, %v1177
        %v1180 = vunpack.c.l.s4 1983009808
        %v1181 = vunpack.c.0.s8 %v1180
        %v1182 = vlaneseq
        %v1183 = vshrl.u32 %v1182, 7
        %v1184 = vsub.s32 %v1181, %v1183
        %v1185 = vrot.slane %v1171, %v1184
        %v1186 = vcombine.low %v1162, %v1178
        %v1187 = vcombine.high %v1162, %v1178
        %v1189 = vunpack.c.l.s4 1934713408
        %v1190 = vunpack.c.0.s8 %v1189
        %v1191 = vlaneseq
        %v1192 = vshrl.u32 %v1191, 7
        %v1193 = vsub.s32 %v1190, %v1192
        %v1194 = vrot.slane %v1186, %v1193
        %v1196 = vunpack.c.l.s4 1934713408
        %v1197 = vunpack.c.0.s8 %v1196
        %v1198 = vlaneseq
        %v1199 = vshrl.u32 %v1198, 7
        %v1200 = vsub.s32 %v1197, %v1199
        %v1201 = vrot.slane %v1187, %v1200
        %v1202 = vcombine.low %v1169, %v1185
        %v1203 = vcombine.high %v1169, %v1185
        %v1205 = vunpack.c.l.s4 1934713408
        %v1206 = vunpack.c.0.s8 %v1205
        %v1207 = vlaneseq
        %v1208 = vshrl.u32 %v1207, 7
        %v1209 = vsub.s32 %v1206, %v1208
        %v1210 = vrot.slane %v1202, %v1209
        %v1212 = vunpack.c.l.s4 1934713408
        %v1213 = vunpack.c.0.s8 %v1212
        %v1214 = vlaneseq
        %v1215 = vshrl.u32 %v1214, 7
        %v1216 = vsub.s32 %v1213, %v1215
        %v1217 = vrot.slane %v1203, %v1216
        %v1218 = vcombine.high %v1194, 0.0
        %v1219 = vcombine.high %v1201, 0.0
        %v1220 = vcombine.high %v1210, 0.0
        %v1221 = vcombine.high %v1217, 0.0
        %1223 = vrot.lane.b32.xlu0 %v1150, 16
        %v1224 = vpop.permute.xlu0 %1223
        %1227 = vrot.lane.b32.xlu0 %v1133, 32
        %v1228 = vpop.permute.xlu0 %1227
        %1231 = vrot.lane.b32.xlu0 %v1151, 48
        %v1232 = vpop.permute.xlu0 %1231
        %1235 = vrot.lane.b32.xlu0 %v1142, 64
        %v1236 = vpop.permute.xlu0 %1235
        %1239 = vrot.lane.b32.xlu0 %v1152, 80
        %v1240 = vpop.permute.xlu0 %1239
        %1243 = vrot.lane.b32.xlu0 %v1149, 96
        %v1244 = vpop.permute.xlu0 %1243
        %1247 = vrot.lane.b32.xlu0 %v1153, 112
        %v1248 = vpop.permute.xlu0 %1247
        %1251 = vrot.lane.b32.xlu0 %v1218, 16
        %v1252 = vpop.permute.xlu0 %1251
        %1255 = vrot.lane.b32.xlu0 %v1201, 32
        %v1256 = vpop.permute.xlu0 %1255
        %1259 = vrot.lane.b32.xlu0 %v1219, 48
        %v1260 = vpop.permute.xlu0 %1259
        %1263 = vrot.lane.b32.xlu0 %v1210, 64
        %v1264 = vpop.permute.xlu0 %1263
        %1267 = vrot.lane.b32.xlu0 %v1220, 80
        %v1268 = vpop.permute.xlu0 %1267
        %1271 = vrot.lane.b32.xlu0 %v1217, 96
        %v1272 = vpop.permute.xlu0 %1271
        %1275 = vrot.lane.b32.xlu0 %v1221, 112
        %v1276 = vpop.permute.xlu0 %1275
        %v1278 = vsel %vm803, %v1126, %v1224
        %v1279 = vsel %vm805, %v1278, %v1228
        %v1280 = vsel %vm807, %v1279, %v1232
        %v1281 = vsel %vm809, %v1280, %v1236
        %v1282 = vsel %vm811, %v1281, %v1240
        %v1283 = vsel %vm813, %v1282, %v1244
        %v1284 = vsel %vm815, %v1283, %v1248
        %v1285 = vsel %vm803, %v1194, %v1252
        %v1286 = vsel %vm805, %v1285, %v1256
        %v1287 = vsel %vm807, %v1286, %v1260
        %v1288 = vsel %vm809, %v1287, %v1264
        %v1289 = vsel %vm811, %v1288, %v1268
        %v1290 = vsel %vm813, %v1289, %v1272
        %v1291 = vsel %vm815, %v1290, %v1276
        %vm1296 = vcmask 1046528
        %v1297 = vrot.slane %v599, 1
        %v1298 = vrot.slane %v600, 1
        %v1299 = vsel %vm1296, %v1297, %v1298
        %v1300 = vrot.slane %v601, 1
        %v1301 = vsel %vm1296, %v1298, %v1300
        %v1302 = vrot.slane %v602, 1
        %v1303 = vrot.slane %v603, 1
        %v1304 = vsel %vm1296, %v1302, %v1303
        %v1305 = vrot.slane %v604, 1
        %v1306 = vsel %vm1296, %v1303, %v1305
        %v1307 = vrot.slane %v605, 1
        %v1308 = vrot.slane %v606, 1
        %v1309 = vsel %vm1296, %v1307, %v1308
        %v1310 = vrot.slane %v607, 1
        %v1311 = vsel %vm1296, %v1308, %v1310
        %v1312 = vrot.slane %v608, 1
        %v1313 = vrot.slane %v609, 1
        %v1314 = vsel %vm1296, %v1312, %v1313
        %v1315 = vrot.slane %v610, 1
        %v1316 = vsel %vm1296, %v1313, %v1315
        %v1325 = vcombine.low %v1299, %v1309
        %v1326 = vcombine.high %v1299, %v1309
        %v1328 = vunpack.c.l.s4 1983009808
        %v1329 = vunpack.c.0.s8 %v1328
        %v1330 = vlaneseq
        %v1331 = vshrl.u32 %v1330, 7
        %v1332 = vsub.s32 %v1329, %v1331
        %v1333 = vrot.slane %v1325, %v1332
        %v1335 = vunpack.c.l.s4 1983009808
        %v1336 = vunpack.c.0.s8 %v1335
        %v1337 = vlaneseq
        %v1338 = vshrl.u32 %v1337, 7
        %v1339 = vsub.s32 %v1336, %v1338
        %v1340 = vrot.slane %v1326, %v1339
        %v1341 = vcombine.low %v1304, %v1314
        %v1342 = vcombine.high %v1304, %v1314
        %v1344 = vunpack.c.l.s4 1983009808
        %v1345 = vunpack.c.0.s8 %v1344
        %v1346 = vlaneseq
        %v1347 = vshrl.u32 %v1346, 7
        %v1348 = vsub.s32 %v1345, %v1347
        %v1349 = vrot.slane %v1341, %v1348
        %v1351 = vunpack.c.l.s4 1983009808
        %v1352 = vunpack.c.0.s8 %v1351
        %v1353 = vlaneseq
        %v1354 = vshrl.u32 %v1353, 7
        %v1355 = vsub.s32 %v1352, %v1354
        %v1356 = vrot.slane %v1342, %v1355
        %v1357 = vcombine.low %v1333, %v1349
        %v1358 = vcombine.high %v1333, %v1349
        %v1360 = vunpack.c.l.s4 1934713408
        %v1361 = vunpack.c.0.s8 %v1360
        %v1362 = vlaneseq
        %v1363 = vshrl.u32 %v1362, 7
        %v1364 = vsub.s32 %v1361, %v1363
        %v1365 = vrot.slane %v1357, %v1364
        %v1367 = vunpack.c.l.s4 1934713408
        %v1368 = vunpack.c.0.s8 %v1367
        %v1369 = vlaneseq
        %v1370 = vshrl.u32 %v1369, 7
        %v1371 = vsub.s32 %v1368, %v1370
        %v1372 = vrot.slane %v1358, %v1371
        %v1373 = vcombine.low %v1340, %v1356
        %v1374 = vcombine.high %v1340, %v1356
        %v1376 = vunpack.c.l.s4 1934713408
        %v1377 = vunpack.c.0.s8 %v1376
        %v1378 = vlaneseq
        %v1379 = vshrl.u32 %v1378, 7
        %v1380 = vsub.s32 %v1377, %v1379
        %v1381 = vrot.slane %v1373, %v1380
        %v1383 = vunpack.c.l.s4 1934713408
        %v1384 = vunpack.c.0.s8 %v1383
        %v1385 = vlaneseq
        %v1386 = vshrl.u32 %v1385, 7
        %v1387 = vsub.s32 %v1384, %v1386
        %v1388 = vrot.slane %v1374, %v1387
        %v1389 = vcombine.high %v1365, 0.0
        %v1390 = vcombine.high %v1372, 0.0
        %v1391 = vcombine.high %v1381, 0.0
        %v1392 = vcombine.high %v1388, 0.0
        %v1393 = vcombine.low %v1301, %v1311
        %v1394 = vcombine.high %v1301, %v1311
        %v1396 = vunpack.c.l.s4 1983009808
        %v1397 = vunpack.c.0.s8 %v1396
        %v1398 = vlaneseq
        %v1399 = vshrl.u32 %v1398, 7
        %v1400 = vsub.s32 %v1397, %v1399
        %v1401 = vrot.slane %v1393, %v1400
        %v1403 = vunpack.c.l.s4 1983009808
        %v1404 = vunpack.c.0.s8 %v1403
        %v1405 = vlaneseq
        %v1406 = vshrl.u32 %v1405, 7
        %v1407 = vsub.s32 %v1404, %v1406
        %v1408 = vrot.slane %v1394, %v1407
        %v1409 = vcombine.low %v1306, %v1316
        %v1410 = vcombine.high %v1306, %v1316
        %v1412 = vunpack.c.l.s4 1983009808
        %v1413 = vunpack.c.0.s8 %v1412
        %v1414 = vlaneseq
        %v1415 = vshrl.u32 %v1414, 7
        %v1416 = vsub.s32 %v1413, %v1415
        %v1417 = vrot.slane %v1409, %v1416
        %v1419 = vunpack.c.l.s4 1983009808
        %v1420 = vunpack.c.0.s8 %v1419
        %v1421 = vlaneseq
        %v1422 = vshrl.u32 %v1421, 7
        %v1423 = vsub.s32 %v1420, %v1422
        %v1424 = vrot.slane %v1410, %v1423
        %v1425 = vcombine.low %v1401, %v1417
        %v1426 = vcombine.high %v1401, %v1417
        %v1428 = vunpack.c.l.s4 1934713408
        %v1429 = vunpack.c.0.s8 %v1428
        %v1430 = vlaneseq
        %v1431 = vshrl.u32 %v1430, 7
        %v1432 = vsub.s32 %v1429, %v1431
        %v1433 = vrot.slane %v1425, %v1432
        %v1435 = vunpack.c.l.s4 1934713408
        %v1436 = vunpack.c.0.s8 %v1435
        %v1437 = vlaneseq
        %v1438 = vshrl.u32 %v1437, 7
        %v1439 = vsub.s32 %v1436, %v1438
        %v1440 = vrot.slane %v1426, %v1439
        %v1441 = vcombine.low %v1408, %v1424
        %v1442 = vcombine.high %v1408, %v1424
        %v1444 = vunpack.c.l.s4 1934713408
        %v1445 = vunpack.c.0.s8 %v1444
        %v1446 = vlaneseq
        %v1447 = vshrl.u32 %v1446, 7
        %v1448 = vsub.s32 %v1445, %v1447
        %v1449 = vrot.slane %v1441, %v1448
        %v1451 = vunpack.c.l.s4 1934713408
        %v1452 = vunpack.c.0.s8 %v1451
        %v1453 = vlaneseq
        %v1454 = vshrl.u32 %v1453, 7
        %v1455 = vsub.s32 %v1452, %v1454
        %v1456 = vrot.slane %v1442, %v1455
        %v1457 = vcombine.high %v1433, 0.0
        %v1458 = vcombine.high %v1440, 0.0
        %v1459 = vcombine.high %v1449, 0.0
        %v1460 = vcombine.high %v1456, 0.0
        %1462 = vrot.lane.b32.xlu0 %v1389, 16
        %v1463 = vpop.permute.xlu0 %1462
        %1466 = vrot.lane.b32.xlu0 %v1372, 32
        %v1467 = vpop.permute.xlu0 %1466
        %1470 = vrot.lane.b32.xlu0 %v1390, 48
        %v1471 = vpop.permute.xlu0 %1470
        %1474 = vrot.lane.b32.xlu0 %v1381, 64
        %v1475 = vpop.permute.xlu0 %1474
        %1478 = vrot.lane.b32.xlu0 %v1391, 80
        %v1479 = vpop.permute.xlu0 %1478
        %1482 = vrot.lane.b32.xlu0 %v1388, 96
        %v1483 = vpop.permute.xlu0 %1482
        %1486 = vrot.lane.b32.xlu0 %v1392, 112
        %v1487 = vpop.permute.xlu0 %1486
        %1490 = vrot.lane.b32.xlu0 %v1457, 16
        %v1491 = vpop.permute.xlu0 %1490
        %1494 = vrot.lane.b32.xlu0 %v1440, 32
        %v1495 = vpop.permute.xlu0 %1494
        %1498 = vrot.lane.b32.xlu0 %v1458, 48
        %v1499 = vpop.permute.xlu0 %1498
        %1502 = vrot.lane.b32.xlu0 %v1449, 64
        %v1503 = vpop.permute.xlu0 %1502
        %1506 = vrot.lane.b32.xlu0 %v1459, 80
        %v1507 = vpop.permute.xlu0 %1506
        %1510 = vrot.lane.b32.xlu0 %v1456, 96
        %v1511 = vpop.permute.xlu0 %1510
        %1514 = vrot.lane.b32.xlu0 %v1460, 112
        %v1515 = vpop.permute.xlu0 %1514
        %v1517 = vsel %vm803, %v1365, %v1463
        %v1518 = vsel %vm805, %v1517, %v1467
        %v1519 = vsel %vm807, %v1518, %v1471
        %v1520 = vsel %vm809, %v1519, %v1475
        %v1521 = vsel %vm811, %v1520, %v1479
        %v1522 = vsel %vm813, %v1521, %v1483
        %v1523 = vsel %vm815, %v1522, %v1487
        %v1524 = vsel %vm803, %v1433, %v1491
        %v1525 = vsel %vm805, %v1524, %v1495
        %v1526 = vsel %vm807, %v1525, %v1499
        %v1527 = vsel %vm809, %v1526, %v1503
        %v1528 = vsel %vm811, %v1527, %v1507
        %v1529 = vsel %vm813, %v1528, %v1511
        %v1530 = vsel %vm815, %v1529, %v1515
        %1531 = vrot.lane.b32.xlu0 %v1299, 127
        %v1532 = vpop.permute.xlu0 %1531
        %1533 = vrot.lane.b32.xlu0 %v1301, 127
        %v1534 = vpop.permute.xlu0 %1533
        %1535 = vrot.lane.b32.xlu0 %v1304, 127
        %v1536 = vpop.permute.xlu0 %1535
        %1537 = vrot.lane.b32.xlu0 %v1306, 127
        %v1538 = vpop.permute.xlu0 %1537
        %1539 = vrot.lane.b32.xlu0 %v1309, 127
        %v1540 = vpop.permute.xlu0 %1539
        %1541 = vrot.lane.b32.xlu0 %v1311, 127
        %v1542 = vpop.permute.xlu0 %1541
        %1543 = vrot.lane.b32.xlu0 %v1314, 127
        %v1544 = vpop.permute.xlu0 %1543
        %1545 = vrot.lane.b32.xlu0 %v1316, 127
        %v1546 = vpop.permute.xlu0 %1545
        %v1555 = vcombine.low %v1532, %v1540
        %v1556 = vcombine.high %v1532, %v1540
        %v1558 = vunpack.c.l.s4 1983009808
        %v1559 = vunpack.c.0.s8 %v1558
        %v1560 = vlaneseq
        %v1561 = vshrl.u32 %v1560, 7
        %v1562 = vsub.s32 %v1559, %v1561
        %v1563 = vrot.slane %v1555, %v1562
        %v1565 = vunpack.c.l.s4 1983009808
        %v1566 = vunpack.c.0.s8 %v1565
        %v1567 = vlaneseq
        %v1568 = vshrl.u32 %v1567, 7
        %v1569 = vsub.s32 %v1566, %v1568
        %v1570 = vrot.slane %v1556, %v1569
        %v1571 = vcombine.low %v1536, %v1544
        %v1572 = vcombine.high %v1536, %v1544
        %v1574 = vunpack.c.l.s4 1983009808
        %v1575 = vunpack.c.0.s8 %v1574
        %v1576 = vlaneseq
        %v1577 = vshrl.u32 %v1576, 7
        %v1578 = vsub.s32 %v1575, %v1577
        %v1579 = vrot.slane %v1571, %v1578
        %v1581 = vunpack.c.l.s4 1983009808
        %v1582 = vunpack.c.0.s8 %v1581
        %v1583 = vlaneseq
        %v1584 = vshrl.u32 %v1583, 7
        %v1585 = vsub.s32 %v1582, %v1584
        %v1586 = vrot.slane %v1572, %v1585
        %v1587 = vcombine.low %v1563, %v1579
        %v1588 = vcombine.high %v1563, %v1579
        %v1590 = vunpack.c.l.s4 1934713408
        %v1591 = vunpack.c.0.s8 %v1590
        %v1592 = vlaneseq
        %v1593 = vshrl.u32 %v1592, 7
        %v1594 = vsub.s32 %v1591, %v1593
        %v1595 = vrot.slane %v1587, %v1594
        %v1597 = vunpack.c.l.s4 1934713408
        %v1598 = vunpack.c.0.s8 %v1597
        %v1599 = vlaneseq
        %v1600 = vshrl.u32 %v1599, 7
        %v1601 = vsub.s32 %v1598, %v1600
        %v1602 = vrot.slane %v1588, %v1601
        %v1603 = vcombine.low %v1570, %v1586
        %v1604 = vcombine.high %v1570, %v1586
        %v1606 = vunpack.c.l.s4 1934713408
        %v1607 = vunpack.c.0.s8 %v1606
        %v1608 = vlaneseq
        %v1609 = vshrl.u32 %v1608, 7
        %v1610 = vsub.s32 %v1607, %v1609
        %v1611 = vrot.slane %v1603, %v1610
        %v1613 = vunpack.c.l.s4 1934713408
        %v1614 = vunpack.c.0.s8 %v1613
        %v1615 = vlaneseq
        %v1616 = vshrl.u32 %v1615, 7
        %v1617 = vsub.s32 %v1614, %v1616
        %v1618 = vrot.slane %v1604, %v1617
        %v1619 = vcombine.high %v1595, 0.0
        %v1620 = vcombine.high %v1602, 0.0
        %v1621 = vcombine.high %v1611, 0.0
        %v1622 = vcombine.high %v1618, 0.0
        %v1623 = vcombine.low %v1534, %v1542
        %v1624 = vcombine.high %v1534, %v1542
        %v1626 = vunpack.c.l.s4 1983009808
        %v1627 = vunpack.c.0.s8 %v1626
        %v1628 = vlaneseq
        %v1629 = vshrl.u32 %v1628, 7
        %v1630 = vsub.s32 %v1627, %v1629
        %v1631 = vrot.slane %v1623, %v1630
        %v1633 = vunpack.c.l.s4 1983009808
        %v1634 = vunpack.c.0.s8 %v1633
        %v1635 = vlaneseq
        %v1636 = vshrl.u32 %v1635, 7
        %v1637 = vsub.s32 %v1634, %v1636
        %v1638 = vrot.slane %v1624, %v1637
        %v1639 = vcombine.low %v1538, %v1546
        %v1640 = vcombine.high %v1538, %v1546
        %v1642 = vunpack.c.l.s4 1983009808
        %v1643 = vunpack.c.0.s8 %v1642
        %v1644 = vlaneseq
        %v1645 = vshrl.u32 %v1644, 7
        %v1646 = vsub.s32 %v1643, %v1645
        %v1647 = vrot.slane %v1639, %v1646
        %v1649 = vunpack.c.l.s4 1983009808
        %v1650 = vunpack.c.0.s8 %v1649
        %v1651 = vlaneseq
        %v1652 = vshrl.u32 %v1651, 7
        %v1653 = vsub.s32 %v1650, %v1652
        %v1654 = vrot.slane %v1640, %v1653
        %v1655 = vcombine.low %v1631, %v1647
        %v1656 = vcombine.high %v1631, %v1647
        %v1658 = vunpack.c.l.s4 1934713408
        %v1659 = vunpack.c.0.s8 %v1658
        %v1660 = vlaneseq
        %v1661 = vshrl.u32 %v1660, 7
        %v1662 = vsub.s32 %v1659, %v1661
        %v1663 = vrot.slane %v1655, %v1662
        %v1665 = vunpack.c.l.s4 1934713408
        %v1666 = vunpack.c.0.s8 %v1665
        %v1667 = vlaneseq
        %v1668 = vshrl.u32 %v1667, 7
        %v1669 = vsub.s32 %v1666, %v1668
        %v1670 = vrot.slane %v1656, %v1669
        %v1671 = vcombine.low %v1638, %v1654
        %v1672 = vcombine.high %v1638, %v1654
        %v1674 = vunpack.c.l.s4 1934713408
        %v1675 = vunpack.c.0.s8 %v1674
        %v1676 = vlaneseq
        %v1677 = vshrl.u32 %v1676, 7
        %v1678 = vsub.s32 %v1675, %v1677
        %v1679 = vrot.slane %v1671, %v1678
        %v1681 = vunpack.c.l.s4 1934713408
        %v1682 = vunpack.c.0.s8 %v1681
        %v1683 = vlaneseq
        %v1684 = vshrl.u32 %v1683, 7
        %v1685 = vsub.s32 %v1682, %v1684
        %v1686 = vrot.slane %v1672, %v1685
        %v1687 = vcombine.high %v1663, 0.0
        %v1688 = vcombine.high %v1670, 0.0
        %v1689 = vcombine.high %v1679, 0.0
        %v1690 = vcombine.high %v1686, 0.0
        %1692 = vrot.lane.b32.xlu0 %v1619, 16
        %v1693 = vpop.permute.xlu0 %1692
        %1696 = vrot.lane.b32.xlu0 %v1602, 32
        %v1697 = vpop.permute.xlu0 %1696
        %1700 = vrot.lane.b32.xlu0 %v1620, 48
        %v1701 = vpop.permute.xlu0 %1700
        %1704 = vrot.lane.b32.xlu0 %v1611, 64
        %v1705 = vpop.permute.xlu0 %1704
        %1708 = vrot.lane.b32.xlu0 %v1621, 80
        %v1709 = vpop.permute.xlu0 %1708
        %1712 = vrot.lane.b32.xlu0 %v1618, 96
        %v1713 = vpop.permute.xlu0 %1712
        %1716 = vrot.lane.b32.xlu0 %v1622, 112
        %v1717 = vpop.permute.xlu0 %1716
        %1720 = vrot.lane.b32.xlu0 %v1687, 16
        %v1721 = vpop.permute.xlu0 %1720
        %1724 = vrot.lane.b32.xlu0 %v1670, 32
        %v1725 = vpop.permute.xlu0 %1724
        %1728 = vrot.lane.b32.xlu0 %v1688, 48
        %v1729 = vpop.permute.xlu0 %1728
        %1732 = vrot.lane.b32.xlu0 %v1679, 64
        %v1733 = vpop.permute.xlu0 %1732
        %1736 = vrot.lane.b32.xlu0 %v1689, 80
        %v1737 = vpop.permute.xlu0 %1736
        %1740 = vrot.lane.b32.xlu0 %v1686, 96
        %v1741 = vpop.permute.xlu0 %1740
        %1744 = vrot.lane.b32.xlu0 %v1690, 112
        %v1745 = vpop.permute.xlu0 %1744
        %v1747 = vsel %vm803, %v1595, %v1693
        %v1748 = vsel %vm805, %v1747, %v1697
        %v1749 = vsel %vm807, %v1748, %v1701
        %v1750 = vsel %vm809, %v1749, %v1705
        %v1751 = vsel %vm811, %v1750, %v1709
        %v1752 = vsel %vm813, %v1751, %v1713
        %v1753 = vsel %vm815, %v1752, %v1717
        %v1754 = vsel %vm803, %v1663, %v1721
        %v1755 = vsel %vm805, %v1754, %v1725
        %v1756 = vsel %vm807, %v1755, %v1729
        %v1757 = vsel %vm809, %v1756, %v1733
        %v1758 = vsel %vm811, %v1757, %v1737
        %v1759 = vsel %vm813, %v1758, %v1741
        %v1760 = vsel %vm815, %v1759, %v1745
        %1761 = vrot.lane.b32.xlu0 %v1299, 126
        %v1762 = vpop.permute.xlu0 %1761
        %1763 = vrot.lane.b32.xlu0 %v1301, 126
        %v1764 = vpop.permute.xlu0 %1763
        %1765 = vrot.lane.b32.xlu0 %v1304, 126
        %v1766 = vpop.permute.xlu0 %1765
        %1767 = vrot.lane.b32.xlu0 %v1306, 126
        %v1768 = vpop.permute.xlu0 %1767
        %1769 = vrot.lane.b32.xlu0 %v1309, 126
        %v1770 = vpop.permute.xlu0 %1769
        %1771 = vrot.lane.b32.xlu0 %v1311, 126
        %v1772 = vpop.permute.xlu0 %1771
        %1773 = vrot.lane.b32.xlu0 %v1314, 126
        %v1774 = vpop.permute.xlu0 %1773
        %1775 = vrot.lane.b32.xlu0 %v1316, 126
        %v1776 = vpop.permute.xlu0 %1775
        %v1785 = vcombine.low %v1762, %v1770
        %v1786 = vcombine.high %v1762, %v1770
        %v1788 = vunpack.c.l.s4 1983009808
        %v1789 = vunpack.c.0.s8 %v1788
        %v1790 = vlaneseq
        %v1791 = vshrl.u32 %v1790, 7
        %v1792 = vsub.s32 %v1789, %v1791
        %v1793 = vrot.slane %v1785, %v1792
        %v1795 = vunpack.c.l.s4 1983009808
        %v1796 = vunpack.c.0.s8 %v1795
        %v1797 = vlaneseq
        %v1798 = vshrl.u32 %v1797, 7
        %v1799 = vsub.s32 %v1796, %v1798
        %v1800 = vrot.slane %v1786, %v1799
        %v1801 = vcombine.low %v1766, %v1774
        %v1802 = vcombine.high %v1766, %v1774
        %v1804 = vunpack.c.l.s4 1983009808
        %v1805 = vunpack.c.0.s8 %v1804
        %v1806 = vlaneseq
        %v1807 = vshrl.u32 %v1806, 7
        %v1808 = vsub.s32 %v1805, %v1807
        %v1809 = vrot.slane %v1801, %v1808
        %v1811 = vunpack.c.l.s4 1983009808
        %v1812 = vunpack.c.0.s8 %v1811
        %v1813 = vlaneseq
        %v1814 = vshrl.u32 %v1813, 7
        %v1815 = vsub.s32 %v1812, %v1814
        %v1816 = vrot.slane %v1802, %v1815
        %v1817 = vcombine.low %v1793, %v1809
        %v1818 = vcombine.high %v1793, %v1809
        %v1820 = vunpack.c.l.s4 1934713408
        %v1821 = vunpack.c.0.s8 %v1820
        %v1822 = vlaneseq
        %v1823 = vshrl.u32 %v1822, 7
        %v1824 = vsub.s32 %v1821, %v1823
        %v1825 = vrot.slane %v1817, %v1824
        %v1827 = vunpack.c.l.s4 1934713408
        %v1828 = vunpack.c.0.s8 %v1827
        %v1829 = vlaneseq
        %v1830 = vshrl.u32 %v1829, 7
        %v1831 = vsub.s32 %v1828, %v1830
        %v1832 = vrot.slane %v1818, %v1831
        %v1833 = vcombine.low %v1800, %v1816
        %v1834 = vcombine.high %v1800, %v1816
        %v1836 = vunpack.c.l.s4 1934713408
        %v1837 = vunpack.c.0.s8 %v1836
        %v1838 = vlaneseq
        %v1839 = vshrl.u32 %v1838, 7
        %v1840 = vsub.s32 %v1837, %v1839
        %v1841 = vrot.slane %v1833, %v1840
        %v1843 = vunpack.c.l.s4 1934713408
        %v1844 = vunpack.c.0.s8 %v1843
        %v1845 = vlaneseq
        %v1846 = vshrl.u32 %v1845, 7
        %v1847 = vsub.s32 %v1844, %v1846
        %v1848 = vrot.slane %v1834, %v1847
        %v1849 = vcombine.high %v1825, 0.0
        %v1850 = vcombine.high %v1832, 0.0
        %v1851 = vcombine.high %v1841, 0.0
        %v1852 = vcombine.high %v1848, 0.0
        %v1853 = vcombine.low %v1764, %v1772
        %v1854 = vcombine.high %v1764, %v1772
        %v1856 = vunpack.c.l.s4 1983009808
        %v1857 = vunpack.c.0.s8 %v1856
        %v1858 = vlaneseq
        %v1859 = vshrl.u32 %v1858, 7
        %v1860 = vsub.s32 %v1857, %v1859
        %v1861 = vrot.slane %v1853, %v1860
        %v1863 = vunpack.c.l.s4 1983009808
        %v1864 = vunpack.c.0.s8 %v1863
        %v1865 = vlaneseq
        %v1866 = vshrl.u32 %v1865, 7
        %v1867 = vsub.s32 %v1864, %v1866
        %v1868 = vrot.slane %v1854, %v1867
        %v1869 = vcombine.low %v1768, %v1776
        %v1870 = vcombine.high %v1768, %v1776
        %v1872 = vunpack.c.l.s4 1983009808
        %v1873 = vunpack.c.0.s8 %v1872
        %v1874 = vlaneseq
        %v1875 = vshrl.u32 %v1874, 7
        %v1876 = vsub.s32 %v1873, %v1875
        %v1877 = vrot.slane %v1869, %v1876
        %v1879 = vunpack.c.l.s4 1983009808
        %v1880 = vunpack.c.0.s8 %v1879
        %v1881 = vlaneseq
        %v1882 = vshrl.u32 %v1881, 7
        %v1883 = vsub.s32 %v1880, %v1882
        %v1884 = vrot.slane %v1870, %v1883
        %v1885 = vcombine.low %v1861, %v1877
        %v1886 = vcombine.high %v1861, %v1877
        %v1888 = vunpack.c.l.s4 1934713408
        %v1889 = vunpack.c.0.s8 %v1888
        %v1890 = vlaneseq
        %v1891 = vshrl.u32 %v1890, 7
        %v1892 = vsub.s32 %v1889, %v1891
        %v1893 = vrot.slane %v1885, %v1892
        %v1895 = vunpack.c.l.s4 1934713408
        %v1896 = vunpack.c.0.s8 %v1895
        %v1897 = vlaneseq
        %v1898 = vshrl.u32 %v1897, 7
        %v1899 = vsub.s32 %v1896, %v1898
        %v1900 = vrot.slane %v1886, %v1899
        %v1901 = vcombine.low %v1868, %v1884
        %v1902 = vcombine.high %v1868, %v1884
        %v1904 = vunpack.c.l.s4 1934713408
        %v1905 = vunpack.c.0.s8 %v1904
        %v1906 = vlaneseq
        %v1907 = vshrl.u32 %v1906, 7
        %v1908 = vsub.s32 %v1905, %v1907
        %v1909 = vrot.slane %v1901, %v1908
        %v1911 = vunpack.c.l.s4 1934713408
        %v1912 = vunpack.c.0.s8 %v1911
        %v1913 = vlaneseq
        %v1914 = vshrl.u32 %v1913, 7
        %v1915 = vsub.s32 %v1912, %v1914
        %v1916 = vrot.slane %v1902, %v1915
        %v1917 = vcombine.high %v1893, 0.0
        %v1918 = vcombine.high %v1900, 0.0
        %v1919 = vcombine.high %v1909, 0.0
        %v1920 = vcombine.high %v1916, 0.0
        %1922 = vrot.lane.b32.xlu0 %v1849, 16
        %v1923 = vpop.permute.xlu0 %1922
        %1926 = vrot.lane.b32.xlu0 %v1832, 32
        %v1927 = vpop.permute.xlu0 %1926
        %1930 = vrot.lane.b32.xlu0 %v1850, 48
        %v1931 = vpop.permute.xlu0 %1930
        %1934 = vrot.lane.b32.xlu0 %v1841, 64
        %v1935 = vpop.permute.xlu0 %1934
        %1938 = vrot.lane.b32.xlu0 %v1851, 80
        %v1939 = vpop.permute.xlu0 %1938
        %1942 = vrot.lane.b32.xlu0 %v1848, 96
        %v1943 = vpop.permute.xlu0 %1942
        %1946 = vrot.lane.b32.xlu0 %v1852, 112
        %v1947 = vpop.permute.xlu0 %1946
        %1950 = vrot.lane.b32.xlu0 %v1917, 16
        %v1951 = vpop.permute.xlu0 %1950
        %1954 = vrot.lane.b32.xlu0 %v1900, 32
        %v1955 = vpop.permute.xlu0 %1954
        %1958 = vrot.lane.b32.xlu0 %v1918, 48
        %v1959 = vpop.permute.xlu0 %1958
        %1962 = vrot.lane.b32.xlu0 %v1909, 64
        %v1963 = vpop.permute.xlu0 %1962
        %1966 = vrot.lane.b32.xlu0 %v1919, 80
        %v1967 = vpop.permute.xlu0 %1966
        %1970 = vrot.lane.b32.xlu0 %v1916, 96
        %v1971 = vpop.permute.xlu0 %1970
        %1974 = vrot.lane.b32.xlu0 %v1920, 112
        %v1975 = vpop.permute.xlu0 %1974
        %v1977 = vsel %vm803, %v1825, %v1923
        %v1978 = vsel %vm805, %v1977, %v1927
        %v1979 = vsel %vm807, %v1978, %v1931
        %v1980 = vsel %vm809, %v1979, %v1935
        %v1981 = vsel %vm811, %v1980, %v1939
        %v1982 = vsel %vm813, %v1981, %v1943
        %v1983 = vsel %vm815, %v1982, %v1947
        %v1984 = vsel %vm803, %v1893, %v1951
        %v1985 = vsel %vm805, %v1984, %v1955
        %v1986 = vsel %vm807, %v1985, %v1959
        %v1987 = vsel %vm809, %v1986, %v1963
        %v1988 = vsel %vm811, %v1987, %v1967
        %v1989 = vsel %vm813, %v1988, %v1971
        %v1990 = vsel %vm815, %v1989, %v1975
        %vm1991 = vcmask 1045504
        %v1992 = vrot.slane %v599, 2
        %v1993 = vrot.slane %v600, 2
        %v1994 = vsel %vm1991, %v1992, %v1993
        %v1995 = vrot.slane %v601, 2
        %v1996 = vsel %vm1991, %v1993, %v1995
        %v1997 = vrot.slane %v602, 2
        %v1998 = vrot.slane %v603, 2
        %v1999 = vsel %vm1991, %v1997, %v1998
        %v2000 = vrot.slane %v604, 2
        %v2001 = vsel %vm1991, %v1998, %v2000
        %v2002 = vrot.slane %v605, 2
        %v2003 = vrot.slane %v606, 2
        %v2004 = vsel %vm1991, %v2002, %v2003
        %v2005 = vrot.slane %v607, 2
        %v2006 = vsel %vm1991, %v2003, %v2005
        %v2007 = vrot.slane %v608, 2
        %v2008 = vrot.slane %v609, 2
        %v2009 = vsel %vm1991, %v2007, %v2008
        %v2010 = vrot.slane %v610, 2
        %v2011 = vsel %vm1991, %v2008, %v2010
        %v2020 = vcombine.low %v1994, %v2004
        %v2021 = vcombine.high %v1994, %v2004
        %v2023 = vunpack.c.l.s4 1983009808
        %v2024 = vunpack.c.0.s8 %v2023
        %v2025 = vlaneseq
        %v2026 = vshrl.u32 %v2025, 7
        %v2027 = vsub.s32 %v2024, %v2026
        %v2028 = vrot.slane %v2020, %v2027
        %v2030 = vunpack.c.l.s4 1983009808
        %v2031 = vunpack.c.0.s8 %v2030
        %v2032 = vlaneseq
        %v2033 = vshrl.u32 %v2032, 7
        %v2034 = vsub.s32 %v2031, %v2033
        %v2035 = vrot.slane %v2021, %v2034
        %v2036 = vcombine.low %v1999, %v2009
        %v2037 = vcombine.high %v1999, %v2009
        %v2039 = vunpack.c.l.s4 1983009808
        %v2040 = vunpack.c.0.s8 %v2039
        %v2041 = vlaneseq
        %v2042 = vshrl.u32 %v2041, 7
        %v2043 = vsub.s32 %v2040, %v2042
        %v2044 = vrot.slane %v2036, %v2043
        %v2046 = vunpack.c.l.s4 1983009808
        %v2047 = vunpack.c.0.s8 %v2046
        %v2048 = vlaneseq
        %v2049 = vshrl.u32 %v2048, 7
        %v2050 = vsub.s32 %v2047, %v2049
        %v2051 = vrot.slane %v2037, %v2050
        %v2052 = vcombine.low %v2028, %v2044
        %v2053 = vcombine.high %v2028, %v2044
        %v2055 = vunpack.c.l.s4 1934713408
        %v2056 = vunpack.c.0.s8 %v2055
        %v2057 = vlaneseq
        %v2058 = vshrl.u32 %v2057, 7
        %v2059 = vsub.s32 %v2056, %v2058
        %v2060 = vrot.slane %v2052, %v2059
        %v2062 = vunpack.c.l.s4 1934713408
        %v2063 = vunpack.c.0.s8 %v2062
        %v2064 = vlaneseq
        %v2065 = vshrl.u32 %v2064, 7
        %v2066 = vsub.s32 %v2063, %v2065
        %v2067 = vrot.slane %v2053, %v2066
        %v2068 = vcombine.low %v2035, %v2051
        %v2069 = vcombine.high %v2035, %v2051
        %v2071 = vunpack.c.l.s4 1934713408
        %v2072 = vunpack.c.0.s8 %v2071
        %v2073 = vlaneseq
        %v2074 = vshrl.u32 %v2073, 7
        %v2075 = vsub.s32 %v2072, %v2074
        %v2076 = vrot.slane %v2068, %v2075
        %v2078 = vunpack.c.l.s4 1934713408
        %v2079 = vunpack.c.0.s8 %v2078
        %v2080 = vlaneseq
        %v2081 = vshrl.u32 %v2080, 7
        %v2082 = vsub.s32 %v2079, %v2081
        %v2083 = vrot.slane %v2069, %v2082
        %v2084 = vcombine.high %v2060, 0.0
        %v2085 = vcombine.high %v2067, 0.0
        %v2086 = vcombine.high %v2076, 0.0
        %v2087 = vcombine.high %v2083, 0.0
        %v2088 = vcombine.low %v1996, %v2006
        %v2089 = vcombine.high %v1996, %v2006
        %v2091 = vunpack.c.l.s4 1983009808
        %v2092 = vunpack.c.0.s8 %v2091
        %v2093 = vlaneseq
        %v2094 = vshrl.u32 %v2093, 7
        %v2095 = vsub.s32 %v2092, %v2094
        %v2096 = vrot.slane %v2088, %v2095
        %v2098 = vunpack.c.l.s4 1983009808
        %v2099 = vunpack.c.0.s8 %v2098
        %v2100 = vlaneseq
        %v2101 = vshrl.u32 %v2100, 7
        %v2102 = vsub.s32 %v2099, %v2101
        %v2103 = vrot.slane %v2089, %v2102
        %v2104 = vcombine.low %v2001, %v2011
        %v2105 = vcombine.high %v2001, %v2011
        %v2107 = vunpack.c.l.s4 1983009808
        %v2108 = vunpack.c.0.s8 %v2107
        %v2109 = vlaneseq
        %v2110 = vshrl.u32 %v2109, 7
        %v2111 = vsub.s32 %v2108, %v2110
        %v2112 = vrot.slane %v2104, %v2111
        %v2114 = vunpack.c.l.s4 1983009808
        %v2115 = vunpack.c.0.s8 %v2114
        %v2116 = vlaneseq
        %v2117 = vshrl.u32 %v2116, 7
        %v2118 = vsub.s32 %v2115, %v2117
        %v2119 = vrot.slane %v2105, %v2118
        %v2120 = vcombine.low %v2096, %v2112
        %v2121 = vcombine.high %v2096, %v2112
        %v2123 = vunpack.c.l.s4 1934713408
        %v2124 = vunpack.c.0.s8 %v2123
        %v2125 = vlaneseq
        %v2126 = vshrl.u32 %v2125, 7
        %v2127 = vsub.s32 %v2124, %v2126
        %v2128 = vrot.slane %v2120, %v2127
        %v2130 = vunpack.c.l.s4 1934713408
        %v2131 = vunpack.c.0.s8 %v2130
        %v2132 = vlaneseq
        %v2133 = vshrl.u32 %v2132, 7
        %v2134 = vsub.s32 %v2131, %v2133
        %v2135 = vrot.slane %v2121, %v2134
        %v2136 = vcombine.low %v2103, %v2119
        %v2137 = vcombine.high %v2103, %v2119
        %v2139 = vunpack.c.l.s4 1934713408
        %v2140 = vunpack.c.0.s8 %v2139
        %v2141 = vlaneseq
        %v2142 = vshrl.u32 %v2141, 7
        %v2143 = vsub.s32 %v2140, %v2142
        %v2144 = vrot.slane %v2136, %v2143
        %v2146 = vunpack.c.l.s4 1934713408
        %v2147 = vunpack.c.0.s8 %v2146
        %v2148 = vlaneseq
        %v2149 = vshrl.u32 %v2148, 7
        %v2150 = vsub.s32 %v2147, %v2149
        %v2151 = vrot.slane %v2137, %v2150
        %v2152 = vcombine.high %v2128, 0.0
        %v2153 = vcombine.high %v2135, 0.0
        %v2154 = vcombine.high %v2144, 0.0
        %v2155 = vcombine.high %v2151, 0.0
        %2157 = vrot.lane.b32.xlu0 %v2084, 16
        %v2158 = vpop.permute.xlu0 %2157
        %2161 = vrot.lane.b32.xlu0 %v2067, 32
        %v2162 = vpop.permute.xlu0 %2161
        %2165 = vrot.lane.b32.xlu0 %v2085, 48
        %v2166 = vpop.permute.xlu0 %2165
        %2169 = vrot.lane.b32.xlu0 %v2076, 64
        %v2170 = vpop.permute.xlu0 %2169
        %2173 = vrot.lane.b32.xlu0 %v2086, 80
        %v2174 = vpop.permute.xlu0 %2173
        %2177 = vrot.lane.b32.xlu0 %v2083, 96
        %v2178 = vpop.permute.xlu0 %2177
        %2181 = vrot.lane.b32.xlu0 %v2087, 112
        %v2182 = vpop.permute.xlu0 %2181
        %2185 = vrot.lane.b32.xlu0 %v2152, 16
        %v2186 = vpop.permute.xlu0 %2185
        %2189 = vrot.lane.b32.xlu0 %v2135, 32
        %v2190 = vpop.permute.xlu0 %2189
        %2193 = vrot.lane.b32.xlu0 %v2153, 48
        %v2194 = vpop.permute.xlu0 %2193
        %2197 = vrot.lane.b32.xlu0 %v2144, 64
        %v2198 = vpop.permute.xlu0 %2197
        %2201 = vrot.lane.b32.xlu0 %v2154, 80
        %v2202 = vpop.permute.xlu0 %2201
        %2205 = vrot.lane.b32.xlu0 %v2151, 96
        %v2206 = vpop.permute.xlu0 %2205
        %2209 = vrot.lane.b32.xlu0 %v2155, 112
        %v2210 = vpop.permute.xlu0 %2209
        %v2212 = vsel %vm803, %v2060, %v2158
        %v2213 = vsel %vm805, %v2212, %v2162
        %v2214 = vsel %vm807, %v2213, %v2166
        %v2215 = vsel %vm809, %v2214, %v2170
        %v2216 = vsel %vm811, %v2215, %v2174
        %v2217 = vsel %vm813, %v2216, %v2178
        %v2218 = vsel %vm815, %v2217, %v2182
        %v2219 = vsel %vm803, %v2128, %v2186
        %v2220 = vsel %vm805, %v2219, %v2190
        %v2221 = vsel %vm807, %v2220, %v2194
        %v2222 = vsel %vm809, %v2221, %v2198
        %v2223 = vsel %vm811, %v2222, %v2202
        %v2224 = vsel %vm813, %v2223, %v2206
        %v2225 = vsel %vm815, %v2224, %v2210
        %2226 = vrot.lane.b32.xlu0 %v1994, 127
        %v2227 = vpop.permute.xlu0 %2226
        %2228 = vrot.lane.b32.xlu0 %v1996, 127
        %v2229 = vpop.permute.xlu0 %2228
        %2230 = vrot.lane.b32.xlu0 %v1999, 127
        %v2231 = vpop.permute.xlu0 %2230
        %2232 = vrot.lane.b32.xlu0 %v2001, 127
        %v2233 = vpop.permute.xlu0 %2232
        %2234 = vrot.lane.b32.xlu0 %v2004, 127
        %v2235 = vpop.permute.xlu0 %2234
        %2236 = vrot.lane.b32.xlu0 %v2006, 127
        %v2237 = vpop.permute.xlu0 %2236
        %2238 = vrot.lane.b32.xlu0 %v2009, 127
        %v2239 = vpop.permute.xlu0 %2238
        %2240 = vrot.lane.b32.xlu0 %v2011, 127
        %v2241 = vpop.permute.xlu0 %2240
        %v2250 = vcombine.low %v2227, %v2235
        %v2251 = vcombine.high %v2227, %v2235
        %v2253 = vunpack.c.l.s4 1983009808
        %v2254 = vunpack.c.0.s8 %v2253
        %v2255 = vlaneseq
        %v2256 = vshrl.u32 %v2255, 7
        %v2257 = vsub.s32 %v2254, %v2256
        %v2258 = vrot.slane %v2250, %v2257
        %v2260 = vunpack.c.l.s4 1983009808
        %v2261 = vunpack.c.0.s8 %v2260
        %v2262 = vlaneseq
        %v2263 = vshrl.u32 %v2262, 7
        %v2264 = vsub.s32 %v2261, %v2263
        %v2265 = vrot.slane %v2251, %v2264
        %v2266 = vcombine.low %v2231, %v2239
        %v2267 = vcombine.high %v2231, %v2239
        %v2269 = vunpack.c.l.s4 1983009808
        %v2270 = vunpack.c.0.s8 %v2269
        %v2271 = vlaneseq
        %v2272 = vshrl.u32 %v2271, 7
        %v2273 = vsub.s32 %v2270, %v2272
        %v2274 = vrot.slane %v2266, %v2273
        %v2276 = vunpack.c.l.s4 1983009808
        %v2277 = vunpack.c.0.s8 %v2276
        %v2278 = vlaneseq
        %v2279 = vshrl.u32 %v2278, 7
        %v2280 = vsub.s32 %v2277, %v2279
        %v2281 = vrot.slane %v2267, %v2280
        %v2282 = vcombine.low %v2258, %v2274
        %v2283 = vcombine.high %v2258, %v2274
        %v2285 = vunpack.c.l.s4 1934713408
        %v2286 = vunpack.c.0.s8 %v2285
        %v2287 = vlaneseq
        %v2288 = vshrl.u32 %v2287, 7
        %v2289 = vsub.s32 %v2286, %v2288
        %v2290 = vrot.slane %v2282, %v2289
        %v2292 = vunpack.c.l.s4 1934713408
        %v2293 = vunpack.c.0.s8 %v2292
        %v2294 = vlaneseq
        %v2295 = vshrl.u32 %v2294, 7
        %v2296 = vsub.s32 %v2293, %v2295
        %v2297 = vrot.slane %v2283, %v2296
        %v2298 = vcombine.low %v2265, %v2281
        %v2299 = vcombine.high %v2265, %v2281
        %v2301 = vunpack.c.l.s4 1934713408
        %v2302 = vunpack.c.0.s8 %v2301
        %v2303 = vlaneseq
        %v2304 = vshrl.u32 %v2303, 7
        %v2305 = vsub.s32 %v2302, %v2304
        %v2306 = vrot.slane %v2298, %v2305
        %v2308 = vunpack.c.l.s4 1934713408
        %v2309 = vunpack.c.0.s8 %v2308
        %v2310 = vlaneseq
        %v2311 = vshrl.u32 %v2310, 7
        %v2312 = vsub.s32 %v2309, %v2311
        %v2313 = vrot.slane %v2299, %v2312
        %v2314 = vcombine.high %v2290, 0.0
        %v2315 = vcombine.high %v2297, 0.0
        %v2316 = vcombine.high %v2306, 0.0
        %v2317 = vcombine.high %v2313, 0.0
        %v2318 = vcombine.low %v2229, %v2237
        %v2319 = vcombine.high %v2229, %v2237
        %v2321 = vunpack.c.l.s4 1983009808
        %v2322 = vunpack.c.0.s8 %v2321
        %v2323 = vlaneseq
        %v2324 = vshrl.u32 %v2323, 7
        %v2325 = vsub.s32 %v2322, %v2324
        %v2326 = vrot.slane %v2318, %v2325
        %v2328 = vunpack.c.l.s4 1983009808
        %v2329 = vunpack.c.0.s8 %v2328
        %v2330 = vlaneseq
        %v2331 = vshrl.u32 %v2330, 7
        %v2332 = vsub.s32 %v2329, %v2331
        %v2333 = vrot.slane %v2319, %v2332
        %v2334 = vcombine.low %v2233, %v2241
        %v2335 = vcombine.high %v2233, %v2241
        %v2337 = vunpack.c.l.s4 1983009808
        %v2338 = vunpack.c.0.s8 %v2337
        %v2339 = vlaneseq
        %v2340 = vshrl.u32 %v2339, 7
        %v2341 = vsub.s32 %v2338, %v2340
        %v2342 = vrot.slane %v2334, %v2341
        %v2344 = vunpack.c.l.s4 1983009808
        %v2345 = vunpack.c.0.s8 %v2344
        %v2346 = vlaneseq
        %v2347 = vshrl.u32 %v2346, 7
        %v2348 = vsub.s32 %v2345, %v2347
        %v2349 = vrot.slane %v2335, %v2348
        %v2350 = vcombine.low %v2326, %v2342
        %v2351 = vcombine.high %v2326, %v2342
        %v2353 = vunpack.c.l.s4 1934713408
        %v2354 = vunpack.c.0.s8 %v2353
        %v2355 = vlaneseq
        %v2356 = vshrl.u32 %v2355, 7
        %v2357 = vsub.s32 %v2354, %v2356
        %v2358 = vrot.slane %v2350, %v2357
        %v2360 = vunpack.c.l.s4 1934713408
        %v2361 = vunpack.c.0.s8 %v2360
        %v2362 = vlaneseq
        %v2363 = vshrl.u32 %v2362, 7
        %v2364 = vsub.s32 %v2361, %v2363
        %v2365 = vrot.slane %v2351, %v2364
        %v2366 = vcombine.low %v2333, %v2349
        %v2367 = vcombine.high %v2333, %v2349
        %v2369 = vunpack.c.l.s4 1934713408
        %v2370 = vunpack.c.0.s8 %v2369
        %v2371 = vlaneseq
        %v2372 = vshrl.u32 %v2371, 7
        %v2373 = vsub.s32 %v2370, %v2372
        %v2374 = vrot.slane %v2366, %v2373
        %v2376 = vunpack.c.l.s4 1934713408
        %v2377 = vunpack.c.0.s8 %v2376
        %v2378 = vlaneseq
        %v2379 = vshrl.u32 %v2378, 7
        %v2380 = vsub.s32 %v2377, %v2379
        %v2381 = vrot.slane %v2367, %v2380
        %v2382 = vcombine.high %v2358, 0.0
        %v2383 = vcombine.high %v2365, 0.0
        %v2384 = vcombine.high %v2374, 0.0
        %v2385 = vcombine.high %v2381, 0.0
        %2387 = vrot.lane.b32.xlu0 %v2314, 16
        %v2388 = vpop.permute.xlu0 %2387
        %2391 = vrot.lane.b32.xlu0 %v2297, 32
        %v2392 = vpop.permute.xlu0 %2391
        %2395 = vrot.lane.b32.xlu0 %v2315, 48
        %v2396 = vpop.permute.xlu0 %2395
        %2399 = vrot.lane.b32.xlu0 %v2306, 64
        %v2400 = vpop.permute.xlu0 %2399
        %2403 = vrot.lane.b32.xlu0 %v2316, 80
        %v2404 = vpop.permute.xlu0 %2403
        %2407 = vrot.lane.b32.xlu0 %v2313, 96
        %v2408 = vpop.permute.xlu0 %2407
        %2411 = vrot.lane.b32.xlu0 %v2317, 112
        %v2412 = vpop.permute.xlu0 %2411
        %2415 = vrot.lane.b32.xlu0 %v2382, 16
        %v2416 = vpop.permute.xlu0 %2415
        %2419 = vrot.lane.b32.xlu0 %v2365, 32
        %v2420 = vpop.permute.xlu0 %2419
        %2423 = vrot.lane.b32.xlu0 %v2383, 48
        %v2424 = vpop.permute.xlu0 %2423
        %2427 = vrot.lane.b32.xlu0 %v2374, 64
        %v2428 = vpop.permute.xlu0 %2427
        %2431 = vrot.lane.b32.xlu0 %v2384, 80
        %v2432 = vpop.permute.xlu0 %2431
        %2435 = vrot.lane.b32.xlu0 %v2381, 96
        %v2436 = vpop.permute.xlu0 %2435
        %2439 = vrot.lane.b32.xlu0 %v2385, 112
        %v2440 = vpop.permute.xlu0 %2439
        %v2442 = vsel %vm803, %v2290, %v2388
        %v2443 = vsel %vm805, %v2442, %v2392
        %v2444 = vsel %vm807, %v2443, %v2396
        %v2445 = vsel %vm809, %v2444, %v2400
        %v2446 = vsel %vm811, %v2445, %v2404
        %v2447 = vsel %vm813, %v2446, %v2408
        %v2448 = vsel %vm815, %v2447, %v2412
        %v2449 = vsel %vm803, %v2358, %v2416
        %v2450 = vsel %vm805, %v2449, %v2420
        %v2451 = vsel %vm807, %v2450, %v2424
        %v2452 = vsel %vm809, %v2451, %v2428
        %v2453 = vsel %vm811, %v2452, %v2432
        %v2454 = vsel %vm813, %v2453, %v2436
        %v2455 = vsel %vm815, %v2454, %v2440
        %2456 = vrot.lane.b32.xlu0 %v1994, 126
        %v2457 = vpop.permute.xlu0 %2456
        %2458 = vrot.lane.b32.xlu0 %v1996, 126
        %v2459 = vpop.permute.xlu0 %2458
        %2460 = vrot.lane.b32.xlu0 %v1999, 126
        %v2461 = vpop.permute.xlu0 %2460
        %2462 = vrot.lane.b32.xlu0 %v2001, 126
        %v2463 = vpop.permute.xlu0 %2462
        %2464 = vrot.lane.b32.xlu0 %v2004, 126
        %v2465 = vpop.permute.xlu0 %2464
        %2466 = vrot.lane.b32.xlu0 %v2006, 126
        %v2467 = vpop.permute.xlu0 %2466
        %2468 = vrot.lane.b32.xlu0 %v2009, 126
        %v2469 = vpop.permute.xlu0 %2468
        %2470 = vrot.lane.b32.xlu0 %v2011, 126
        %v2471 = vpop.permute.xlu0 %2470
        %v2480 = vcombine.low %v2457, %v2465
        %v2481 = vcombine.high %v2457, %v2465
        %v2483 = vunpack.c.l.s4 1983009808
        %v2484 = vunpack.c.0.s8 %v2483
        %v2485 = vlaneseq
        %v2486 = vshrl.u32 %v2485, 7
        %v2487 = vsub.s32 %v2484, %v2486
        %v2488 = vrot.slane %v2480, %v2487
        %v2490 = vunpack.c.l.s4 1983009808
        %v2491 = vunpack.c.0.s8 %v2490
        %v2492 = vlaneseq
        %v2493 = vshrl.u32 %v2492, 7
        %v2494 = vsub.s32 %v2491, %v2493
        %v2495 = vrot.slane %v2481, %v2494
        %v2496 = vcombine.low %v2461, %v2469
        %v2497 = vcombine.high %v2461, %v2469
        %v2499 = vunpack.c.l.s4 1983009808
        %v2500 = vunpack.c.0.s8 %v2499
        %v2501 = vlaneseq
        %v2502 = vshrl.u32 %v2501, 7
        %v2503 = vsub.s32 %v2500, %v2502
        %v2504 = vrot.slane %v2496, %v2503
        %v2506 = vunpack.c.l.s4 1983009808
        %v2507 = vunpack.c.0.s8 %v2506
        %v2508 = vlaneseq
        %v2509 = vshrl.u32 %v2508, 7
        %v2510 = vsub.s32 %v2507, %v2509
        %v2511 = vrot.slane %v2497, %v2510
        %v2512 = vcombine.low %v2488, %v2504
        %v2513 = vcombine.high %v2488, %v2504
        %v2515 = vunpack.c.l.s4 1934713408
        %v2516 = vunpack.c.0.s8 %v2515
        %v2517 = vlaneseq
        %v2518 = vshrl.u32 %v2517, 7
        %v2519 = vsub.s32 %v2516, %v2518
        %v2520 = vrot.slane %v2512, %v2519
        %v2522 = vunpack.c.l.s4 1934713408
        %v2523 = vunpack.c.0.s8 %v2522
        %v2524 = vlaneseq
        %v2525 = vshrl.u32 %v2524, 7
        %v2526 = vsub.s32 %v2523, %v2525
        %v2527 = vrot.slane %v2513, %v2526
        %v2528 = vcombine.low %v2495, %v2511
        %v2529 = vcombine.high %v2495, %v2511
        %v2531 = vunpack.c.l.s4 1934713408
        %v2532 = vunpack.c.0.s8 %v2531
        %v2533 = vlaneseq
        %v2534 = vshrl.u32 %v2533, 7
        %v2535 = vsub.s32 %v2532, %v2534
        %v2536 = vrot.slane %v2528, %v2535
        %v2538 = vunpack.c.l.s4 1934713408
        %v2539 = vunpack.c.0.s8 %v2538
        %v2540 = vlaneseq
        %v2541 = vshrl.u32 %v2540, 7
        %v2542 = vsub.s32 %v2539, %v2541
        %v2543 = vrot.slane %v2529, %v2542
        %v2544 = vcombine.high %v2520, 0.0
        %v2545 = vcombine.high %v2527, 0.0
        %v2546 = vcombine.high %v2536, 0.0
        %v2547 = vcombine.high %v2543, 0.0
        %v2548 = vcombine.low %v2459, %v2467
        %v2549 = vcombine.high %v2459, %v2467
        %v2551 = vunpack.c.l.s4 1983009808
        %v2552 = vunpack.c.0.s8 %v2551
        %v2553 = vlaneseq
        %v2554 = vshrl.u32 %v2553, 7
        %v2555 = vsub.s32 %v2552, %v2554
        %v2556 = vrot.slane %v2548, %v2555
        %v2558 = vunpack.c.l.s4 1983009808
        %v2559 = vunpack.c.0.s8 %v2558
        %v2560 = vlaneseq
        %v2561 = vshrl.u32 %v2560, 7
        %v2562 = vsub.s32 %v2559, %v2561
        %v2563 = vrot.slane %v2549, %v2562
        %v2564 = vcombine.low %v2463, %v2471
        %v2565 = vcombine.high %v2463, %v2471
        %v2567 = vunpack.c.l.s4 1983009808
        %v2568 = vunpack.c.0.s8 %v2567
        %v2569 = vlaneseq
        %v2570 = vshrl.u32 %v2569, 7
        %v2571 = vsub.s32 %v2568, %v2570
        %v2572 = vrot.slane %v2564, %v2571
        %v2574 = vunpack.c.l.s4 1983009808
        %v2575 = vunpack.c.0.s8 %v2574
        %v2576 = vlaneseq
        %v2577 = vshrl.u32 %v2576, 7
        %v2578 = vsub.s32 %v2575, %v2577
        %v2579 = vrot.slane %v2565, %v2578
        %v2580 = vcombine.low %v2556, %v2572
        %v2581 = vcombine.high %v2556, %v2572
        %v2583 = vunpack.c.l.s4 1934713408
        %v2584 = vunpack.c.0.s8 %v2583
        %v2585 = vlaneseq
        %v2586 = vshrl.u32 %v2585, 7
        %v2587 = vsub.s32 %v2584, %v2586
        %v2588 = vrot.slane %v2580, %v2587
        %v2590 = vunpack.c.l.s4 1934713408
        %v2591 = vunpack.c.0.s8 %v2590
        %v2592 = vlaneseq
        %v2593 = vshrl.u32 %v2592, 7
        %v2594 = vsub.s32 %v2591, %v2593
        %v2595 = vrot.slane %v2581, %v2594
        %v2596 = vcombine.low %v2563, %v2579
        %v2597 = vcombine.high %v2563, %v2579
        %v2599 = vunpack.c.l.s4 1934713408
        %v2600 = vunpack.c.0.s8 %v2599
        %v2601 = vlaneseq
        %v2602 = vshrl.u32 %v2601, 7
        %v2603 = vsub.s32 %v2600, %v2602
        %v2604 = vrot.slane %v2596, %v2603
        %v2606 = vunpack.c.l.s4 1934713408
        %v2607 = vunpack.c.0.s8 %v2606
        %v2608 = vlaneseq
        %v2609 = vshrl.u32 %v2608, 7
        %v2610 = vsub.s32 %v2607, %v2609
        %v2611 = vrot.slane %v2597, %v2610
        %v2612 = vcombine.high %v2588, 0.0
        %v2613 = vcombine.high %v2595, 0.0
        %v2614 = vcombine.high %v2604, 0.0
        %v2615 = vcombine.high %v2611, 0.0
        %2617 = vrot.lane.b32.xlu0 %v2544, 16
        %v2618 = vpop.permute.xlu0 %2617
        %2621 = vrot.lane.b32.xlu0 %v2527, 32
        %v2622 = vpop.permute.xlu0 %2621
        %2625 = vrot.lane.b32.xlu0 %v2545, 48
        %v2626 = vpop.permute.xlu0 %2625
        %2629 = vrot.lane.b32.xlu0 %v2536, 64
        %v2630 = vpop.permute.xlu0 %2629
        %2633 = vrot.lane.b32.xlu0 %v2546, 80
        %v2634 = vpop.permute.xlu0 %2633
        %2637 = vrot.lane.b32.xlu0 %v2543, 96
        %v2638 = vpop.permute.xlu0 %2637
        %2641 = vrot.lane.b32.xlu0 %v2547, 112
        %v2642 = vpop.permute.xlu0 %2641
        %2645 = vrot.lane.b32.xlu0 %v2612, 16
        %v2646 = vpop.permute.xlu0 %2645
        %2649 = vrot.lane.b32.xlu0 %v2595, 32
        %v2650 = vpop.permute.xlu0 %2649
        %2653 = vrot.lane.b32.xlu0 %v2613, 48
        %v2654 = vpop.permute.xlu0 %2653
        %2657 = vrot.lane.b32.xlu0 %v2604, 64
        %v2658 = vpop.permute.xlu0 %2657
        %2661 = vrot.lane.b32.xlu0 %v2614, 80
        %v2662 = vpop.permute.xlu0 %2661
        %2665 = vrot.lane.b32.xlu0 %v2611, 96
        %v2666 = vpop.permute.xlu0 %2665
        %2669 = vrot.lane.b32.xlu0 %v2615, 112
        %v2670 = vpop.permute.xlu0 %2669
        %v2672 = vsel %vm803, %v2520, %v2618
        %v2673 = vsel %vm805, %v2672, %v2622
        %v2674 = vsel %vm807, %v2673, %v2626
        %v2675 = vsel %vm809, %v2674, %v2630
        %v2676 = vsel %vm811, %v2675, %v2634
        %v2677 = vsel %vm813, %v2676, %v2638
        %v2678 = vsel %vm815, %v2677, %v2642
        %v2679 = vsel %vm803, %v2588, %v2646
        %v2680 = vsel %vm805, %v2679, %v2650
        %v2681 = vsel %vm807, %v2680, %v2654
        %v2682 = vsel %vm809, %v2681, %v2658
        %v2683 = vsel %vm811, %v2682, %v2662
        %v2684 = vsel %vm813, %v2683, %v2666
        %v2685 = vsel %vm815, %v2684, %v2670
        %v2688 = vrot.slane %v1054, 4
        %v2689 = vrot.slane %v1061, 4
        %v2694 = vrot.slane %v1523, 4
        %v2695 = vrot.slane %v1530, 4
        %v2700 = vrot.slane %v1983, 4
        %v2701 = vrot.slane %v1990, 4
        %v2706 = vrot.slane %v2448, 4
        %v2707 = vrot.slane %v2455, 4
        %vm2710 = vcmask 1043456
        %v2711 = vsel %vm2710, %v816, %v2688
        %v2712 = vsel %vm2710, %v823, %v2689
        %v2713 = vsel %vm2710, %v1284, %v2694
        %v2714 = vsel %vm2710, %v1291, %v2695
        %v2715 = vsel %vm2710, %v1753, %v2700
        %v2716 = vsel %vm2710, %v1760, %v2701
        %v2717 = vsel %vm2710, %v2218, %v2706
        %v2718 = vsel %vm2710, %v2225, %v2707
        %vm2719 = vcmask 293888
        %v2721 = vsel %vm2719, %v201, 0
        %v2724 = vsel %vm2710, %v2678, 0
        %v2727 = vsel %vm2710, %v2685, 0
        %2729 = vmatprep.subr.mxu0 %v2712
        %2730 = vmatpush1.msra.mxu0 %v2711
        %2731 = vmatprep.subr.mxu0 %v2714
        %2732 = vmatpush1.msra.mxu0 %v2713
        %2733 = vmatprep.subr.mxu0 %v2716
        %2734 = vmatpush1.msra.mxu0 %v2715
        %2735 = vmatprep.subr.mxu0 %v2718
        %2736 = vmatpush1.msra.mxu0 %v2717
        %2737 = vmatprep.subr.mxu0 %v2727
        %2738 = vmatpush1.msra.mxu0 %v2724
        %2739 = vmatprep.subr.mxu0 0.0
        %2740 = vmatpush1.msra.mxu0 0.0
        %2741 = vmatprep.subr.mxu0 0.0
        %2742 = vmatpush1.msra.mxu0 0.0
        %2743 = vmatprep.subr.mxu0 0.0
        %2744 = vmatpush1.msra.mxu0 0.0
        %2745 = vmatprep.subr.mxu0 0.0
        %2746 = vmatpush1.msra.mxu0 0.0
        %2747 = vmatprep.subr.mxu0 0.0
        %2748 = vmatpush1.msra.mxu0 0.0
        %2749 = vmatprep.subr.mxu0 0.0
        %2750 = vmatpush1.msra.mxu0 0.0
        %2751 = vmatprep.subr.mxu0 0.0
        %2752 = vmatpush1.msra.mxu0 0.0
        %2753 = vmatprep.subr.mxu0 0.0
        %2754 = vmatpush1.msra.mxu0 0.0
        %2755 = vmatprep.subr.mxu0 0.0
        %2756 = vmatpush1.msra.mxu0 0.0
        %2757 = vmatprep.subr.mxu0 0.0
        %2758 = vmatpush1.msra.mxu0 0.0
        %2759 = vmatprep.subr.mxu0 0.0
        %2760 = vmatpush1.msra.mxu0 0.0
        %2761 = vmatprep.subr.mxu0 0.0
        %2762 = vmatpush1.msra.mxu0 0.0
        %2763 = vmatprep.subr.mxu0 0.0
        %2764 = vmatpush1.msra.mxu0 0.0
        %2765 = vmatprep.subr.mxu0 0.0
        %2766 = vmatpush1.msra.mxu0 0.0
        %2767 = vmatprep.subr.mxu0 0.0
        %2768 = vmatpush1.msra.mxu0 0.0
        %2769 = vmatprep.subr.mxu0 0.0
        %2770 = vmatpush1.msra.mxu0 0.0
        %2771 = vmatprep.subr.mxu0 0.0
        %2772 = vmatpush1.msra.mxu0 0.0
        %2773 = vmatprep.subr.mxu0 0.0
        %2774 = vmatpush1.msra.mxu0 0.0
        %2775 = vmatprep.subr.mxu0 0.0
        %2776 = vmatpush1.msra.mxu0 0.0
        %2777 = vmatprep.subr.mxu0 0.0
        %2778 = vmatpush1.msra.mxu0 0.0
        %2779 = vmatprep.subr.mxu0 0.0
        %2780 = vmatpush1.msra.mxu0 0.0
        %2781 = vmatprep.subr.mxu0 0.0
        %2782 = vmatpush1.msra.mxu0 0.0
        %2783 = vmatprep.subr.mxu0 0.0
        %2784 = vmatpush1.msra.mxu0 0.0
        %2785 = vmatprep.subr.mxu0 0.0
        %2786 = vmatpush1.msra.mxu0 0.0
        %2787 = vmatprep.subr.mxu0 0.0
        %2788 = vmatpush1.msra.mxu0 0.0
        %2789 = vmatprep.subr.mxu0 0.0
        %2790 = vmatpush1.msra.mxu0 0.0
        %2791 = vmatprep.subr.mxu0 0.0
        %2792 = vmatpush1.msra.mxu0 0.0
        %2793 = vmatprep.mubr.f32.mxu0 0.0
        %2794 = vmatmul.mubr.f32.gmra.mrb[0].mxu0 %v2721
        %v2795 = vpop.f32.mrb[0].mxu0
        %v2796 = vadd.f32 0.0, %v2795
        %v2797 = vpop.f32.mrb[0].mxu0
        %v2798 = vadd.f32 0.0, %v2797
        %2799 = vdwg.mxu0
        %v2800 = vsel %vm2710, %v2796, 0.0
        %v2801 = vsel %vm2710, %v2798, 0.0
        %v2802 = vadd.f32 %v2800, %v2801
        %2803 = vadd.xlane.f32.xlu0 %v2802
        %v2804 = vpop.xlane.xlu0 %2803
        %v2805 = vmul.f32 %v2796, %v2796
        %v2806 = vmul.f32 %v2798, %v2798
        %v2807 = vsel %vm2710, %v2805, 0.0
        %v2808 = vsel %vm2710, %v2806, 0.0
        %v2809 = vadd.f32 %v2807, %v2808
        %2810 = vadd.xlane.f32.xlu0 %v2809
        %v2811 = vpop.xlane.xlu0 %2810
        %v2812 = vmul.f32 %v2804, 0.00390625
        %v2813 = vmul.f32 %v2811, 0.00390625
        %v2814 = vmul.f32 %v2812, %v2812
        %v2815 = vsub.f32 %v2813, %v2814
        %v2816 = vmax.f32 %v2815, 0.0
        %v2817 = vsub.f32 %v2796, %v2812
        %v2818 = vsub.f32 %v2798, %v2812
        %v2819 = vadd.f32 %v2816, 1e-05
        %v2820 = vrsqrt.pop %v2819
        %v2821 = vmul.f32 %v2817, %v2820
        %v2822 = vmul.f32 %v2818, %v2820
        %v2823 = vmax.f32 %v2821, 0.0
        %v2824 = vmax.f32 %v2822, 0.0
        %v2825 = vld [vmem:[%s2] sm:$0xf]
        %2827 = vrot.lane.b32.xlu0 %v2823, 112
        %v2828 = vpop.permute.xlu0 %2827
        %2830 = vrot.lane.b32.xlu0 %v2823, 96
        %v2831 = vpop.permute.xlu0 %2830
        %2833 = vrot.lane.b32.xlu0 %v2823, 80
        %v2834 = vpop.permute.xlu0 %2833
        %2836 = vrot.lane.b32.xlu0 %v2823, 64
        %v2837 = vpop.permute.xlu0 %2836
        %2839 = vrot.lane.b32.xlu0 %v2823, 48
        %v2840 = vpop.permute.xlu0 %2839
        %2842 = vrot.lane.b32.xlu0 %v2823, 32
        %v2843 = vpop.permute.xlu0 %2842
        %2845 = vrot.lane.b32.xlu0 %v2823, 16
        %v2846 = vpop.permute.xlu0 %2845
        %2849 = vrot.lane.b32.xlu0 %v2824, 112
        %v2850 = vpop.permute.xlu0 %2849
        %2852 = vrot.lane.b32.xlu0 %v2824, 96
        %v2853 = vpop.permute.xlu0 %2852
        %2855 = vrot.lane.b32.xlu0 %v2824, 80
        %v2856 = vpop.permute.xlu0 %2855
        %2858 = vrot.lane.b32.xlu0 %v2824, 64
        %v2859 = vpop.permute.xlu0 %2858
        %2861 = vrot.lane.b32.xlu0 %v2824, 48
        %v2862 = vpop.permute.xlu0 %2861
        %2864 = vrot.lane.b32.xlu0 %v2824, 32
        %v2865 = vpop.permute.xlu0 %2864
        %2867 = vrot.lane.b32.xlu0 %v2824, 16
        %v2868 = vpop.permute.xlu0 %2867
        %v2870 = vcombine.low %v2823, %v2831
        %v2872 = vunpack.c.l.s4 1983009808
        %v2873 = vunpack.c.0.s8 %v2872
        %v2874 = vlaneseq
        %v2875 = vshrl.u32 %v2874, 7
        %v2876 = vsub.s32 %v2873, %v2875
        %v2877 = vrot.slane %v2870, %v2876
        %v2878 = vcombine.low %v2828, %v2834
        %v2880 = vunpack.c.l.s4 1983009808
        %v2881 = vunpack.c.0.s8 %v2880
        %v2882 = vlaneseq
        %v2883 = vshrl.u32 %v2882, 7
        %v2884 = vsub.s32 %v2881, %v2883
        %v2885 = vrot.slane %v2878, %v2884
        %v2886 = vcombine.low %v2837, %v2843
        %v2888 = vunpack.c.l.s4 1983009808
        %v2889 = vunpack.c.0.s8 %v2888
        %v2890 = vlaneseq
        %v2891 = vshrl.u32 %v2890, 7
        %v2892 = vsub.s32 %v2889, %v2891
        %v2893 = vrot.slane %v2886, %v2892
        %v2894 = vcombine.low %v2840, %v2846
        %v2896 = vunpack.c.l.s4 1983009808
        %v2897 = vunpack.c.0.s8 %v2896
        %v2898 = vlaneseq
        %v2899 = vshrl.u32 %v2898, 7
        %v2900 = vsub.s32 %v2897, %v2899
        %v2901 = vrot.slane %v2894, %v2900
        %v2902 = vcombine.low %v2877, %v2885
        %v2903 = vcombine.high %v2877, %v2885
        %v2905 = vunpack.c.l.s4 1934713408
        %v2906 = vunpack.c.0.s8 %v2905
        %v2907 = vlaneseq
        %v2908 = vshrl.u32 %v2907, 7
        %v2909 = vsub.s32 %v2906, %v2908
        %v2910 = vrot.slane %v2902, %v2909
        %v2912 = vunpack.c.l.s4 1934713408
        %v2913 = vunpack.c.0.s8 %v2912
        %v2914 = vlaneseq
        %v2915 = vshrl.u32 %v2914, 7
        %v2916 = vsub.s32 %v2913, %v2915
        %v2917 = vrot.slane %v2903, %v2916
        %v2918 = vcombine.low %v2893, %v2901
        %v2919 = vcombine.high %v2893, %v2901
        %v2921 = vunpack.c.l.s4 1934713408
        %v2922 = vunpack.c.0.s8 %v2921
        %v2923 = vlaneseq
        %v2924 = vshrl.u32 %v2923, 7
        %v2925 = vsub.s32 %v2922, %v2924
        %v2926 = vrot.slane %v2918, %v2925
        %v2928 = vunpack.c.l.s4 1934713408
        %v2929 = vunpack.c.0.s8 %v2928
        %v2930 = vlaneseq
        %v2931 = vshrl.u32 %v2930, 7
        %v2932 = vsub.s32 %v2929, %v2931
        %v2933 = vrot.slane %v2919, %v2932
        %v2934 = vcombine.low %v2910, %v2926
        %v2935 = vcombine.high %v2910, %v2926
        %v2936 = vcombine.low %v2917, %v2933
        %v2937 = vcombine.high %v2917, %v2933
        %v2938 = vcombine.low %v2824, %v2853
        %v2940 = vunpack.c.l.s4 1983009808
        %v2941 = vunpack.c.0.s8 %v2940
        %v2942 = vlaneseq
        %v2943 = vshrl.u32 %v2942, 7
        %v2944 = vsub.s32 %v2941, %v2943
        %v2945 = vrot.slane %v2938, %v2944
        %v2946 = vcombine.low %v2850, %v2856
        %v2948 = vunpack.c.l.s4 1983009808
        %v2949 = vunpack.c.0.s8 %v2948
        %v2950 = vlaneseq
        %v2951 = vshrl.u32 %v2950, 7
        %v2952 = vsub.s32 %v2949, %v2951
        %v2953 = vrot.slane %v2946, %v2952
        %v2954 = vcombine.low %v2859, %v2865
        %v2956 = vunpack.c.l.s4 1983009808
        %v2957 = vunpack.c.0.s8 %v2956
        %v2958 = vlaneseq
        %v2959 = vshrl.u32 %v2958, 7
        %v2960 = vsub.s32 %v2957, %v2959
        %v2961 = vrot.slane %v2954, %v2960
        %v2962 = vcombine.low %v2862, %v2868
        %v2964 = vunpack.c.l.s4 1983009808
        %v2965 = vunpack.c.0.s8 %v2964
        %v2966 = vlaneseq
        %v2967 = vshrl.u32 %v2966, 7
        %v2968 = vsub.s32 %v2965, %v2967
        %v2969 = vrot.slane %v2962, %v2968
        %v2970 = vcombine.low %v2945, %v2953
        %v2971 = vcombine.high %v2945, %v2953
        %v2973 = vunpack.c.l.s4 1934713408
        %v2974 = vunpack.c.0.s8 %v2973
        %v2975 = vlaneseq
        %v2976 = vshrl.u32 %v2975, 7
        %v2977 = vsub.s32 %v2974, %v2976
        %v2978 = vrot.slane %v2970, %v2977
        %v2980 = vunpack.c.l.s4 1934713408
        %v2981 = vunpack.c.0.s8 %v2980
        %v2982 = vlaneseq
        %v2983 = vshrl.u32 %v2982, 7
        %v2984 = vsub.s32 %v2981, %v2983
        %v2985 = vrot.slane %v2971, %v2984
        %v2986 = vcombine.low %v2961, %v2969
        %v2987 = vcombine.high %v2961, %v2969
        %v2989 = vunpack.c.l.s4 1934713408
        %v2990 = vunpack.c.0.s8 %v2989
        %v2991 = vlaneseq
        %v2992 = vshrl.u32 %v2991, 7
        %v2993 = vsub.s32 %v2990, %v2992
        %v2994 = vrot.slane %v2986, %v2993
        %v2996 = vunpack.c.l.s4 1934713408
        %v2997 = vunpack.c.0.s8 %v2996
        %v2998 = vlaneseq
        %v2999 = vshrl.u32 %v2998, 7
        %v3000 = vsub.s32 %v2997, %v2999
        %v3001 = vrot.slane %v2987, %v3000
        %v3002 = vcombine.low %v2978, %v2994
        %v3003 = vcombine.high %v2978, %v2994
        %v3004 = vcombine.low %v2985, %v3001
        %v3005 = vcombine.high %v2985, %v3001
        %v3010 = vrot.slane %v2934, 1
        %v3011 = vrot.slane %v2935, 1
        %v3012 = vrot.slane %v2936, 1
        %v3013 = vrot.slane %v2937, 1
        %v3022 = vrot.slane %v2934, 7
        %v3023 = vrot.slane %v3002, 7
        %v3024 = vsel %vm420, %v3022, %v3023
        %v3025 = vrot.slane %v2935, 7
        %v3026 = vrot.slane %v3003, 7
        %v3027 = vsel %vm420, %v3025, %v3026
        %v3028 = vrot.slane %v2936, 7
        %v3029 = vrot.slane %v3004, 7
        %v3030 = vsel %vm420, %v3028, %v3029
        %v3031 = vrot.slane %v2937, 7
        %v3032 = vrot.slane %v3005, 7
        %v3033 = vsel %vm420, %v3031, %v3032
        %v3042 = vrot.slane %v3002, 5
        %v3043 = vrot.slane %v3003, 5
        %v3044 = vrot.slane %v3004, 5
        %v3045 = vrot.slane %v3005, 5
        %v3050 = vsel %vm420, %v3010, %v3022
        %v3051 = vsel %vm420, %v3011, %v3025
        %v3052 = vsel %vm420, %v3012, %v3028
        %v3053 = vsel %vm420, %v3013, %v3031
        %v3054 = vsel %vm420, %v3023, %v3042
        %v3055 = vsel %vm420, %v3026, %v3043
        %v3056 = vsel %vm420, %v3029, %v3044
        %v3057 = vsel %vm420, %v3032, %v3045
        %3066 = vrot.lane.b32.xlu0 %v3050, 127
        %v3067 = vpop.permute.xlu0 %3066
        %3068 = vrot.lane.b32.xlu0 %v3024, 127
        %v3069 = vpop.permute.xlu0 %3068
        %3070 = vrot.lane.b32.xlu0 %v3054, 127
        %v3071 = vpop.permute.xlu0 %3070
        %3072 = vrot.lane.b32.xlu0 %v3051, 127
        %v3073 = vpop.permute.xlu0 %3072
        %3074 = vrot.lane.b32.xlu0 %v3027, 127
        %v3075 = vpop.permute.xlu0 %3074
        %3076 = vrot.lane.b32.xlu0 %v3055, 127
        %v3077 = vpop.permute.xlu0 %3076
        %3078 = vrot.lane.b32.xlu0 %v3052, 127
        %v3079 = vpop.permute.xlu0 %3078
        %3080 = vrot.lane.b32.xlu0 %v3030, 127
        %v3081 = vpop.permute.xlu0 %3080
        %3082 = vrot.lane.b32.xlu0 %v3056, 127
        %v3083 = vpop.permute.xlu0 %3082
        %3084 = vrot.lane.b32.xlu0 %v3053, 127
        %v3085 = vpop.permute.xlu0 %3084
        %3086 = vrot.lane.b32.xlu0 %v3033, 127
        %v3087 = vpop.permute.xlu0 %3086
        %3088 = vrot.lane.b32.xlu0 %v3057, 127
        %v3089 = vpop.permute.xlu0 %3088
        %3102 = vrot.lane.b32.xlu0 %v3050, 1
        %v3103 = vpop.permute.xlu0 %3102
        %3104 = vrot.lane.b32.xlu0 %v3024, 1
        %v3105 = vpop.permute.xlu0 %3104
        %3106 = vrot.lane.b32.xlu0 %v3054, 1
        %v3107 = vpop.permute.xlu0 %3106
        %3108 = vrot.lane.b32.xlu0 %v3051, 1
        %v3109 = vpop.permute.xlu0 %3108
        %3110 = vrot.lane.b32.xlu0 %v3027, 1
        %v3111 = vpop.permute.xlu0 %3110
        %3112 = vrot.lane.b32.xlu0 %v3055, 1
        %v3113 = vpop.permute.xlu0 %3112
        %3114 = vrot.lane.b32.xlu0 %v3052, 1
        %v3115 = vpop.permute.xlu0 %3114
        %3116 = vrot.lane.b32.xlu0 %v3030, 1
        %v3117 = vpop.permute.xlu0 %3116
        %3118 = vrot.lane.b32.xlu0 %v3056, 1
        %v3119 = vpop.permute.xlu0 %3118
        %3120 = vrot.lane.b32.xlu0 %v3053, 1
        %v3121 = vpop.permute.xlu0 %3120
        %3122 = vrot.lane.b32.xlu0 %v3033, 1
        %v3123 = vpop.permute.xlu0 %3122
        %3124 = vrot.lane.b32.xlu0 %v3057, 1
        %v3125 = vpop.permute.xlu0 %3124
        %3138 = vrot.lane.b32.xlu0 %v3050, 3
        %v3139 = vpop.permute.xlu0 %3138
        %3140 = vrot.lane.b32.xlu0 %v3024, 3
        %v3141 = vpop.permute.xlu0 %3140
        %3142 = vrot.lane.b32.xlu0 %v3054, 3
        %v3143 = vpop.permute.xlu0 %3142
        %3144 = vrot.lane.b32.xlu0 %v3051, 3
        %v3145 = vpop.permute.xlu0 %3144
        %3146 = vrot.lane.b32.xlu0 %v3027, 3
        %v3147 = vpop.permute.xlu0 %3146
        %3148 = vrot.lane.b32.xlu0 %v3055, 3
        %v3149 = vpop.permute.xlu0 %3148
        %3150 = vrot.lane.b32.xlu0 %v3052, 3
        %v3151 = vpop.permute.xlu0 %3150
        %3152 = vrot.lane.b32.xlu0 %v3030, 3
        %v3153 = vpop.permute.xlu0 %3152
        %3154 = vrot.lane.b32.xlu0 %v3056, 3
        %v3155 = vpop.permute.xlu0 %3154
        %3156 = vrot.lane.b32.xlu0 %v3053, 3
        %v3157 = vpop.permute.xlu0 %3156
        %3158 = vrot.lane.b32.xlu0 %v3033, 3
        %v3159 = vpop.permute.xlu0 %3158
        %3160 = vrot.lane.b32.xlu0 %v3057, 3
        %v3161 = vpop.permute.xlu0 %3160
        %v3174 = vsel %vm585, %v3067, %v3103
        %v3175 = vsel %vm585, %v3069, %v3105
        %v3176 = vsel %vm585, %v3071, %v3107
        %v3177 = vsel %vm585, %v3073, %v3109
        %v3178 = vsel %vm585, %v3075, %v3111
        %v3179 = vsel %vm585, %v3077, %v3113
        %v3180 = vsel %vm585, %v3079, %v3115
        %v3181 = vsel %vm585, %v3081, %v3117
        %v3182 = vsel %vm585, %v3083, %v3119
        %v3183 = vsel %vm585, %v3085, %v3121
        %v3184 = vsel %vm585, %v3087, %v3123
        %v3185 = vsel %vm585, %v3089, %v3125
        %v3186 = vsel %vm598, %v3174, %v3139
        %v3187 = vsel %vm598, %v3175, %v3141
        %v3188 = vsel %vm598, %v3176, %v3143
        %v3189 = vsel %vm598, %v3177, %v3145
        %v3190 = vsel %vm598, %v3178, %v3147
        %v3191 = vsel %vm598, %v3179, %v3149
        %v3192 = vsel %vm598, %v3180, %v3151
        %v3193 = vsel %vm598, %v3181, %v3153
        %v3194 = vsel %vm598, %v3182, %v3155
        %v3195 = vsel %vm598, %v3183, %v3157
        %v3196 = vsel %vm598, %v3184, %v3159
        %v3197 = vsel %vm598, %v3185, %v3161
        %v3198 = vcombine.low %v3186, %v3192
        %v3199 = vcombine.high %v3186, %v3192
        %v3201 = vunpack.c.l.s4 1983009808
        %v3202 = vunpack.c.0.s8 %v3201
        %v3203 = vlaneseq
        %v3204 = vshrl.u32 %v3203, 7
        %v3205 = vsub.s32 %v3202, %v3204
        %v3206 = vrot.slane %v3198, %v3205
        %v3208 = vunpack.c.l.s4 1983009808
        %v3209 = vunpack.c.0.s8 %v3208
        %v3210 = vlaneseq
        %v3211 = vshrl.u32 %v3210, 7
        %v3212 = vsub.s32 %v3209, %v3211
        %v3213 = vrot.slane %v3199, %v3212
        %v3214 = vcombine.low %v3189, %v3195
        %v3215 = vcombine.high %v3189, %v3195
        %v3217 = vunpack.c.l.s4 1983009808
        %v3218 = vunpack.c.0.s8 %v3217
        %v3219 = vlaneseq
        %v3220 = vshrl.u32 %v3219, 7
        %v3221 = vsub.s32 %v3218, %v3220
        %v3222 = vrot.slane %v3214, %v3221
        %v3224 = vunpack.c.l.s4 1983009808
        %v3225 = vunpack.c.0.s8 %v3224
        %v3226 = vlaneseq
        %v3227 = vshrl.u32 %v3226, 7
        %v3228 = vsub.s32 %v3225, %v3227
        %v3229 = vrot.slane %v3215, %v3228
        %v3230 = vcombine.low %v3206, %v3222
        %v3231 = vcombine.high %v3206, %v3222
        %v3233 = vunpack.c.l.s4 1934713408
        %v3234 = vunpack.c.0.s8 %v3233
        %v3235 = vlaneseq
        %v3236 = vshrl.u32 %v3235, 7
        %v3237 = vsub.s32 %v3234, %v3236
        %v3238 = vrot.slane %v3230, %v3237
        %v3240 = vunpack.c.l.s4 1934713408
        %v3241 = vunpack.c.0.s8 %v3240
        %v3242 = vlaneseq
        %v3243 = vshrl.u32 %v3242, 7
        %v3244 = vsub.s32 %v3241, %v3243
        %v3245 = vrot.slane %v3231, %v3244
        %v3246 = vcombine.low %v3213, %v3229
        %v3247 = vcombine.high %v3213, %v3229
        %v3249 = vunpack.c.l.s4 1934713408
        %v3250 = vunpack.c.0.s8 %v3249
        %v3251 = vlaneseq
        %v3252 = vshrl.u32 %v3251, 7
        %v3253 = vsub.s32 %v3250, %v3252
        %v3254 = vrot.slane %v3246, %v3253
        %v3256 = vunpack.c.l.s4 1934713408
        %v3257 = vunpack.c.0.s8 %v3256
        %v3258 = vlaneseq
        %v3259 = vshrl.u32 %v3258, 7
        %v3260 = vsub.s32 %v3257, %v3259
        %v3261 = vrot.slane %v3247, %v3260
        %v3262 = vcombine.high %v3238, 0.0
        %v3263 = vcombine.high %v3245, 0.0
        %v3264 = vcombine.high %v3254, 0.0
        %v3265 = vcombine.high %v3261, 0.0
        %v3266 = vcombine.low %v3187, %v3193
        %v3267 = vcombine.high %v3187, %v3193
        %v3269 = vunpack.c.l.s4 1983009808
        %v3270 = vunpack.c.0.s8 %v3269
        %v3271 = vlaneseq
        %v3272 = vshrl.u32 %v3271, 7
        %v3273 = vsub.s32 %v3270, %v3272
        %v3274 = vrot.slane %v3266, %v3273
        %v3276 = vunpack.c.l.s4 1983009808
        %v3277 = vunpack.c.0.s8 %v3276
        %v3278 = vlaneseq
        %v3279 = vshrl.u32 %v3278, 7
        %v3280 = vsub.s32 %v3277, %v3279
        %v3281 = vrot.slane %v3267, %v3280
        %v3282 = vcombine.low %v3190, %v3196
        %v3283 = vcombine.high %v3190, %v3196
        %v3285 = vunpack.c.l.s4 1983009808
        %v3286 = vunpack.c.0.s8 %v3285
        %v3287 = vlaneseq
        %v3288 = vshrl.u32 %v3287, 7
        %v3289 = vsub.s32 %v3286, %v3288
        %v3290 = vrot.slane %v3282, %v3289
        %v3292 = vunpack.c.l.s4 1983009808
        %v3293 = vunpack.c.0.s8 %v3292
        %v3294 = vlaneseq
        %v3295 = vshrl.u32 %v3294, 7
        %v3296 = vsub.s32 %v3293, %v3295
        %v3297 = vrot.slane %v3283, %v3296
        %v3298 = vcombine.low %v3274, %v3290
        %v3299 = vcombine.high %v3274, %v3290
        %v3301 = vunpack.c.l.s4 1934713408
        %v3302 = vunpack.c.0.s8 %v3301
        %v3303 = vlaneseq
        %v3304 = vshrl.u32 %v3303, 7
        %v3305 = vsub.s32 %v3302, %v3304
        %v3306 = vrot.slane %v3298, %v3305
        %v3308 = vunpack.c.l.s4 1934713408
        %v3309 = vunpack.c.0.s8 %v3308
        %v3310 = vlaneseq
        %v3311 = vshrl.u32 %v3310, 7
        %v3312 = vsub.s32 %v3309, %v3311
        %v3313 = vrot.slane %v3299, %v3312
        %v3314 = vcombine.low %v3281, %v3297
        %v3315 = vcombine.high %v3281, %v3297
        %v3317 = vunpack.c.l.s4 1934713408
        %v3318 = vunpack.c.0.s8 %v3317
        %v3319 = vlaneseq
        %v3320 = vshrl.u32 %v3319, 7
        %v3321 = vsub.s32 %v3318, %v3320
        %v3322 = vrot.slane %v3314, %v3321
        %v3324 = vunpack.c.l.s4 1934713408
        %v3325 = vunpack.c.0.s8 %v3324
        %v3326 = vlaneseq
        %v3327 = vshrl.u32 %v3326, 7
        %v3328 = vsub.s32 %v3325, %v3327
        %v3329 = vrot.slane %v3315, %v3328
        %v3330 = vcombine.high %v3306, 0.0
        %v3331 = vcombine.high %v3313, 0.0
        %v3332 = vcombine.high %v3322, 0.0
        %v3333 = vcombine.high %v3329, 0.0
        %3335 = vrot.lane.b32.xlu0 %v3262, 16
        %v3336 = vpop.permute.xlu0 %3335
        %3339 = vrot.lane.b32.xlu0 %v3245, 32
        %v3340 = vpop.permute.xlu0 %3339
        %3343 = vrot.lane.b32.xlu0 %v3263, 48
        %v3344 = vpop.permute.xlu0 %3343
        %3347 = vrot.lane.b32.xlu0 %v3254, 64
        %v3348 = vpop.permute.xlu0 %3347
        %3351 = vrot.lane.b32.xlu0 %v3264, 80
        %v3352 = vpop.permute.xlu0 %3351
        %3355 = vrot.lane.b32.xlu0 %v3261, 96
        %v3356 = vpop.permute.xlu0 %3355
        %3359 = vrot.lane.b32.xlu0 %v3265, 112
        %v3360 = vpop.permute.xlu0 %3359
        %3363 = vrot.lane.b32.xlu0 %v3330, 16
        %v3364 = vpop.permute.xlu0 %3363
        %3367 = vrot.lane.b32.xlu0 %v3313, 32
        %v3368 = vpop.permute.xlu0 %3367
        %3371 = vrot.lane.b32.xlu0 %v3331, 48
        %v3372 = vpop.permute.xlu0 %3371
        %3375 = vrot.lane.b32.xlu0 %v3322, 64
        %v3376 = vpop.permute.xlu0 %3375
        %3379 = vrot.lane.b32.xlu0 %v3332, 80
        %v3380 = vpop.permute.xlu0 %3379
        %3383 = vrot.lane.b32.xlu0 %v3329, 96
        %v3384 = vpop.permute.xlu0 %3383
        %3387 = vrot.lane.b32.xlu0 %v3333, 112
        %v3388 = vpop.permute.xlu0 %3387
        %v3390 = vsel %vm803, %v3238, %v3336
        %v3391 = vsel %vm805, %v3390, %v3340
        %v3392 = vsel %vm807, %v3391, %v3344
        %v3393 = vsel %vm809, %v3392, %v3348
        %v3394 = vsel %vm811, %v3393, %v3352
        %v3395 = vsel %vm813, %v3394, %v3356
        %v3396 = vsel %vm815, %v3395, %v3360
        %v3397 = vsel %vm803, %v3306, %v3364
        %v3398 = vsel %vm805, %v3397, %v3368
        %v3399 = vsel %vm807, %v3398, %v3372
        %v3400 = vsel %vm809, %v3399, %v3376
        %v3401 = vsel %vm811, %v3400, %v3380
        %v3402 = vsel %vm813, %v3401, %v3384
        %v3403 = vsel %vm815, %v3402, %v3388
        %3412 = vrot.lane.b32.xlu0 %v3186, 127
        %v3413 = vpop.permute.xlu0 %3412
        %3414 = vrot.lane.b32.xlu0 %v3187, 127
        %v3415 = vpop.permute.xlu0 %3414
        %3416 = vrot.lane.b32.xlu0 %v3189, 127
        %v3417 = vpop.permute.xlu0 %3416
        %3418 = vrot.lane.b32.xlu0 %v3190, 127
        %v3419 = vpop.permute.xlu0 %3418
        %3420 = vrot.lane.b32.xlu0 %v3192, 127
        %v3421 = vpop.permute.xlu0 %3420
        %3422 = vrot.lane.b32.xlu0 %v3193, 127
        %v3423 = vpop.permute.xlu0 %3422
        %3424 = vrot.lane.b32.xlu0 %v3195, 127
        %v3425 = vpop.permute.xlu0 %3424
        %3426 = vrot.lane.b32.xlu0 %v3196, 127
        %v3427 = vpop.permute.xlu0 %3426
        %v3436 = vcombine.low %v3413, %v3421
        %v3437 = vcombine.high %v3413, %v3421
        %v3439 = vunpack.c.l.s4 1983009808
        %v3440 = vunpack.c.0.s8 %v3439
        %v3441 = vlaneseq
        %v3442 = vshrl.u32 %v3441, 7
        %v3443 = vsub.s32 %v3440, %v3442
        %v3444 = vrot.slane %v3436, %v3443
        %v3446 = vunpack.c.l.s4 1983009808
        %v3447 = vunpack.c.0.s8 %v3446
        %v3448 = vlaneseq
        %v3449 = vshrl.u32 %v3448, 7
        %v3450 = vsub.s32 %v3447, %v3449
        %v3451 = vrot.slane %v3437, %v3450
        %v3452 = vcombine.low %v3417, %v3425
        %v3453 = vcombine.high %v3417, %v3425
        %v3455 = vunpack.c.l.s4 1983009808
        %v3456 = vunpack.c.0.s8 %v3455
        %v3457 = vlaneseq
        %v3458 = vshrl.u32 %v3457, 7
        %v3459 = vsub.s32 %v3456, %v3458
        %v3460 = vrot.slane %v3452, %v3459
        %v3462 = vunpack.c.l.s4 1983009808
        %v3463 = vunpack.c.0.s8 %v3462
        %v3464 = vlaneseq
        %v3465 = vshrl.u32 %v3464, 7
        %v3466 = vsub.s32 %v3463, %v3465
        %v3467 = vrot.slane %v3453, %v3466
        %v3468 = vcombine.low %v3444, %v3460
        %v3469 = vcombine.high %v3444, %v3460
        %v3471 = vunpack.c.l.s4 1934713408
        %v3472 = vunpack.c.0.s8 %v3471
        %v3473 = vlaneseq
        %v3474 = vshrl.u32 %v3473, 7
        %v3475 = vsub.s32 %v3472, %v3474
        %v3476 = vrot.slane %v3468, %v3475
        %v3478 = vunpack.c.l.s4 1934713408
        %v3479 = vunpack.c.0.s8 %v3478
        %v3480 = vlaneseq
        %v3481 = vshrl.u32 %v3480, 7
        %v3482 = vsub.s32 %v3479, %v3481
        %v3483 = vrot.slane %v3469, %v3482
        %v3484 = vcombine.low %v3451, %v3467
        %v3485 = vcombine.high %v3451, %v3467
        %v3487 = vunpack.c.l.s4 1934713408
        %v3488 = vunpack.c.0.s8 %v3487
        %v3489 = vlaneseq
        %v3490 = vshrl.u32 %v3489, 7
        %v3491 = vsub.s32 %v3488, %v3490
        %v3492 = vrot.slane %v3484, %v3491
        %v3494 = vunpack.c.l.s4 1934713408
        %v3495 = vunpack.c.0.s8 %v3494
        %v3496 = vlaneseq
        %v3497 = vshrl.u32 %v3496, 7
        %v3498 = vsub.s32 %v3495, %v3497
        %v3499 = vrot.slane %v3485, %v3498
        %v3500 = vcombine.high %v3476, 0.0
        %v3501 = vcombine.high %v3483, 0.0
        %v3502 = vcombine.high %v3492, 0.0
        %v3503 = vcombine.high %v3499, 0.0
        %v3504 = vcombine.low %v3415, %v3423
        %v3505 = vcombine.high %v3415, %v3423
        %v3507 = vunpack.c.l.s4 1983009808
        %v3508 = vunpack.c.0.s8 %v3507
        %v3509 = vlaneseq
        %v3510 = vshrl.u32 %v3509, 7
        %v3511 = vsub.s32 %v3508, %v3510
        %v3512 = vrot.slane %v3504, %v3511
        %v3514 = vunpack.c.l.s4 1983009808
        %v3515 = vunpack.c.0.s8 %v3514
        %v3516 = vlaneseq
        %v3517 = vshrl.u32 %v3516, 7
        %v3518 = vsub.s32 %v3515, %v3517
        %v3519 = vrot.slane %v3505, %v3518
        %v3520 = vcombine.low %v3419, %v3427
        %v3521 = vcombine.high %v3419, %v3427
        %v3523 = vunpack.c.l.s4 1983009808
        %v3524 = vunpack.c.0.s8 %v3523
        %v3525 = vlaneseq
        %v3526 = vshrl.u32 %v3525, 7
        %v3527 = vsub.s32 %v3524, %v3526
        %v3528 = vrot.slane %v3520, %v3527
        %v3530 = vunpack.c.l.s4 1983009808
        %v3531 = vunpack.c.0.s8 %v3530
        %v3532 = vlaneseq
        %v3533 = vshrl.u32 %v3532, 7
        %v3534 = vsub.s32 %v3531, %v3533
        %v3535 = vrot.slane %v3521, %v3534
        %v3536 = vcombine.low %v3512, %v3528
        %v3537 = vcombine.high %v3512, %v3528
        %v3539 = vunpack.c.l.s4 1934713408
        %v3540 = vunpack.c.0.s8 %v3539
        %v3541 = vlaneseq
        %v3542 = vshrl.u32 %v3541, 7
        %v3543 = vsub.s32 %v3540, %v3542
        %v3544 = vrot.slane %v3536, %v3543
        %v3546 = vunpack.c.l.s4 1934713408
        %v3547 = vunpack.c.0.s8 %v3546
        %v3548 = vlaneseq
        %v3549 = vshrl.u32 %v3548, 7
        %v3550 = vsub.s32 %v3547, %v3549
        %v3551 = vrot.slane %v3537, %v3550
        %v3552 = vcombine.low %v3519, %v3535
        %v3553 = vcombine.high %v3519, %v3535
        %v3555 = vunpack.c.l.s4 1934713408
        %v3556 = vunpack.c.0.s8 %v3555
        %v3557 = vlaneseq
        %v3558 = vshrl.u32 %v3557, 7
        %v3559 = vsub.s32 %v3556, %v3558
        %v3560 = vrot.slane %v3552, %v3559
        %v3562 = vunpack.c.l.s4 1934713408
        %v3563 = vunpack.c.0.s8 %v3562
        %v3564 = vlaneseq
        %v3565 = vshrl.u32 %v3564, 7
        %v3566 = vsub.s32 %v3563, %v3565
        %v3567 = vrot.slane %v3553, %v3566
        %v3568 = vcombine.high %v3544, 0.0
        %v3569 = vcombine.high %v3551, 0.0
        %v3570 = vcombine.high %v3560, 0.0
        %v3571 = vcombine.high %v3567, 0.0
        %3573 = vrot.lane.b32.xlu0 %v3500, 16
        %v3574 = vpop.permute.xlu0 %3573
        %3577 = vrot.lane.b32.xlu0 %v3483, 32
        %v3578 = vpop.permute.xlu0 %3577
        %3581 = vrot.lane.b32.xlu0 %v3501, 48
        %v3582 = vpop.permute.xlu0 %3581
        %3585 = vrot.lane.b32.xlu0 %v3492, 64
        %v3586 = vpop.permute.xlu0 %3585
        %3589 = vrot.lane.b32.xlu0 %v3502, 80
        %v3590 = vpop.permute.xlu0 %3589
        %3593 = vrot.lane.b32.xlu0 %v3499, 96
        %v3594 = vpop.permute.xlu0 %3593
        %3597 = vrot.lane.b32.xlu0 %v3503, 112
        %v3598 = vpop.permute.xlu0 %3597
        %3601 = vrot.lane.b32.xlu0 %v3568, 16
        %v3602 = vpop.permute.xlu0 %3601
        %3605 = vrot.lane.b32.xlu0 %v3551, 32
        %v3606 = vpop.permute.xlu0 %3605
        %3609 = vrot.lane.b32.xlu0 %v3569, 48
        %v3610 = vpop.permute.xlu0 %3609
        %3613 = vrot.lane.b32.xlu0 %v3560, 64
        %v3614 = vpop.permute.xlu0 %3613
        %3617 = vrot.lane.b32.xlu0 %v3570, 80
        %v3618 = vpop.permute.xlu0 %3617
        %3621 = vrot.lane.b32.xlu0 %v3567, 96
        %v3622 = vpop.permute.xlu0 %3621
        %3625 = vrot.lane.b32.xlu0 %v3571, 112
        %v3626 = vpop.permute.xlu0 %3625
        %v3628 = vsel %vm803, %v3476, %v3574
        %v3629 = vsel %vm805, %v3628, %v3578
        %v3630 = vsel %vm807, %v3629, %v3582
        %v3631 = vsel %vm809, %v3630, %v3586
        %v3632 = vsel %vm811, %v3631, %v3590
        %v3633 = vsel %vm813, %v3632, %v3594
        %v3634 = vsel %vm815, %v3633, %v3598
        %v3635 = vsel %vm803, %v3544, %v3602
        %v3636 = vsel %vm805, %v3635, %v3606
        %v3637 = vsel %vm807, %v3636, %v3610
        %v3638 = vsel %vm809, %v3637, %v3614
        %v3639 = vsel %vm811, %v3638, %v3618
        %v3640 = vsel %vm813, %v3639, %v3622
        %v3641 = vsel %vm815, %v3640, %v3626
        %3642 = vrot.lane.b32.xlu0 %v3186, 126
        %v3643 = vpop.permute.xlu0 %3642
        %3644 = vrot.lane.b32.xlu0 %v3187, 126
        %v3645 = vpop.permute.xlu0 %3644
        %3646 = vrot.lane.b32.xlu0 %v3189, 126
        %v3647 = vpop.permute.xlu0 %3646
        %3648 = vrot.lane.b32.xlu0 %v3190, 126
        %v3649 = vpop.permute.xlu0 %3648
        %3650 = vrot.lane.b32.xlu0 %v3192, 126
        %v3651 = vpop.permute.xlu0 %3650
        %3652 = vrot.lane.b32.xlu0 %v3193, 126
        %v3653 = vpop.permute.xlu0 %3652
        %3654 = vrot.lane.b32.xlu0 %v3195, 126
        %v3655 = vpop.permute.xlu0 %3654
        %3656 = vrot.lane.b32.xlu0 %v3196, 126
        %v3657 = vpop.permute.xlu0 %3656
        %v3666 = vcombine.low %v3643, %v3651
        %v3667 = vcombine.high %v3643, %v3651
        %v3669 = vunpack.c.l.s4 1983009808
        %v3670 = vunpack.c.0.s8 %v3669
        %v3671 = vlaneseq
        %v3672 = vshrl.u32 %v3671, 7
        %v3673 = vsub.s32 %v3670, %v3672
        %v3674 = vrot.slane %v3666, %v3673
        %v3676 = vunpack.c.l.s4 1983009808
        %v3677 = vunpack.c.0.s8 %v3676
        %v3678 = vlaneseq
        %v3679 = vshrl.u32 %v3678, 7
        %v3680 = vsub.s32 %v3677, %v3679
        %v3681 = vrot.slane %v3667, %v3680
        %v3682 = vcombine.low %v3647, %v3655
        %v3683 = vcombine.high %v3647, %v3655
        %v3685 = vunpack.c.l.s4 1983009808
        %v3686 = vunpack.c.0.s8 %v3685
        %v3687 = vlaneseq
        %v3688 = vshrl.u32 %v3687, 7
        %v3689 = vsub.s32 %v3686, %v3688
        %v3690 = vrot.slane %v3682, %v3689
        %v3692 = vunpack.c.l.s4 1983009808
        %v3693 = vunpack.c.0.s8 %v3692
        %v3694 = vlaneseq
        %v3695 = vshrl.u32 %v3694, 7
        %v3696 = vsub.s32 %v3693, %v3695
        %v3697 = vrot.slane %v3683, %v3696
        %v3698 = vcombine.low %v3674, %v3690
        %v3699 = vcombine.high %v3674, %v3690
        %v3701 = vunpack.c.l.s4 1934713408
        %v3702 = vunpack.c.0.s8 %v3701
        %v3703 = vlaneseq
        %v3704 = vshrl.u32 %v3703, 7
        %v3705 = vsub.s32 %v3702, %v3704
        %v3706 = vrot.slane %v3698, %v3705
        %v3708 = vunpack.c.l.s4 1934713408
        %v3709 = vunpack.c.0.s8 %v3708
        %v3710 = vlaneseq
        %v3711 = vshrl.u32 %v3710, 7
        %v3712 = vsub.s32 %v3709, %v3711
        %v3713 = vrot.slane %v3699, %v3712
        %v3714 = vcombine.low %v3681, %v3697
        %v3715 = vcombine.high %v3681, %v3697
        %v3717 = vunpack.c.l.s4 1934713408
        %v3718 = vunpack.c.0.s8 %v3717
        %v3719 = vlaneseq
        %v3720 = vshrl.u32 %v3719, 7
        %v3721 = vsub.s32 %v3718, %v3720
        %v3722 = vrot.slane %v3714, %v3721
        %v3724 = vunpack.c.l.s4 1934713408
        %v3725 = vunpack.c.0.s8 %v3724
        %v3726 = vlaneseq
        %v3727 = vshrl.u32 %v3726, 7
        %v3728 = vsub.s32 %v3725, %v3727
        %v3729 = vrot.slane %v3715, %v3728
        %v3730 = vcombine.high %v3706, 0.0
        %v3731 = vcombine.high %v3713, 0.0
        %v3732 = vcombine.high %v3722, 0.0
        %v3733 = vcombine.high %v3729, 0.0
        %v3734 = vcombine.low %v3645, %v3653
        %v3735 = vcombine.high %v3645, %v3653
        %v3737 = vunpack.c.l.s4 1983009808
        %v3738 = vunpack.c.0.s8 %v3737
        %v3739 = vlaneseq
        %v3740 = vshrl.u32 %v3739, 7
        %v3741 = vsub.s32 %v3738, %v3740
        %v3742 = vrot.slane %v3734, %v3741
        %v3744 = vunpack.c.l.s4 1983009808
        %v3745 = vunpack.c.0.s8 %v3744
        %v3746 = vlaneseq
        %v3747 = vshrl.u32 %v3746, 7
        %v3748 = vsub.s32 %v3745, %v3747
        %v3749 = vrot.slane %v3735, %v3748
        %v3750 = vcombine.low %v3649, %v3657
        %v3751 = vcombine.high %v3649, %v3657
        %v3753 = vunpack.c.l.s4 1983009808
        %v3754 = vunpack.c.0.s8 %v3753
        %v3755 = vlaneseq
        %v3756 = vshrl.u32 %v3755, 7
        %v3757 = vsub.s32 %v3754, %v3756
        %v3758 = vrot.slane %v3750, %v3757
        %v3760 = vunpack.c.l.s4 1983009808
        %v3761 = vunpack.c.0.s8 %v3760
        %v3762 = vlaneseq
        %v3763 = vshrl.u32 %v3762, 7
        %v3764 = vsub.s32 %v3761, %v3763
        %v3765 = vrot.slane %v3751, %v3764
        %v3766 = vcombine.low %v3742, %v3758
        %v3767 = vcombine.high %v3742, %v3758
        %v3769 = vunpack.c.l.s4 1934713408
        %v3770 = vunpack.c.0.s8 %v3769
        %v3771 = vlaneseq
        %v3772 = vshrl.u32 %v3771, 7
        %v3773 = vsub.s32 %v3770, %v3772
        %v3774 = vrot.slane %v3766, %v3773
        %v3776 = vunpack.c.l.s4 1934713408
        %v3777 = vunpack.c.0.s8 %v3776
        %v3778 = vlaneseq
        %v3779 = vshrl.u32 %v3778, 7
        %v3780 = vsub.s32 %v3777, %v3779
        %v3781 = vrot.slane %v3767, %v3780
        %v3782 = vcombine.low %v3749, %v3765
        %v3783 = vcombine.high %v3749, %v3765
        %v3785 = vunpack.c.l.s4 1934713408
        %v3786 = vunpack.c.0.s8 %v3785
        %v3787 = vlaneseq
        %v3788 = vshrl.u32 %v3787, 7
        %v3789 = vsub.s32 %v3786, %v3788
        %v3790 = vrot.slane %v3782, %v3789
        %v3792 = vunpack.c.l.s4 1934713408
        %v3793 = vunpack.c.0.s8 %v3792
        %v3794 = vlaneseq
        %v3795 = vshrl.u32 %v3794, 7
        %v3796 = vsub.s32 %v3793, %v3795
        %v3797 = vrot.slane %v3783, %v3796
        %v3798 = vcombine.high %v3774, 0.0
        %v3799 = vcombine.high %v3781, 0.0
        %v3800 = vcombine.high %v3790, 0.0
        %v3801 = vcombine.high %v3797, 0.0
        %3803 = vrot.lane.b32.xlu0 %v3730, 16
        %v3804 = vpop.permute.xlu0 %3803
        %3807 = vrot.lane.b32.xlu0 %v3713, 32
        %v3808 = vpop.permute.xlu0 %3807
        %3811 = vrot.lane.b32.xlu0 %v3731, 48
        %v3812 = vpop.permute.xlu0 %3811
        %3815 = vrot.lane.b32.xlu0 %v3722, 64
        %v3816 = vpop.permute.xlu0 %3815
        %3819 = vrot.lane.b32.xlu0 %v3732, 80
        %v3820 = vpop.permute.xlu0 %3819
        %3823 = vrot.lane.b32.xlu0 %v3729, 96
        %v3824 = vpop.permute.xlu0 %3823
        %3827 = vrot.lane.b32.xlu0 %v3733, 112
        %v3828 = vpop.permute.xlu0 %3827
        %3831 = vrot.lane.b32.xlu0 %v3798, 16
        %v3832 = vpop.permute.xlu0 %3831
        %3835 = vrot.lane.b32.xlu0 %v3781, 32
        %v3836 = vpop.permute.xlu0 %3835
        %3839 = vrot.lane.b32.xlu0 %v3799, 48
        %v3840 = vpop.permute.xlu0 %3839
        %3843 = vrot.lane.b32.xlu0 %v3790, 64
        %v3844 = vpop.permute.xlu0 %3843
        %3847 = vrot.lane.b32.xlu0 %v3800, 80
        %v3848 = vpop.permute.xlu0 %3847
        %3851 = vrot.lane.b32.xlu0 %v3797, 96
        %v3852 = vpop.permute.xlu0 %3851
        %3855 = vrot.lane.b32.xlu0 %v3801, 112
        %v3856 = vpop.permute.xlu0 %3855
        %v3858 = vsel %vm803, %v3706, %v3804
        %v3859 = vsel %vm805, %v3858, %v3808
        %v3860 = vsel %vm807, %v3859, %v3812
        %v3861 = vsel %vm809, %v3860, %v3816
        %v3862 = vsel %vm811, %v3861, %v3820
        %v3863 = vsel %vm813, %v3862, %v3824
        %v3864 = vsel %vm815, %v3863, %v3828
        %v3865 = vsel %vm803, %v3774, %v3832
        %v3866 = vsel %vm805, %v3865, %v3836
        %v3867 = vsel %vm807, %v3866, %v3840
        %v3868 = vsel %vm809, %v3867, %v3844
        %v3869 = vsel %vm811, %v3868, %v3848
        %v3870 = vsel %vm813, %v3869, %v3852
        %v3871 = vsel %vm815, %v3870, %v3856
        %v3876 = vrot.slane %v3186, 1
        %v3877 = vrot.slane %v3187, 1
        %v3878 = vsel %vm1296, %v3876, %v3877
        %v3879 = vrot.slane %v3188, 1
        %v3880 = vsel %vm1296, %v3877, %v3879
        %v3881 = vrot.slane %v3189, 1
        %v3882 = vrot.slane %v3190, 1
        %v3883 = vsel %vm1296, %v3881, %v3882
        %v3884 = vrot.slane %v3191, 1
        %v3885 = vsel %vm1296, %v3882, %v3884
        %v3886 = vrot.slane %v3192, 1
        %v3887 = vrot.slane %v3193, 1
        %v3888 = vsel %vm1296, %v3886, %v3887
        %v3889 = vrot.slane %v3194, 1
        %v3890 = vsel %vm1296, %v3887, %v3889
        %v3891 = vrot.slane %v3195, 1
        %v3892 = vrot.slane %v3196, 1
        %v3893 = vsel %vm1296, %v3891, %v3892
        %v3894 = vrot.slane %v3197, 1
        %v3895 = vsel %vm1296, %v3892, %v3894
        %v3904 = vcombine.low %v3878, %v3888
        %v3905 = vcombine.high %v3878, %v3888
        %v3907 = vunpack.c.l.s4 1983009808
        %v3908 = vunpack.c.0.s8 %v3907
        %v3909 = vlaneseq
        %v3910 = vshrl.u32 %v3909, 7
        %v3911 = vsub.s32 %v3908, %v3910
        %v3912 = vrot.slane %v3904, %v3911
        %v3914 = vunpack.c.l.s4 1983009808
        %v3915 = vunpack.c.0.s8 %v3914
        %v3916 = vlaneseq
        %v3917 = vshrl.u32 %v3916, 7
        %v3918 = vsub.s32 %v3915, %v3917
        %v3919 = vrot.slane %v3905, %v3918
        %v3920 = vcombine.low %v3883, %v3893
        %v3921 = vcombine.high %v3883, %v3893
        %v3923 = vunpack.c.l.s4 1983009808
        %v3924 = vunpack.c.0.s8 %v3923
        %v3925 = vlaneseq
        %v3926 = vshrl.u32 %v3925, 7
        %v3927 = vsub.s32 %v3924, %v3926
        %v3928 = vrot.slane %v3920, %v3927
        %v3930 = vunpack.c.l.s4 1983009808
        %v3931 = vunpack.c.0.s8 %v3930
        %v3932 = vlaneseq
        %v3933 = vshrl.u32 %v3932, 7
        %v3934 = vsub.s32 %v3931, %v3933
        %v3935 = vrot.slane %v3921, %v3934
        %v3936 = vcombine.low %v3912, %v3928
        %v3937 = vcombine.high %v3912, %v3928
        %v3939 = vunpack.c.l.s4 1934713408
        %v3940 = vunpack.c.0.s8 %v3939
        %v3941 = vlaneseq
        %v3942 = vshrl.u32 %v3941, 7
        %v3943 = vsub.s32 %v3940, %v3942
        %v3944 = vrot.slane %v3936, %v3943
        %v3946 = vunpack.c.l.s4 1934713408
        %v3947 = vunpack.c.0.s8 %v3946
        %v3948 = vlaneseq
        %v3949 = vshrl.u32 %v3948, 7
        %v3950 = vsub.s32 %v3947, %v3949
        %v3951 = vrot.slane %v3937, %v3950
        %v3952 = vcombine.low %v3919, %v3935
        %v3953 = vcombine.high %v3919, %v3935
        %v3955 = vunpack.c.l.s4 1934713408
        %v3956 = vunpack.c.0.s8 %v3955
        %v3957 = vlaneseq
        %v3958 = vshrl.u32 %v3957, 7
        %v3959 = vsub.s32 %v3956, %v3958
        %v3960 = vrot.slane %v3952, %v3959
        %v3962 = vunpack.c.l.s4 1934713408
        %v3963 = vunpack.c.0.s8 %v3962
        %v3964 = vlaneseq
        %v3965 = vshrl.u32 %v3964, 7
        %v3966 = vsub.s32 %v3963, %v3965
        %v3967 = vrot.slane %v3953, %v3966
        %v3968 = vcombine.high %v3944, 0.0
        %v3969 = vcombine.high %v3951, 0.0
        %v3970 = vcombine.high %v3960, 0.0
        %v3971 = vcombine.high %v3967, 0.0
        %v3972 = vcombine.low %v3880, %v3890
        %v3973 = vcombine.high %v3880, %v3890
        %v3975 = vunpack.c.l.s4 1983009808
        %v3976 = vunpack.c.0.s8 %v3975
        %v3977 = vlaneseq
        %v3978 = vshrl.u32 %v3977, 7
        %v3979 = vsub.s32 %v3976, %v3978
        %v3980 = vrot.slane %v3972, %v3979
        %v3982 = vunpack.c.l.s4 1983009808
        %v3983 = vunpack.c.0.s8 %v3982
        %v3984 = vlaneseq
        %v3985 = vshrl.u32 %v3984, 7
        %v3986 = vsub.s32 %v3983, %v3985
        %v3987 = vrot.slane %v3973, %v3986
        %v3988 = vcombine.low %v3885, %v3895
        %v3989 = vcombine.high %v3885, %v3895
        %v3991 = vunpack.c.l.s4 1983009808
        %v3992 = vunpack.c.0.s8 %v3991
        %v3993 = vlaneseq
        %v3994 = vshrl.u32 %v3993, 7
        %v3995 = vsub.s32 %v3992, %v3994
        %v3996 = vrot.slane %v3988, %v3995
        %v3998 = vunpack.c.l.s4 1983009808
        %v3999 = vunpack.c.0.s8 %v3998
        %v4000 = vlaneseq
        %v4001 = vshrl.u32 %v4000, 7
        %v4002 = vsub.s32 %v3999, %v4001
        %v4003 = vrot.slane %v3989, %v4002
        %v4004 = vcombine.low %v3980, %v3996
        %v4005 = vcombine.high %v3980, %v3996
        %v4007 = vunpack.c.l.s4 1934713408
        %v4008 = vunpack.c.0.s8 %v4007
        %v4009 = vlaneseq
        %v4010 = vshrl.u32 %v4009, 7
        %v4011 = vsub.s32 %v4008, %v4010
        %v4012 = vrot.slane %v4004, %v4011
        %v4014 = vunpack.c.l.s4 1934713408
        %v4015 = vunpack.c.0.s8 %v4014
        %v4016 = vlaneseq
        %v4017 = vshrl.u32 %v4016, 7
        %v4018 = vsub.s32 %v4015, %v4017
        %v4019 = vrot.slane %v4005, %v4018
        %v4020 = vcombine.low %v3987, %v4003
        %v4021 = vcombine.high %v3987, %v4003
        %v4023 = vunpack.c.l.s4 1934713408
        %v4024 = vunpack.c.0.s8 %v4023
        %v4025 = vlaneseq
        %v4026 = vshrl.u32 %v4025, 7
        %v4027 = vsub.s32 %v4024, %v4026
        %v4028 = vrot.slane %v4020, %v4027
        %v4030 = vunpack.c.l.s4 1934713408
        %v4031 = vunpack.c.0.s8 %v4030
        %v4032 = vlaneseq
        %v4033 = vshrl.u32 %v4032, 7
        %v4034 = vsub.s32 %v4031, %v4033
        %v4035 = vrot.slane %v4021, %v4034
        %v4036 = vcombine.high %v4012, 0.0
        %v4037 = vcombine.high %v4019, 0.0
        %v4038 = vcombine.high %v4028, 0.0
        %v4039 = vcombine.high %v4035, 0.0
        %4041 = vrot.lane.b32.xlu0 %v3968, 16
        %v4042 = vpop.permute.xlu0 %4041
        %4045 = vrot.lane.b32.xlu0 %v3951, 32
        %v4046 = vpop.permute.xlu0 %4045
        %4049 = vrot.lane.b32.xlu0 %v3969, 48
        %v4050 = vpop.permute.xlu0 %4049
        %4053 = vrot.lane.b32.xlu0 %v3960, 64
        %v4054 = vpop.permute.xlu0 %4053
        %4057 = vrot.lane.b32.xlu0 %v3970, 80
        %v4058 = vpop.permute.xlu0 %4057
        %4061 = vrot.lane.b32.xlu0 %v3967, 96
        %v4062 = vpop.permute.xlu0 %4061
        %4065 = vrot.lane.b32.xlu0 %v3971, 112
        %v4066 = vpop.permute.xlu0 %4065
        %4069 = vrot.lane.b32.xlu0 %v4036, 16
        %v4070 = vpop.permute.xlu0 %4069
        %4073 = vrot.lane.b32.xlu0 %v4019, 32
        %v4074 = vpop.permute.xlu0 %4073
        %4077 = vrot.lane.b32.xlu0 %v4037, 48
        %v4078 = vpop.permute.xlu0 %4077
        %4081 = vrot.lane.b32.xlu0 %v4028, 64
        %v4082 = vpop.permute.xlu0 %4081
        %4085 = vrot.lane.b32.xlu0 %v4038, 80
        %v4086 = vpop.permute.xlu0 %4085
        %4089 = vrot.lane.b32.xlu0 %v4035, 96
        %v4090 = vpop.permute.xlu0 %4089
        %4093 = vrot.lane.b32.xlu0 %v4039, 112
        %v4094 = vpop.permute.xlu0 %4093
        %v4096 = vsel %vm803, %v3944, %v4042
        %v4097 = vsel %vm805, %v4096, %v4046
        %v4098 = vsel %vm807, %v4097, %v4050
        %v4099 = vsel %vm809, %v4098, %v4054
        %v4100 = vsel %vm811, %v4099, %v4058
        %v4101 = vsel %vm813, %v4100, %v4062
        %v4102 = vsel %vm815, %v4101, %v4066
        %v4103 = vsel %vm803, %v4012, %v4070
        %v4104 = vsel %vm805, %v4103, %v4074
        %v4105 = vsel %vm807, %v4104, %v4078
        %v4106 = vsel %vm809, %v4105, %v4082
        %v4107 = vsel %vm811, %v4106, %v4086
        %v4108 = vsel %vm813, %v4107, %v4090
        %v4109 = vsel %vm815, %v4108, %v4094
        %4110 = vrot.lane.b32.xlu0 %v3878, 127
        %v4111 = vpop.permute.xlu0 %4110
        %4112 = vrot.lane.b32.xlu0 %v3880, 127
        %v4113 = vpop.permute.xlu0 %4112
        %4114 = vrot.lane.b32.xlu0 %v3883, 127
        %v4115 = vpop.permute.xlu0 %4114
        %4116 = vrot.lane.b32.xlu0 %v3885, 127
        %v4117 = vpop.permute.xlu0 %4116
        %4118 = vrot.lane.b32.xlu0 %v3888, 127
        %v4119 = vpop.permute.xlu0 %4118
        %4120 = vrot.lane.b32.xlu0 %v3890, 127
        %v4121 = vpop.permute.xlu0 %4120
        %4122 = vrot.lane.b32.xlu0 %v3893, 127
        %v4123 = vpop.permute.xlu0 %4122
        %4124 = vrot.lane.b32.xlu0 %v3895, 127
        %v4125 = vpop.permute.xlu0 %4124
        %v4134 = vcombine.low %v4111, %v4119
        %v4135 = vcombine.high %v4111, %v4119
        %v4137 = vunpack.c.l.s4 1983009808
        %v4138 = vunpack.c.0.s8 %v4137
        %v4139 = vlaneseq
        %v4140 = vshrl.u32 %v4139, 7
        %v4141 = vsub.s32 %v4138, %v4140
        %v4142 = vrot.slane %v4134, %v4141
        %v4144 = vunpack.c.l.s4 1983009808
        %v4145 = vunpack.c.0.s8 %v4144
        %v4146 = vlaneseq
        %v4147 = vshrl.u32 %v4146, 7
        %v4148 = vsub.s32 %v4145, %v4147
        %v4149 = vrot.slane %v4135, %v4148
        %v4150 = vcombine.low %v4115, %v4123
        %v4151 = vcombine.high %v4115, %v4123
        %v4153 = vunpack.c.l.s4 1983009808
        %v4154 = vunpack.c.0.s8 %v4153
        %v4155 = vlaneseq
        %v4156 = vshrl.u32 %v4155, 7
        %v4157 = vsub.s32 %v4154, %v4156
        %v4158 = vrot.slane %v4150, %v4157
        %v4160 = vunpack.c.l.s4 1983009808
        %v4161 = vunpack.c.0.s8 %v4160
        %v4162 = vlaneseq
        %v4163 = vshrl.u32 %v4162, 7
        %v4164 = vsub.s32 %v4161, %v4163
        %v4165 = vrot.slane %v4151, %v4164
        %v4166 = vcombine.low %v4142, %v4158
        %v4167 = vcombine.high %v4142, %v4158
        %v4169 = vunpack.c.l.s4 1934713408
        %v4170 = vunpack.c.0.s8 %v4169
        %v4171 = vlaneseq
        %v4172 = vshrl.u32 %v4171, 7
        %v4173 = vsub.s32 %v4170, %v4172
        %v4174 = vrot.slane %v4166, %v4173
        %v4176 = vunpack.c.l.s4 1934713408
        %v4177 = vunpack.c.0.s8 %v4176
        %v4178 = vlaneseq
        %v4179 = vshrl.u32 %v4178, 7
        %v4180 = vsub.s32 %v4177, %v4179
        %v4181 = vrot.slane %v4167, %v4180
        %v4182 = vcombine.low %v4149, %v4165
        %v4183 = vcombine.high %v4149, %v4165
        %v4185 = vunpack.c.l.s4 1934713408
        %v4186 = vunpack.c.0.s8 %v4185
        %v4187 = vlaneseq
        %v4188 = vshrl.u32 %v4187, 7
        %v4189 = vsub.s32 %v4186, %v4188
        %v4190 = vrot.slane %v4182, %v4189
        %v4192 = vunpack.c.l.s4 1934713408
        %v4193 = vunpack.c.0.s8 %v4192
        %v4194 = vlaneseq
        %v4195 = vshrl.u32 %v4194, 7
        %v4196 = vsub.s32 %v4193, %v4195
        %v4197 = vrot.slane %v4183, %v4196
        %v4198 = vcombine.high %v4174, 0.0
        %v4199 = vcombine.high %v4181, 0.0
        %v4200 = vcombine.high %v4190, 0.0
        %v4201 = vcombine.high %v4197, 0.0
        %v4202 = vcombine.low %v4113, %v4121
        %v4203 = vcombine.high %v4113, %v4121
        %v4205 = vunpack.c.l.s4 1983009808
        %v4206 = vunpack.c.0.s8 %v4205
        %v4207 = vlaneseq
        %v4208 = vshrl.u32 %v4207, 7
        %v4209 = vsub.s32 %v4206, %v4208
        %v4210 = vrot.slane %v4202, %v4209
        %v4212 = vunpack.c.l.s4 1983009808
        %v4213 = vunpack.c.0.s8 %v4212
        %v4214 = vlaneseq
        %v4215 = vshrl.u32 %v4214, 7
        %v4216 = vsub.s32 %v4213, %v4215
        %v4217 = vrot.slane %v4203, %v4216
        %v4218 = vcombine.low %v4117, %v4125
        %v4219 = vcombine.high %v4117, %v4125
        %v4221 = vunpack.c.l.s4 1983009808
        %v4222 = vunpack.c.0.s8 %v4221
        %v4223 = vlaneseq
        %v4224 = vshrl.u32 %v4223, 7
        %v4225 = vsub.s32 %v4222, %v4224
        %v4226 = vrot.slane %v4218, %v4225
        %v4228 = vunpack.c.l.s4 1983009808
        %v4229 = vunpack.c.0.s8 %v4228
        %v4230 = vlaneseq
        %v4231 = vshrl.u32 %v4230, 7
        %v4232 = vsub.s32 %v4229, %v4231
        %v4233 = vrot.slane %v4219, %v4232
        %v4234 = vcombine.low %v4210, %v4226
        %v4235 = vcombine.high %v4210, %v4226
        %v4237 = vunpack.c.l.s4 1934713408
        %v4238 = vunpack.c.0.s8 %v4237
        %v4239 = vlaneseq
        %v4240 = vshrl.u32 %v4239, 7
        %v4241 = vsub.s32 %v4238, %v4240
        %v4242 = vrot.slane %v4234, %v4241
        %v4244 = vunpack.c.l.s4 1934713408
        %v4245 = vunpack.c.0.s8 %v4244
        %v4246 = vlaneseq
        %v4247 = vshrl.u32 %v4246, 7
        %v4248 = vsub.s32 %v4245, %v4247
        %v4249 = vrot.slane %v4235, %v4248
        %v4250 = vcombine.low %v4217, %v4233
        %v4251 = vcombine.high %v4217, %v4233
        %v4253 = vunpack.c.l.s4 1934713408
        %v4254 = vunpack.c.0.s8 %v4253
        %v4255 = vlaneseq
        %v4256 = vshrl.u32 %v4255, 7
        %v4257 = vsub.s32 %v4254, %v4256
        %v4258 = vrot.slane %v4250, %v4257
        %v4260 = vunpack.c.l.s4 1934713408
        %v4261 = vunpack.c.0.s8 %v4260
        %v4262 = vlaneseq
        %v4263 = vshrl.u32 %v4262, 7
        %v4264 = vsub.s32 %v4261, %v4263
        %v4265 = vrot.slane %v4251, %v4264
        %v4266 = vcombine.high %v4242, 0.0
        %v4267 = vcombine.high %v4249, 0.0
        %v4268 = vcombine.high %v4258, 0.0
        %v4269 = vcombine.high %v4265, 0.0
        %4271 = vrot.lane.b32.xlu0 %v4198, 16
        %v4272 = vpop.permute.xlu0 %4271
        %4275 = vrot.lane.b32.xlu0 %v4181, 32
        %v4276 = vpop.permute.xlu0 %4275
        %4279 = vrot.lane.b32.xlu0 %v4199, 48
        %v4280 = vpop.permute.xlu0 %4279
        %4283 = vrot.lane.b32.xlu0 %v4190, 64
        %v4284 = vpop.permute.xlu0 %4283
        %4287 = vrot.lane.b32.xlu0 %v4200, 80
        %v4288 = vpop.permute.xlu0 %4287
        %4291 = vrot.lane.b32.xlu0 %v4197, 96
        %v4292 = vpop.permute.xlu0 %4291
        %4295 = vrot.lane.b32.xlu0 %v4201, 112
        %v4296 = vpop.permute.xlu0 %4295
        %4299 = vrot.lane.b32.xlu0 %v4266, 16
        %v4300 = vpop.permute.xlu0 %4299
        %4303 = vrot.lane.b32.xlu0 %v4249, 32
        %v4304 = vpop.permute.xlu0 %4303
        %4307 = vrot.lane.b32.xlu0 %v4267, 48
        %v4308 = vpop.permute.xlu0 %4307
        %4311 = vrot.lane.b32.xlu0 %v4258, 64
        %v4312 = vpop.permute.xlu0 %4311
        %4315 = vrot.lane.b32.xlu0 %v4268, 80
        %v4316 = vpop.permute.xlu0 %4315
        %4319 = vrot.lane.b32.xlu0 %v4265, 96
        %v4320 = vpop.permute.xlu0 %4319
        %4323 = vrot.lane.b32.xlu0 %v4269, 112
        %v4324 = vpop.permute.xlu0 %4323
        %v4326 = vsel %vm803, %v4174, %v4272
        %v4327 = vsel %vm805, %v4326, %v4276
        %v4328 = vsel %vm807, %v4327, %v4280
        %v4329 = vsel %vm809, %v4328, %v4284
        %v4330 = vsel %vm811, %v4329, %v4288
        %v4331 = vsel %vm813, %v4330, %v4292
        %v4332 = vsel %vm815, %v4331, %v4296
        %v4333 = vsel %vm803, %v4242, %v4300
        %v4334 = vsel %vm805, %v4333, %v4304
        %v4335 = vsel %vm807, %v4334, %v4308
        %v4336 = vsel %vm809, %v4335, %v4312
        %v4337 = vsel %vm811, %v4336, %v4316
        %v4338 = vsel %vm813, %v4337, %v4320
        %v4339 = vsel %vm815, %v4338, %v4324
        %4340 = vrot.lane.b32.xlu0 %v3878, 126
        %v4341 = vpop.permute.xlu0 %4340
        %4342 = vrot.lane.b32.xlu0 %v3880, 126
        %v4343 = vpop.permute.xlu0 %4342
        %4344 = vrot.lane.b32.xlu0 %v3883, 126
        %v4345 = vpop.permute.xlu0 %4344
        %4346 = vrot.lane.b32.xlu0 %v3885, 126
        %v4347 = vpop.permute.xlu0 %4346
        %4348 = vrot.lane.b32.xlu0 %v3888, 126
        %v4349 = vpop.permute.xlu0 %4348
        %4350 = vrot.lane.b32.xlu0 %v3890, 126
        %v4351 = vpop.permute.xlu0 %4350
        %4352 = vrot.lane.b32.xlu0 %v3893, 126
        %v4353 = vpop.permute.xlu0 %4352
        %4354 = vrot.lane.b32.xlu0 %v3895, 126
        %v4355 = vpop.permute.xlu0 %4354
        %v4364 = vcombine.low %v4341, %v4349
        %v4365 = vcombine.high %v4341, %v4349
        %v4367 = vunpack.c.l.s4 1983009808
        %v4368 = vunpack.c.0.s8 %v4367
        %v4369 = vlaneseq
        %v4370 = vshrl.u32 %v4369, 7
        %v4371 = vsub.s32 %v4368, %v4370
        %v4372 = vrot.slane %v4364, %v4371
        %v4374 = vunpack.c.l.s4 1983009808
        %v4375 = vunpack.c.0.s8 %v4374
        %v4376 = vlaneseq
        %v4377 = vshrl.u32 %v4376, 7
        %v4378 = vsub.s32 %v4375, %v4377
        %v4379 = vrot.slane %v4365, %v4378
        %v4380 = vcombine.low %v4345, %v4353
        %v4381 = vcombine.high %v4345, %v4353
        %v4383 = vunpack.c.l.s4 1983009808
        %v4384 = vunpack.c.0.s8 %v4383
        %v4385 = vlaneseq
        %v4386 = vshrl.u32 %v4385, 7
        %v4387 = vsub.s32 %v4384, %v4386
        %v4388 = vrot.slane %v4380, %v4387
        %v4390 = vunpack.c.l.s4 1983009808
        %v4391 = vunpack.c.0.s8 %v4390
        %v4392 = vlaneseq
        %v4393 = vshrl.u32 %v4392, 7
        %v4394 = vsub.s32 %v4391, %v4393
        %v4395 = vrot.slane %v4381, %v4394
        %v4396 = vcombine.low %v4372, %v4388
        %v4397 = vcombine.high %v4372, %v4388
        %v4399 = vunpack.c.l.s4 1934713408
        %v4400 = vunpack.c.0.s8 %v4399
        %v4401 = vlaneseq
        %v4402 = vshrl.u32 %v4401, 7
        %v4403 = vsub.s32 %v4400, %v4402
        %v4404 = vrot.slane %v4396, %v4403
        %v4406 = vunpack.c.l.s4 1934713408
        %v4407 = vunpack.c.0.s8 %v4406
        %v4408 = vlaneseq
        %v4409 = vshrl.u32 %v4408, 7
        %v4410 = vsub.s32 %v4407, %v4409
        %v4411 = vrot.slane %v4397, %v4410
        %v4412 = vcombine.low %v4379, %v4395
        %v4413 = vcombine.high %v4379, %v4395
        %v4415 = vunpack.c.l.s4 1934713408
        %v4416 = vunpack.c.0.s8 %v4415
        %v4417 = vlaneseq
        %v4418 = vshrl.u32 %v4417, 7
        %v4419 = vsub.s32 %v4416, %v4418
        %v4420 = vrot.slane %v4412, %v4419
        %v4422 = vunpack.c.l.s4 1934713408
        %v4423 = vunpack.c.0.s8 %v4422
        %v4424 = vlaneseq
        %v4425 = vshrl.u32 %v4424, 7
        %v4426 = vsub.s32 %v4423, %v4425
        %v4427 = vrot.slane %v4413, %v4426
        %v4428 = vcombine.high %v4404, 0.0
        %v4429 = vcombine.high %v4411, 0.0
        %v4430 = vcombine.high %v4420, 0.0
        %v4431 = vcombine.high %v4427, 0.0
        %v4432 = vcombine.low %v4343, %v4351
        %v4433 = vcombine.high %v4343, %v4351
        %v4435 = vunpack.c.l.s4 1983009808
        %v4436 = vunpack.c.0.s8 %v4435
        %v4437 = vlaneseq
        %v4438 = vshrl.u32 %v4437, 7
        %v4439 = vsub.s32 %v4436, %v4438
        %v4440 = vrot.slane %v4432, %v4439
        %v4442 = vunpack.c.l.s4 1983009808
        %v4443 = vunpack.c.0.s8 %v4442
        %v4444 = vlaneseq
        %v4445 = vshrl.u32 %v4444, 7
        %v4446 = vsub.s32 %v4443, %v4445
        %v4447 = vrot.slane %v4433, %v4446
        %v4448 = vcombine.low %v4347, %v4355
        %v4449 = vcombine.high %v4347, %v4355
        %v4451 = vunpack.c.l.s4 1983009808
        %v4452 = vunpack.c.0.s8 %v4451
        %v4453 = vlaneseq
        %v4454 = vshrl.u32 %v4453, 7
        %v4455 = vsub.s32 %v4452, %v4454
        %v4456 = vrot.slane %v4448, %v4455
        %v4458 = vunpack.c.l.s4 1983009808
        %v4459 = vunpack.c.0.s8 %v4458
        %v4460 = vlaneseq
        %v4461 = vshrl.u32 %v4460, 7
        %v4462 = vsub.s32 %v4459, %v4461
        %v4463 = vrot.slane %v4449, %v4462
        %v4464 = vcombine.low %v4440, %v4456
        %v4465 = vcombine.high %v4440, %v4456
        %v4467 = vunpack.c.l.s4 1934713408
        %v4468 = vunpack.c.0.s8 %v4467
        %v4469 = vlaneseq
        %v4470 = vshrl.u32 %v4469, 7
        %v4471 = vsub.s32 %v4468, %v4470
        %v4472 = vrot.slane %v4464, %v4471
        %v4474 = vunpack.c.l.s4 1934713408
        %v4475 = vunpack.c.0.s8 %v4474
        %v4476 = vlaneseq
        %v4477 = vshrl.u32 %v4476, 7
        %v4478 = vsub.s32 %v4475, %v4477
        %v4479 = vrot.slane %v4465, %v4478
        %v4480 = vcombine.low %v4447, %v4463
        %v4481 = vcombine.high %v4447, %v4463
        %v4483 = vunpack.c.l.s4 1934713408
        %v4484 = vunpack.c.0.s8 %v4483
        %v4485 = vlaneseq
        %v4486 = vshrl.u32 %v4485, 7
        %v4487 = vsub.s32 %v4484, %v4486
        %v4488 = vrot.slane %v4480, %v4487
        %v4490 = vunpack.c.l.s4 1934713408
        %v4491 = vunpack.c.0.s8 %v4490
        %v4492 = vlaneseq
        %v4493 = vshrl.u32 %v4492, 7
        %v4494 = vsub.s32 %v4491, %v4493
        %v4495 = vrot.slane %v4481, %v4494
        %v4496 = vcombine.high %v4472, 0.0
        %v4497 = vcombine.high %v4479, 0.0
        %v4498 = vcombine.high %v4488, 0.0
        %v4499 = vcombine.high %v4495, 0.0
        %4501 = vrot.lane.b32.xlu0 %v4428, 16
        %v4502 = vpop.permute.xlu0 %4501
        %4505 = vrot.lane.b32.xlu0 %v4411, 32
        %v4506 = vpop.permute.xlu0 %4505
        %4509 = vrot.lane.b32.xlu0 %v4429, 48
        %v4510 = vpop.permute.xlu0 %4509
        %4513 = vrot.lane.b32.xlu0 %v4420, 64
        %v4514 = vpop.permute.xlu0 %4513
        %4517 = vrot.lane.b32.xlu0 %v4430, 80
        %v4518 = vpop.permute.xlu0 %4517
        %4521 = vrot.lane.b32.xlu0 %v4427, 96
        %v4522 = vpop.permute.xlu0 %4521
        %4525 = vrot.lane.b32.xlu0 %v4431, 112
        %v4526 = vpop.permute.xlu0 %4525
        %4529 = vrot.lane.b32.xlu0 %v4496, 16
        %v4530 = vpop.permute.xlu0 %4529
        %4533 = vrot.lane.b32.xlu0 %v4479, 32
        %v4534 = vpop.permute.xlu0 %4533
        %4537 = vrot.lane.b32.xlu0 %v4497, 48
        %v4538 = vpop.permute.xlu0 %4537
        %4541 = vrot.lane.b32.xlu0 %v4488, 64
        %v4542 = vpop.permute.xlu0 %4541
        %4545 = vrot.lane.b32.xlu0 %v4498, 80
        %v4546 = vpop.permute.xlu0 %4545
        %4549 = vrot.lane.b32.xlu0 %v4495, 96
        %v4550 = vpop.permute.xlu0 %4549
        %4553 = vrot.lane.b32.xlu0 %v4499, 112
        %v4554 = vpop.permute.xlu0 %4553
        %v4556 = vsel %vm803, %v4404, %v4502
        %v4557 = vsel %vm805, %v4556, %v4506
        %v4558 = vsel %vm807, %v4557, %v4510
        %v4559 = vsel %vm809, %v4558, %v4514
        %v4560 = vsel %vm811, %v4559, %v4518
        %v4561 = vsel %vm813, %v4560, %v4522
        %v4562 = vsel %vm815, %v4561, %v4526
        %v4563 = vsel %vm803, %v4472, %v4530
        %v4564 = vsel %vm805, %v4563, %v4534
        %v4565 = vsel %vm807, %v4564, %v4538
        %v4566 = vsel %vm809, %v4565, %v4542
        %v4567 = vsel %vm811, %v4566, %v4546
        %v4568 = vsel %vm813, %v4567, %v4550
        %v4569 = vsel %vm815, %v4568, %v4554
        %v4570 = vrot.slane %v3186, 2
        %v4571 = vrot.slane %v3187, 2
        %v4572 = vsel %vm1991, %v4570, %v4571
        %v4573 = vrot.slane %v3188, 2
        %v4574 = vsel %vm1991, %v4571, %v4573
        %v4575 = vrot.slane %v3189, 2
        %v4576 = vrot.slane %v3190, 2
        %v4577 = vsel %vm1991, %v4575, %v4576
        %v4578 = vrot.slane %v3191, 2
        %v4579 = vsel %vm1991, %v4576, %v4578
        %v4580 = vrot.slane %v3192, 2
        %v4581 = vrot.slane %v3193, 2
        %v4582 = vsel %vm1991, %v4580, %v4581
        %v4583 = vrot.slane %v3194, 2
        %v4584 = vsel %vm1991, %v4581, %v4583
        %v4585 = vrot.slane %v3195, 2
        %v4586 = vrot.slane %v3196, 2
        %v4587 = vsel %vm1991, %v4585, %v4586
        %v4588 = vrot.slane %v3197, 2
        %v4589 = vsel %vm1991, %v4586, %v4588
        %v4598 = vcombine.low %v4572, %v4582
        %v4599 = vcombine.high %v4572, %v4582
        %v4601 = vunpack.c.l.s4 1983009808
        %v4602 = vunpack.c.0.s8 %v4601
        %v4603 = vlaneseq
        %v4604 = vshrl.u32 %v4603, 7
        %v4605 = vsub.s32 %v4602, %v4604
        %v4606 = vrot.slane %v4598, %v4605
        %v4608 = vunpack.c.l.s4 1983009808
        %v4609 = vunpack.c.0.s8 %v4608
        %v4610 = vlaneseq
        %v4611 = vshrl.u32 %v4610, 7
        %v4612 = vsub.s32 %v4609, %v4611
        %v4613 = vrot.slane %v4599, %v4612
        %v4614 = vcombine.low %v4577, %v4587
        %v4615 = vcombine.high %v4577, %v4587
        %v4617 = vunpack.c.l.s4 1983009808
        %v4618 = vunpack.c.0.s8 %v4617
        %v4619 = vlaneseq
        %v4620 = vshrl.u32 %v4619, 7
        %v4621 = vsub.s32 %v4618, %v4620
        %v4622 = vrot.slane %v4614, %v4621
        %v4624 = vunpack.c.l.s4 1983009808
        %v4625 = vunpack.c.0.s8 %v4624
        %v4626 = vlaneseq
        %v4627 = vshrl.u32 %v4626, 7
        %v4628 = vsub.s32 %v4625, %v4627
        %v4629 = vrot.slane %v4615, %v4628
        %v4630 = vcombine.low %v4606, %v4622
        %v4631 = vcombine.high %v4606, %v4622
        %v4633 = vunpack.c.l.s4 1934713408
        %v4634 = vunpack.c.0.s8 %v4633
        %v4635 = vlaneseq
        %v4636 = vshrl.u32 %v4635, 7
        %v4637 = vsub.s32 %v4634, %v4636
        %v4638 = vrot.slane %v4630, %v4637
        %v4640 = vunpack.c.l.s4 1934713408
        %v4641 = vunpack.c.0.s8 %v4640
        %v4642 = vlaneseq
        %v4643 = vshrl.u32 %v4642, 7
        %v4644 = vsub.s32 %v4641, %v4643
        %v4645 = vrot.slane %v4631, %v4644
        %v4646 = vcombine.low %v4613, %v4629
        %v4647 = vcombine.high %v4613, %v4629
        %v4649 = vunpack.c.l.s4 1934713408
        %v4650 = vunpack.c.0.s8 %v4649
        %v4651 = vlaneseq
        %v4652 = vshrl.u32 %v4651, 7
        %v4653 = vsub.s32 %v4650, %v4652
        %v4654 = vrot.slane %v4646, %v4653
        %v4656 = vunpack.c.l.s4 1934713408
        %v4657 = vunpack.c.0.s8 %v4656
        %v4658 = vlaneseq
        %v4659 = vshrl.u32 %v4658, 7
        %v4660 = vsub.s32 %v4657, %v4659
        %v4661 = vrot.slane %v4647, %v4660
        %v4662 = vcombine.high %v4638, 0.0
        %v4663 = vcombine.high %v4645, 0.0
        %v4664 = vcombine.high %v4654, 0.0
        %v4665 = vcombine.high %v4661, 0.0
        %v4666 = vcombine.low %v4574, %v4584
        %v4667 = vcombine.high %v4574, %v4584
        %v4669 = vunpack.c.l.s4 1983009808
        %v4670 = vunpack.c.0.s8 %v4669
        %v4671 = vlaneseq
        %v4672 = vshrl.u32 %v4671, 7
        %v4673 = vsub.s32 %v4670, %v4672
        %v4674 = vrot.slane %v4666, %v4673
        %v4676 = vunpack.c.l.s4 1983009808
        %v4677 = vunpack.c.0.s8 %v4676
        %v4678 = vlaneseq
        %v4679 = vshrl.u32 %v4678, 7
        %v4680 = vsub.s32 %v4677, %v4679
        %v4681 = vrot.slane %v4667, %v4680
        %v4682 = vcombine.low %v4579, %v4589
        %v4683 = vcombine.high %v4579, %v4589
        %v4685 = vunpack.c.l.s4 1983009808
        %v4686 = vunpack.c.0.s8 %v4685
        %v4687 = vlaneseq
        %v4688 = vshrl.u32 %v4687, 7
        %v4689 = vsub.s32 %v4686, %v4688
        %v4690 = vrot.slane %v4682, %v4689
        %v4692 = vunpack.c.l.s4 1983009808
        %v4693 = vunpack.c.0.s8 %v4692
        %v4694 = vlaneseq
        %v4695 = vshrl.u32 %v4694, 7
        %v4696 = vsub.s32 %v4693, %v4695
        %v4697 = vrot.slane %v4683, %v4696
        %v4698 = vcombine.low %v4674, %v4690
        %v4699 = vcombine.high %v4674, %v4690
        %v4701 = vunpack.c.l.s4 1934713408
        %v4702 = vunpack.c.0.s8 %v4701
        %v4703 = vlaneseq
        %v4704 = vshrl.u32 %v4703, 7
        %v4705 = vsub.s32 %v4702, %v4704
        %v4706 = vrot.slane %v4698, %v4705
        %v4708 = vunpack.c.l.s4 1934713408
        %v4709 = vunpack.c.0.s8 %v4708
        %v4710 = vlaneseq
        %v4711 = vshrl.u32 %v4710, 7
        %v4712 = vsub.s32 %v4709, %v4711
        %v4713 = vrot.slane %v4699, %v4712
        %v4714 = vcombine.low %v4681, %v4697
        %v4715 = vcombine.high %v4681, %v4697
        %v4717 = vunpack.c.l.s4 1934713408
        %v4718 = vunpack.c.0.s8 %v4717
        %v4719 = vlaneseq
        %v4720 = vshrl.u32 %v4719, 7
        %v4721 = vsub.s32 %v4718, %v4720
        %v4722 = vrot.slane %v4714, %v4721
        %v4724 = vunpack.c.l.s4 1934713408
        %v4725 = vunpack.c.0.s8 %v4724
        %v4726 = vlaneseq
        %v4727 = vshrl.u32 %v4726, 7
        %v4728 = vsub.s32 %v4725, %v4727
        %v4729 = vrot.slane %v4715, %v4728
        %v4730 = vcombine.high %v4706, 0.0
        %v4731 = vcombine.high %v4713, 0.0
        %v4732 = vcombine.high %v4722, 0.0
        %v4733 = vcombine.high %v4729, 0.0
        %4735 = vrot.lane.b32.xlu0 %v4662, 16
        %v4736 = vpop.permute.xlu0 %4735
        %4739 = vrot.lane.b32.xlu0 %v4645, 32
        %v4740 = vpop.permute.xlu0 %4739
        %4743 = vrot.lane.b32.xlu0 %v4663, 48
        %v4744 = vpop.permute.xlu0 %4743
        %4747 = vrot.lane.b32.xlu0 %v4654, 64
        %v4748 = vpop.permute.xlu0 %4747
        %4751 = vrot.lane.b32.xlu0 %v4664, 80
        %v4752 = vpop.permute.xlu0 %4751
        %4755 = vrot.lane.b32.xlu0 %v4661, 96
        %v4756 = vpop.permute.xlu0 %4755
        %4759 = vrot.lane.b32.xlu0 %v4665, 112
        %v4760 = vpop.permute.xlu0 %4759
        %4763 = vrot.lane.b32.xlu0 %v4730, 16
        %v4764 = vpop.permute.xlu0 %4763
        %4767 = vrot.lane.b32.xlu0 %v4713, 32
        %v4768 = vpop.permute.xlu0 %4767
        %4771 = vrot.lane.b32.xlu0 %v4731, 48
        %v4772 = vpop.permute.xlu0 %4771
        %4775 = vrot.lane.b32.xlu0 %v4722, 64
        %v4776 = vpop.permute.xlu0 %4775
        %4779 = vrot.lane.b32.xlu0 %v4732, 80
        %v4780 = vpop.permute.xlu0 %4779
        %4783 = vrot.lane.b32.xlu0 %v4729, 96
        %v4784 = vpop.permute.xlu0 %4783
        %4787 = vrot.lane.b32.xlu0 %v4733, 112
        %v4788 = vpop.permute.xlu0 %4787
        %v4790 = vsel %vm803, %v4638, %v4736
        %v4791 = vsel %vm805, %v4790, %v4740
        %v4792 = vsel %vm807, %v4791, %v4744
        %v4793 = vsel %vm809, %v4792, %v4748
        %v4794 = vsel %vm811, %v4793, %v4752
        %v4795 = vsel %vm813, %v4794, %v4756
        %v4796 = vsel %vm815, %v4795, %v4760
        %v4797 = vsel %vm803, %v4706, %v4764
        %v4798 = vsel %vm805, %v4797, %v4768
        %v4799 = vsel %vm807, %v4798, %v4772
        %v4800 = vsel %vm809, %v4799, %v4776
        %v4801 = vsel %vm811, %v4800, %v4780
        %v4802 = vsel %vm813, %v4801, %v4784
        %v4803 = vsel %vm815, %v4802, %v4788
        %4804 = vrot.lane.b32.xlu0 %v4572, 127
        %v4805 = vpop.permute.xlu0 %4804
        %4806 = vrot.lane.b32.xlu0 %v4574, 127
        %v4807 = vpop.permute.xlu0 %4806
        %4808 = vrot.lane.b32.xlu0 %v4577, 127
        %v4809 = vpop.permute.xlu0 %4808
        %4810 = vrot.lane.b32.xlu0 %v4579, 127
        %v4811 = vpop.permute.xlu0 %4810
        %4812 = vrot.lane.b32.xlu0 %v4582, 127
        %v4813 = vpop.permute.xlu0 %4812
        %4814 = vrot.lane.b32.xlu0 %v4584, 127
        %v4815 = vpop.permute.xlu0 %4814
        %4816 = vrot.lane.b32.xlu0 %v4587, 127
        %v4817 = vpop.permute.xlu0 %4816
        %4818 = vrot.lane.b32.xlu0 %v4589, 127
        %v4819 = vpop.permute.xlu0 %4818
        %v4828 = vcombine.low %v4805, %v4813
        %v4829 = vcombine.high %v4805, %v4813
        %v4831 = vunpack.c.l.s4 1983009808
        %v4832 = vunpack.c.0.s8 %v4831
        %v4833 = vlaneseq
        %v4834 = vshrl.u32 %v4833, 7
        %v4835 = vsub.s32 %v4832, %v4834
        %v4836 = vrot.slane %v4828, %v4835
        %v4838 = vunpack.c.l.s4 1983009808
        %v4839 = vunpack.c.0.s8 %v4838
        %v4840 = vlaneseq
        %v4841 = vshrl.u32 %v4840, 7
        %v4842 = vsub.s32 %v4839, %v4841
        %v4843 = vrot.slane %v4829, %v4842
        %v4844 = vcombine.low %v4809, %v4817
        %v4845 = vcombine.high %v4809, %v4817
        %v4847 = vunpack.c.l.s4 1983009808
        %v4848 = vunpack.c.0.s8 %v4847
        %v4849 = vlaneseq
        %v4850 = vshrl.u32 %v4849, 7
        %v4851 = vsub.s32 %v4848, %v4850
        %v4852 = vrot.slane %v4844, %v4851
        %v4854 = vunpack.c.l.s4 1983009808
        %v4855 = vunpack.c.0.s8 %v4854
        %v4856 = vlaneseq
        %v4857 = vshrl.u32 %v4856, 7
        %v4858 = vsub.s32 %v4855, %v4857
        %v4859 = vrot.slane %v4845, %v4858
        %v4860 = vcombine.low %v4836, %v4852
        %v4861 = vcombine.high %v4836, %v4852
        %v4863 = vunpack.c.l.s4 1934713408
        %v4864 = vunpack.c.0.s8 %v4863
        %v4865 = vlaneseq
        %v4866 = vshrl.u32 %v4865, 7
        %v4867 = vsub.s32 %v4864, %v4866
        %v4868 = vrot.slane %v4860, %v4867
        %v4870 = vunpack.c.l.s4 1934713408
        %v4871 = vunpack.c.0.s8 %v4870
        %v4872 = vlaneseq
        %v4873 = vshrl.u32 %v4872, 7
        %v4874 = vsub.s32 %v4871, %v4873
        %v4875 = vrot.slane %v4861, %v4874
        %v4876 = vcombine.low %v4843, %v4859
        %v4877 = vcombine.high %v4843, %v4859
        %v4879 = vunpack.c.l.s4 1934713408
        %v4880 = vunpack.c.0.s8 %v4879
        %v4881 = vlaneseq
        %v4882 = vshrl.u32 %v4881, 7
        %v4883 = vsub.s32 %v4880, %v4882
        %v4884 = vrot.slane %v4876, %v4883
        %v4886 = vunpack.c.l.s4 1934713408
        %v4887 = vunpack.c.0.s8 %v4886
        %v4888 = vlaneseq
        %v4889 = vshrl.u32 %v4888, 7
        %v4890 = vsub.s32 %v4887, %v4889
        %v4891 = vrot.slane %v4877, %v4890
        %v4892 = vcombine.high %v4868, 0.0
        %v4893 = vcombine.high %v4875, 0.0
        %v4894 = vcombine.high %v4884, 0.0
        %v4895 = vcombine.high %v4891, 0.0
        %v4896 = vcombine.low %v4807, %v4815
        %v4897 = vcombine.high %v4807, %v4815
        %v4899 = vunpack.c.l.s4 1983009808
        %v4900 = vunpack.c.0.s8 %v4899
        %v4901 = vlaneseq
        %v4902 = vshrl.u32 %v4901, 7
        %v4903 = vsub.s32 %v4900, %v4902
        %v4904 = vrot.slane %v4896, %v4903
        %v4906 = vunpack.c.l.s4 1983009808
        %v4907 = vunpack.c.0.s8 %v4906
        %v4908 = vlaneseq
        %v4909 = vshrl.u32 %v4908, 7
        %v4910 = vsub.s32 %v4907, %v4909
        %v4911 = vrot.slane %v4897, %v4910
        %v4912 = vcombine.low %v4811, %v4819
        %v4913 = vcombine.high %v4811, %v4819
        %v4915 = vunpack.c.l.s4 1983009808
        %v4916 = vunpack.c.0.s8 %v4915
        %v4917 = vlaneseq
        %v4918 = vshrl.u32 %v4917, 7
        %v4919 = vsub.s32 %v4916, %v4918
        %v4920 = vrot.slane %v4912, %v4919
        %v4922 = vunpack.c.l.s4 1983009808
        %v4923 = vunpack.c.0.s8 %v4922
        %v4924 = vlaneseq
        %v4925 = vshrl.u32 %v4924, 7
        %v4926 = vsub.s32 %v4923, %v4925
        %v4927 = vrot.slane %v4913, %v4926
        %v4928 = vcombine.low %v4904, %v4920
        %v4929 = vcombine.high %v4904, %v4920
        %v4931 = vunpack.c.l.s4 1934713408
        %v4932 = vunpack.c.0.s8 %v4931
        %v4933 = vlaneseq
        %v4934 = vshrl.u32 %v4933, 7
        %v4935 = vsub.s32 %v4932, %v4934
        %v4936 = vrot.slane %v4928, %v4935
        %v4938 = vunpack.c.l.s4 1934713408
        %v4939 = vunpack.c.0.s8 %v4938
        %v4940 = vlaneseq
        %v4941 = vshrl.u32 %v4940, 7
        %v4942 = vsub.s32 %v4939, %v4941
        %v4943 = vrot.slane %v4929, %v4942
        %v4944 = vcombine.low %v4911, %v4927
        %v4945 = vcombine.high %v4911, %v4927
        %v4947 = vunpack.c.l.s4 1934713408
        %v4948 = vunpack.c.0.s8 %v4947
        %v4949 = vlaneseq
        %v4950 = vshrl.u32 %v4949, 7
        %v4951 = vsub.s32 %v4948, %v4950
        %v4952 = vrot.slane %v4944, %v4951
        %v4954 = vunpack.c.l.s4 1934713408
        %v4955 = vunpack.c.0.s8 %v4954
        %v4956 = vlaneseq
        %v4957 = vshrl.u32 %v4956, 7
        %v4958 = vsub.s32 %v4955, %v4957
        %v4959 = vrot.slane %v4945, %v4958
        %v4960 = vcombine.high %v4936, 0.0
        %v4961 = vcombine.high %v4943, 0.0
        %v4962 = vcombine.high %v4952, 0.0
        %v4963 = vcombine.high %v4959, 0.0
        %4965 = vrot.lane.b32.xlu0 %v4892, 16
        %v4966 = vpop.permute.xlu0 %4965
        %4969 = vrot.lane.b32.xlu0 %v4875, 32
        %v4970 = vpop.permute.xlu0 %4969
        %4973 = vrot.lane.b32.xlu0 %v4893, 48
        %v4974 = vpop.permute.xlu0 %4973
        %4977 = vrot.lane.b32.xlu0 %v4884, 64
        %v4978 = vpop.permute.xlu0 %4977
        %4981 = vrot.lane.b32.xlu0 %v4894, 80
        %v4982 = vpop.permute.xlu0 %4981
        %4985 = vrot.lane.b32.xlu0 %v4891, 96
        %v4986 = vpop.permute.xlu0 %4985
        %4989 = vrot.lane.b32.xlu0 %v4895, 112
        %v4990 = vpop.permute.xlu0 %4989
        %4993 = vrot.lane.b32.xlu0 %v4960, 16
        %v4994 = vpop.permute.xlu0 %4993
        %4997 = vrot.lane.b32.xlu0 %v4943, 32
        %v4998 = vpop.permute.xlu0 %4997
        %5001 = vrot.lane.b32.xlu0 %v4961, 48
        %v5002 = vpop.permute.xlu0 %5001
        %5005 = vrot.lane.b32.xlu0 %v4952, 64
        %v5006 = vpop.permute.xlu0 %5005
        %5009 = vrot.lane.b32.xlu0 %v4962, 80
        %v5010 = vpop.permute.xlu0 %5009
        %5013 = vrot.lane.b32.xlu0 %v4959, 96
        %v5014 = vpop.permute.xlu0 %5013
        %5017 = vrot.lane.b32.xlu0 %v4963, 112
        %v5018 = vpop.permute.xlu0 %5017
        %v5020 = vsel %vm803, %v4868, %v4966
        %v5021 = vsel %vm805, %v5020, %v4970
        %v5022 = vsel %vm807, %v5021, %v4974
        %v5023 = vsel %vm809, %v5022, %v4978
        %v5024 = vsel %vm811, %v5023, %v4982
        %v5025 = vsel %vm813, %v5024, %v4986
        %v5026 = vsel %vm815, %v5025, %v4990
        %v5027 = vsel %vm803, %v4936, %v4994
        %v5028 = vsel %vm805, %v5027, %v4998
        %v5029 = vsel %vm807, %v5028, %v5002
        %v5030 = vsel %vm809, %v5029, %v5006
        %v5031 = vsel %vm811, %v5030, %v5010
        %v5032 = vsel %vm813, %v5031, %v5014
        %v5033 = vsel %vm815, %v5032, %v5018
        %5034 = vrot.lane.b32.xlu0 %v4572, 126
        %v5035 = vpop.permute.xlu0 %5034
        %5036 = vrot.lane.b32.xlu0 %v4574, 126
        %v5037 = vpop.permute.xlu0 %5036
        %5038 = vrot.lane.b32.xlu0 %v4577, 126
        %v5039 = vpop.permute.xlu0 %5038
        %5040 = vrot.lane.b32.xlu0 %v4579, 126
        %v5041 = vpop.permute.xlu0 %5040
        %5042 = vrot.lane.b32.xlu0 %v4582, 126
        %v5043 = vpop.permute.xlu0 %5042
        %5044 = vrot.lane.b32.xlu0 %v4584, 126
        %v5045 = vpop.permute.xlu0 %5044
        %5046 = vrot.lane.b32.xlu0 %v4587, 126
        %v5047 = vpop.permute.xlu0 %5046
        %5048 = vrot.lane.b32.xlu0 %v4589, 126
        %v5049 = vpop.permute.xlu0 %5048
        %v5058 = vcombine.low %v5035, %v5043
        %v5059 = vcombine.high %v5035, %v5043
        %v5061 = vunpack.c.l.s4 1983009808
        %v5062 = vunpack.c.0.s8 %v5061
        %v5063 = vlaneseq
        %v5064 = vshrl.u32 %v5063, 7
        %v5065 = vsub.s32 %v5062, %v5064
        %v5066 = vrot.slane %v5058, %v5065
        %v5068 = vunpack.c.l.s4 1983009808
        %v5069 = vunpack.c.0.s8 %v5068
        %v5070 = vlaneseq
        %v5071 = vshrl.u32 %v5070, 7
        %v5072 = vsub.s32 %v5069, %v5071
        %v5073 = vrot.slane %v5059, %v5072
        %v5074 = vcombine.low %v5039, %v5047
        %v5075 = vcombine.high %v5039, %v5047
        %v5077 = vunpack.c.l.s4 1983009808
        %v5078 = vunpack.c.0.s8 %v5077
        %v5079 = vlaneseq
        %v5080 = vshrl.u32 %v5079, 7
        %v5081 = vsub.s32 %v5078, %v5080
        %v5082 = vrot.slane %v5074, %v5081
        %v5084 = vunpack.c.l.s4 1983009808
        %v5085 = vunpack.c.0.s8 %v5084
        %v5086 = vlaneseq
        %v5087 = vshrl.u32 %v5086, 7
        %v5088 = vsub.s32 %v5085, %v5087
        %v5089 = vrot.slane %v5075, %v5088
        %v5090 = vcombine.low %v5066, %v5082
        %v5091 = vcombine.high %v5066, %v5082
        %v5093 = vunpack.c.l.s4 1934713408
        %v5094 = vunpack.c.0.s8 %v5093
        %v5095 = vlaneseq
        %v5096 = vshrl.u32 %v5095, 7
        %v5097 = vsub.s32 %v5094, %v5096
        %v5098 = vrot.slane %v5090, %v5097
        %v5100 = vunpack.c.l.s4 1934713408
        %v5101 = vunpack.c.0.s8 %v5100
        %v5102 = vlaneseq
        %v5103 = vshrl.u32 %v5102, 7
        %v5104 = vsub.s32 %v5101, %v5103
        %v5105 = vrot.slane %v5091, %v5104
        %v5106 = vcombine.low %v5073, %v5089
        %v5107 = vcombine.high %v5073, %v5089
        %v5109 = vunpack.c.l.s4 1934713408
        %v5110 = vunpack.c.0.s8 %v5109
        %v5111 = vlaneseq
        %v5112 = vshrl.u32 %v5111, 7
        %v5113 = vsub.s32 %v5110, %v5112
        %v5114 = vrot.slane %v5106, %v5113
        %v5116 = vunpack.c.l.s4 1934713408
        %v5117 = vunpack.c.0.s8 %v5116
        %v5118 = vlaneseq
        %v5119 = vshrl.u32 %v5118, 7
        %v5120 = vsub.s32 %v5117, %v5119
        %v5121 = vrot.slane %v5107, %v5120
        %v5122 = vcombine.high %v5098, 0.0
        %v5123 = vcombine.high %v5105, 0.0
        %v5124 = vcombine.high %v5114, 0.0
        %v5125 = vcombine.high %v5121, 0.0
        %v5126 = vcombine.low %v5037, %v5045
        %v5127 = vcombine.high %v5037, %v5045
        %v5129 = vunpack.c.l.s4 1983009808
        %v5130 = vunpack.c.0.s8 %v5129
        %v5131 = vlaneseq
        %v5132 = vshrl.u32 %v5131, 7
        %v5133 = vsub.s32 %v5130, %v5132
        %v5134 = vrot.slane %v5126, %v5133
        %v5136 = vunpack.c.l.s4 1983009808
        %v5137 = vunpack.c.0.s8 %v5136
        %v5138 = vlaneseq
        %v5139 = vshrl.u32 %v5138, 7
        %v5140 = vsub.s32 %v5137, %v5139
        %v5141 = vrot.slane %v5127, %v5140
        %v5142 = vcombine.low %v5041, %v5049
        %v5143 = vcombine.high %v5041, %v5049
        %v5145 = vunpack.c.l.s4 1983009808
        %v5146 = vunpack.c.0.s8 %v5145
        %v5147 = vlaneseq
        %v5148 = vshrl.u32 %v5147, 7
        %v5149 = vsub.s32 %v5146, %v5148
        %v5150 = vrot.slane %v5142, %v5149
        %v5152 = vunpack.c.l.s4 1983009808
        %v5153 = vunpack.c.0.s8 %v5152
        %v5154 = vlaneseq
        %v5155 = vshrl.u32 %v5154, 7
        %v5156 = vsub.s32 %v5153, %v5155
        %v5157 = vrot.slane %v5143, %v5156
        %v5158 = vcombine.low %v5134, %v5150
        %v5159 = vcombine.high %v5134, %v5150
        %v5161 = vunpack.c.l.s4 1934713408
        %v5162 = vunpack.c.0.s8 %v5161
        %v5163 = vlaneseq
        %v5164 = vshrl.u32 %v5163, 7
        %v5165 = vsub.s32 %v5162, %v5164
        %v5166 = vrot.slane %v5158, %v5165
        %v5168 = vunpack.c.l.s4 1934713408
        %v5169 = vunpack.c.0.s8 %v5168
        %v5170 = vlaneseq
        %v5171 = vshrl.u32 %v5170, 7
        %v5172 = vsub.s32 %v5169, %v5171
        %v5173 = vrot.slane %v5159, %v5172
        %v5174 = vcombine.low %v5141, %v5157
        %v5175 = vcombine.high %v5141, %v5157
        %v5177 = vunpack.c.l.s4 1934713408
        %v5178 = vunpack.c.0.s8 %v5177
        %v5179 = vlaneseq
        %v5180 = vshrl.u32 %v5179, 7
        %v5181 = vsub.s32 %v5178, %v5180
        %v5182 = vrot.slane %v5174, %v5181
        %v5184 = vunpack.c.l.s4 1934713408
        %v5185 = vunpack.c.0.s8 %v5184
        %v5186 = vlaneseq
        %v5187 = vshrl.u32 %v5186, 7
        %v5188 = vsub.s32 %v5185, %v5187
        %v5189 = vrot.slane %v5175, %v5188
        %v5190 = vcombine.high %v5166, 0.0
        %v5191 = vcombine.high %v5173, 0.0
        %v5192 = vcombine.high %v5182, 0.0
        %v5193 = vcombine.high %v5189, 0.0
        %5195 = vrot.lane.b32.xlu0 %v5122, 16
        %v5196 = vpop.permute.xlu0 %5195
        %5199 = vrot.lane.b32.xlu0 %v5105, 32
        %v5200 = vpop.permute.xlu0 %5199
        %5203 = vrot.lane.b32.xlu0 %v5123, 48
        %v5204 = vpop.permute.xlu0 %5203
        %5207 = vrot.lane.b32.xlu0 %v5114, 64
        %v5208 = vpop.permute.xlu0 %5207
        %5211 = vrot.lane.b32.xlu0 %v5124, 80
        %v5212 = vpop.permute.xlu0 %5211
        %5215 = vrot.lane.b32.xlu0 %v5121, 96
        %v5216 = vpop.permute.xlu0 %5215
        %5219 = vrot.lane.b32.xlu0 %v5125, 112
        %v5220 = vpop.permute.xlu0 %5219
        %5223 = vrot.lane.b32.xlu0 %v5190, 16
        %v5224 = vpop.permute.xlu0 %5223
        %5227 = vrot.lane.b32.xlu0 %v5173, 32
        %v5228 = vpop.permute.xlu0 %5227
        %5231 = vrot.lane.b32.xlu0 %v5191, 48
        %v5232 = vpop.permute.xlu0 %5231
        %5235 = vrot.lane.b32.xlu0 %v5182, 64
        %v5236 = vpop.permute.xlu0 %5235
        %5239 = vrot.lane.b32.xlu0 %v5192, 80
        %v5240 = vpop.permute.xlu0 %5239
        %5243 = vrot.lane.b32.xlu0 %v5189, 96
        %v5244 = vpop.permute.xlu0 %5243
        %5247 = vrot.lane.b32.xlu0 %v5193, 112
        %v5248 = vpop.permute.xlu0 %5247
        %v5250 = vsel %vm803, %v5098, %v5196
        %v5251 = vsel %vm805, %v5250, %v5200
        %v5252 = vsel %vm807, %v5251, %v5204
        %v5253 = vsel %vm809, %v5252, %v5208
        %v5254 = vsel %vm811, %v5253, %v5212
        %v5255 = vsel %vm813, %v5254, %v5216
        %v5256 = vsel %vm815, %v5255, %v5220
        %v5257 = vsel %vm803, %v5166, %v5224
        %v5258 = vsel %vm805, %v5257, %v5228
        %v5259 = vsel %vm807, %v5258, %v5232
        %v5260 = vsel %vm809, %v5259, %v5236
        %v5261 = vsel %vm811, %v5260, %v5240
        %v5262 = vsel %vm813, %v5261, %v5244
        %v5263 = vsel %vm815, %v5262, %v5248
        %v5266 = vrot.slane %v3634, 4
        %v5267 = vrot.slane %v3641, 4
        %v5272 = vrot.slane %v4102, 4
        %v5273 = vrot.slane %v4109, 4
        %v5278 = vrot.slane %v4562, 4
        %v5279 = vrot.slane %v4569, 4
        %v5284 = vrot.slane %v5026, 4
        %v5285 = vrot.slane %v5033, 4
        %v5288 = vsel %vm2710, %v3396, %v5266
        %v5289 = vsel %vm2710, %v3403, %v5267
        %v5290 = vsel %vm2710, %v3864, %v5272
        %v5291 = vsel %vm2710, %v3871, %v5273
        %v5292 = vsel %vm2710, %v4332, %v5278
        %v5293 = vsel %vm2710, %v4339, %v5279
        %v5294 = vsel %vm2710, %v4796, %v5284
        %v5295 = vsel %vm2710, %v4803, %v5285
        %v5297 = vsel %vm2719, %v2825, 0
        %v5300 = vsel %vm2710, %v5256, 0
        %v5303 = vsel %vm2710, %v5263, 0
        %5305 = vmatprep.subr.mxu0 %v5289
        %5306 = vmatpush1.msra.mxu0 %v5288
        %5307 = vmatprep.subr.mxu0 %v5291
        %5308 = vmatpush1.msra.mxu0 %v5290
        %5309 = vmatprep.subr.mxu0 %v5293
        %5310 = vmatpush1.msra.mxu0 %v5292
        %5311 = vmatprep.subr.mxu0 %v5295
        %5312 = vmatpush1.msra.mxu0 %v5294
        %5313 = vmatprep.subr.mxu0 %v5303
        %5314 = vmatpush1.msra.mxu0 %v5300
        %5315 = vmatprep.subr.mxu0 0.0
        %5316 = vmatpush1.msra.mxu0 0.0
        %5317 = vmatprep.subr.mxu0 0.0
        %5318 = vmatpush1.msra.mxu0 0.0
        %5319 = vmatprep.subr.mxu0 0.0
        %5320 = vmatpush1.msra.mxu0 0.0
        %5321 = vmatprep.subr.mxu0 0.0
        %5322 = vmatpush1.msra.mxu0 0.0
        %5323 = vmatprep.subr.mxu0 0.0
        %5324 = vmatpush1.msra.mxu0 0.0
        %5325 = vmatprep.subr.mxu0 0.0
        %5326 = vmatpush1.msra.mxu0 0.0
        %5327 = vmatprep.subr.mxu0 0.0
        %5328 = vmatpush1.msra.mxu0 0.0
        %5329 = vmatprep.subr.mxu0 0.0
        %5330 = vmatpush1.msra.mxu0 0.0
        %5331 = vmatprep.subr.mxu0 0.0
        %5332 = vmatpush1.msra.mxu0 0.0
        %5333 = vmatprep.subr.mxu0 0.0
        %5334 = vmatpush1.msra.mxu0 0.0
        %5335 = vmatprep.subr.mxu0 0.0
        %5336 = vmatpush1.msra.mxu0 0.0
        %5337 = vmatprep.subr.mxu0 0.0
        %5338 = vmatpush1.msra.mxu0 0.0
        %5339 = vmatprep.subr.mxu0 0.0
        %5340 = vmatpush1.msra.mxu0 0.0
        %5341 = vmatprep.subr.mxu0 0.0
        %5342 = vmatpush1.msra.mxu0 0.0
        %5343 = vmatprep.subr.mxu0 0.0
        %5344 = vmatpush1.msra.mxu0 0.0
        %5345 = vmatprep.subr.mxu0 0.0
        %5346 = vmatpush1.msra.mxu0 0.0
        %5347 = vmatprep.subr.mxu0 0.0
        %5348 = vmatpush1.msra.mxu0 0.0
        %5349 = vmatprep.subr.mxu0 0.0
        %5350 = vmatpush1.msra.mxu0 0.0
        %5351 = vmatprep.subr.mxu0 0.0
        %5352 = vmatpush1.msra.mxu0 0.0
        %5353 = vmatprep.subr.mxu0 0.0
        %5354 = vmatpush1.msra.mxu0 0.0
        %5355 = vmatprep.subr.mxu0 0.0
        %5356 = vmatpush1.msra.mxu0 0.0
        %5357 = vmatprep.subr.mxu0 0.0
        %5358 = vmatpush1.msra.mxu0 0.0
        %5359 = vmatprep.subr.mxu0 0.0
        %5360 = vmatpush1.msra.mxu0 0.0
        %5361 = vmatprep.subr.mxu0 0.0
        %5362 = vmatpush1.msra.mxu0 0.0
        %5363 = vmatprep.subr.mxu0 0.0
        %5364 = vmatpush1.msra.mxu0 0.0
        %5365 = vmatprep.subr.mxu0 0.0
        %5366 = vmatpush1.msra.mxu0 0.0
        %5367 = vmatprep.subr.mxu0 0.0
        %5368 = vmatpush1.msra.mxu0 0.0
        %5369 = vmatprep.mubr.f32.mxu0 0.0
        %5370 = vmatmul.mubr.f32.gmra.mrb[0].mxu0 %v5297
        %v5371 = vpop.f32.mrb[0].mxu0
        %v5372 = vadd.f32 0.0, %v5371
        %v5373 = vpop.f32.mrb[0].mxu0
        %v5374 = vadd.f32 0.0, %v5373
        %5375 = vdwg.mxu0
        %v5376 = vsel %vm2710, %v5372, 0.0
        %v5377 = vsel %vm2710, %v5374, 0.0
        %v5378 = vadd.f32 %v5376, %v5377
        %5379 = vadd.xlane.f32.xlu0 %v5378
        %v5380 = vpop.xlane.xlu0 %5379
        %v5381 = vmul.f32 %v5372, %v5372
        %v5382 = vmul.f32 %v5374, %v5374
        %v5383 = vsel %vm2710, %v5381, 0.0
        %v5384 = vsel %vm2710, %v5382, 0.0
        %v5385 = vadd.f32 %v5383, %v5384
        %5386 = vadd.xlane.f32.xlu0 %v5385
        %v5387 = vpop.xlane.xlu0 %5386
        %v5388 = vmul.f32 %v5380, 0.00390625
        %v5389 = vmul.f32 %v5387, 0.00390625
        %v5390 = vmul.f32 %v5388, %v5388
        %v5391 = vsub.f32 %v5389, %v5390
        %v5392 = vmax.f32 %v5391, 0.0
        %v5393 = vsub.f32 %v5372, %v5388
        %v5394 = vsub.f32 %v5374, %v5388
        %v5395 = vadd.f32 %v5392, 1e-05
        %v5396 = vrsqrt.pop %v5395
        %v5397 = vmul.f32 %v5393, %v5396
        %v5398 = vmul.f32 %v5394, %v5396
        %v5401 = vcombine.low %v5397, %v5398
        %v5403 = vadd.f32 %v200, %v5401
        %5404 = vst [vmem:[%s199] sm:$0xff] %v5403
        %s5405 = sand.u32 %s97, 1
        %s5406 = scalar_lea.sflag [#allocation4], %s5405
        %s5407 = sand.u32 %s97, 1
        %s5408 = smul.addr %s5407, 8
        %s5409 = scalar_lea.vmem [#allocation7], %s5408
        // Predicated region
        $region41: #{tpu_custom_call.1} parent=31 // pred_check
          %p5410 = pneg %p107
        $region42: #{tpu_custom_call.1} parent=31 // pred_check_branch
          %5412 = sbr.rel (%p5410) target = $region44
        $region43: #{tpu_custom_call.1} parent=31 // pred_region
          %s5414 = ssub.s32 128, 128
          %5415 = vsyncadd %s5406, %s5414
          %s5416 = smul.addr %s21, 2
          %s5417 = smul.addr %s5416, 64
          %s5418 = scalar_lea.hbm %s3, %s5417
          %s5420 = sshll.u32 %s5409, 4
          %s5421 = int_to_ptr.vmem [resolvable:$true] %s5420
          %5423 = dma.vmem_to_hbm [thread:$0]  %s5421, 128, %s5418, %s5406
        $region44: #{tpu_custom_call.1} parent=31 // pred_fallthru
          _
      $region32: #{tpu_custom_call.1} parent=5 // pred_fallthru
        _
      %p5424 = scmp.le.s32.totalorder 2, %s16
      // Predicated region
      $region45: #{tpu_custom_call.1} parent=5 // pred_check
        %p5425 = pneg %p5424
      $region46: #{tpu_custom_call.1} parent=5 // pred_check_branch
        %5427 = sbr.rel (%p5425) target = $region48
      $region47: #{tpu_custom_call.1} parent=5 // pred_region
        %s5428 = ssub.s32 %s16, 2
        // Predicated region
        $region49: #{tpu_custom_call.1} parent=47 // pred_check
          %p5429 = pneg %p113
        $region50: #{tpu_custom_call.1} parent=47 // pred_check_branch
          %5431 = sbr.rel (%p5429) target = $region52
        $region51: #{tpu_custom_call.1} parent=47 // pred_region
          %s5432 = sand.u32 %s98, 1
          %s5433 = scalar_lea.sflag [#allocation4], %s5432
          %s5434 = sand.u32 %s98, 1
          %s5435 = smul.addr %s5434, 8
          %s5436 = scalar_lea.vmem [#allocation7], %s5435
          %5437 = dma.done %s5433, 128
        $region52: #{tpu_custom_call.1} parent=47 // pred_fallthru
          _
      $region48: #{tpu_custom_call.1} parent=5 // pred_fallthru
        _
    $region6: #{tpu_custom_call.1} parent=1 // loop_footer
      %s20 = sadd.s32 1, %s16
    $region7: #{tpu_custom_call.1} parent=1 // loop_footer_branch
      %15 = sbr.rel target = $region3
    $region8: #{tpu_custom_call.1} parent=1 // loop_exit
      _
    %5438 = vsyncpa [#allocation3], 1
    %s5439 = scalar_lea.sflag [#allocation3], 1
    %5440 = vsyncpa %s5439, 1
    %5441 = vsyncpa [#allocation6], 1
    %5442 = vsyncpa [#allocation4], 1
    %s5443 = scalar_lea.sflag [#allocation4], 1
    %5444 = vsyncpa %s5443, 1

</llo_original>
